<compile_context>
chip_gen: v7x
topology: tpu7x:2x2x1
jax: 0.10.0
libtpu: 0.0.40
codegen_flags: <defaults>
</compile_context>

<pallas_src>
import functools

import jax
import jax.numpy as jnp
from jax.experimental import pallas as pl
from jax.experimental.pallas import tpu as pltpu


# ---------------------------------------------------------------------------
# Kernel: length-masked copy on a lane-dense flat (B, max_len*dim) layout.
# ---------------------------------------------------------------------------
def _pad_mask_kernel(len_ref, x_ref, out_ref):
    """len_ref : (TB, 1) int32 -- per-row valid size, pre-scaled by dim (= length*dim).
    x_ref   : (TB, TC)        -- flat [seq*dim] chunk (may hold garbage past len).
    out_ref : (TB, TC)        -- zero at/after the valid size."""
    tc = x_ref.shape[1]
    col0 = pl.program_id(1) * tc                       # flat-column offset of this tile
    pos = col0 + jax.lax.broadcasted_iota(jnp.int32, x_ref.shape, dimension=1)
    x = x_ref[...]
    out_ref[...] = jnp.where(pos < len_ref[...], x, jnp.zeros_like(x))


# ---------------------------------------------------------------------------
# VMEM planning and tile-size selection
# ---------------------------------------------------------------------------
_BYPASS_BYTES = 1 << 20          # below this, fused XLA `where` beats a pallas_call
_MULTIBLOCK_BYTES = 2 << 20      # only force a >=2-block grid above this size


def _vmem_plan():
    """(scoped vmem limit, per-buffer block budget), generation aware.

    v7x has 64 MiB physical VMEM (vs 128 MiB on v5e/v6e) but the highest HBM
    bandwidth, so we clamp the scoped limit to 3/4 of physical (max 48 MiB) and
    size blocks so 2 in-bufs + 2 out-bufs (double buffering) fit with headroom.
    """
    cap = 128 * 1024 * 1024
    try:
        cap = int(pltpu.get_tpu_info().vmem_capacity_bytes)
    except Exception:
        pass
    limit = min(48 * 1024 * 1024, (cap * 3) // 4)
    budget = min(8 * 1024 * 1024, limit // 5)
    return limit, budget


def _pick_batch_tile(b_pad, row_bytes, sub_step, budget):
    """Largest multiple of sub_step dividing b_pad with tb*row_bytes <= budget
    (falls back to sub_step if even one row-group exceeds the budget)."""
    best = sub_step
    tb = sub_step
    while tb <= b_pad:
        if b_pad % tb == 0 and tb * row_bytes <= budget:
            best = tb
        tb += sub_step
    return best


def _pick_flat_tile(f, tb, itemsize, budget):
    """Largest multiple of 128 dividing f with tb*tc*itemsize <= budget.
    If f is not a multiple of 128 the block must cover the full flat axis."""
    if f % 128 != 0 or tb * f * itemsize <= budget:
        return f
    best = 128
    tc = 128
    limit = budget // max(tb * itemsize, 1)
    hi = min(f, limit)
    while tc <= hi:
        if f % tc == 0:
            best = tc
        tc += 128
    return best


def _ensure_multi_block(b_pad, f, tb, tc, sub_step):
    """Avoid a (1, 1) grid so both v7x TensorCores get work (parallel axes)."""
    if b_pad // tb > 1 or f // tc > 1:
        return tb, tc
    # Prefer splitting the batch axis (keeps lane-dense, unmasked stores).
    cand = tb - sub_step
    while cand >= sub_step:
        if b_pad % cand == 0:
            return cand, tc
        cand -= sub_step
    # Otherwise split the flat axis (must stay a multiple of 128).
    if f % 128 == 0:
        cand = ((tc // 2) // 128) * 128
        while cand >= 128:
            if f % cand == 0:
                return tb, cand
            cand -= 128
    return tb, tc


# ---------------------------------------------------------------------------
# Public wrappers (forward_batch / forward)
# ---------------------------------------------------------------------------
def _mask_small(features, lengths):
    """Fused elementwise path for tiny shapes (no kernel-dispatch overhead)."""
    pos = jax.lax.broadcasted_iota(jnp.int32, (1, features.shape[1], 1), 1)
    valid = pos < lengths[:, None, None]
    return jnp.where(valid, features, jnp.zeros_like(features))


def forward_batch(features, lengths, donate_features=False):
    """Pallas equivalent of DynamicFeatures.forward_batch.

    features: (B, max_len, dim) -- per-env features stacked/padded
              (entries past lengths[b] may contain garbage).
    lengths:  (B,) int          -- true sequence length per env.
    donate_features: if True, alias the feature input to the output
              (input_output_aliases); callers under jit should donate
              `features` to avoid a defensive copy.

    Returns (batched_features, lengths) with batched_features[b, t, :] == 0
    for t >= lengths[b] (matching the zero-init buffer + partial copy).
    """
    B, max_len, dim = features.shape
    F = max_len * dim
    itemsize = jnp.dtype(features.dtype).itemsize
    lengths = jnp.asarray(lengths, dtype=jnp.int32)

    # Small-shape bypass: the module's nominal shapes are KiB-scale.
    if B * F * itemsize < _BYPASS_BYTES:
        return _mask_small(features, lengths), lengths

    vmem_limit, budget = _vmem_plan()

    # Packed-sublane batch-tile step per dtype (8 f32 / 16 bf16 / 32 int8-fp8).
    sub_step = max(8, 32 // itemsize)
    b_pad = ((B + sub_step - 1) // sub_step) * sub_step

    x_flat = features.reshape(B, F)              # lane-dense: full row on lane axis
    len_flat = (lengths * jnp.int32(dim)).reshape(B, 1)   # pre-scaled by dim
    if b_pad != B:
        x_flat = jnp.pad(x_flat, ((0, b_pad - B), (0, 0)))
        len_flat = jnp.pad(len_flat, ((0, b_pad - B), (0, 0)))  # pad rows: length 0

    tb = _pick_batch_tile(b_pad, F * itemsize, sub_step, budget)
    tc = _pick_flat_tile(F, tb, itemsize, budget)
    if b_pad * F * itemsize >= _MULTIBLOCK_BYTES:
        tb, tc = _ensure_multi_block(b_pad, F, tb, tc, sub_step)
    grid = (b_pad // tb, F // tc)

    call_kwargs = {}
    if donate_features:
        call_kwargs["input_output_aliases"] = {1: 0}   # x_flat -> output

    out_flat = pl.pallas_call(
        _pad_mask_kernel,
        out_shape=jax.ShapeDtypeStruct((b_pad, F), features.dtype),
        grid_spec=pltpu.PrefetchScalarGridSpec(
            num_scalar_prefetch=0,
            grid=grid,
            in_specs=[
                pl.BlockSpec((tb, 1), lambda i, j: (i, 0)),    # per-row valid sizes
                pl.BlockSpec((tb, tc), lambda i, j: (i, j)),   # flat features
            ],
            out_specs=pl.BlockSpec((tb, tc), lambda i, j: (i, j)),
        ),
        compiler_params=pltpu.CompilerParams(
            dimension_semantics=("parallel", "parallel"),
            vmem_limit_bytes=vmem_limit,
        ),
        **call_kwargs,
    )(len_flat, x_flat)

    if b_pad != B:
        out_flat = out_flat[:B]
    return out_flat.reshape(B, max_len, dim), lengths


def forward(batched_features, lengths, i):
    """Pallas-side equivalent of DynamicFeatures.forward for a cached env i.

    PyTorch returns shape (1, lengths[i], dim); dynamic output shapes are not
    expressible in JAX, so the full padded row (1, max_len, dim) is returned,
    whose entries past lengths[i] are already zero.
    """
    # TODO(synk): dynamic-length (1, l, dim) output has no JAX equivalent; padded row returned.
    del lengths
    return jax.lax.dynamic_slice_in_dim(batched_features, i, 1, axis=0)


# ---------------------------------------------------------------------------
# Self-test
# ---------------------------------------------------------------------------
if __name__ == "__main__":
    key = jax.random.PRNGKey(0)

    def _reference(features, lengths):
        pos = jnp.arange(features.shape[1])[None, :, None]
        return jnp.where(pos < lengths[:, None, None], features, jnp.zeros_like(features))

    # --- case 1: module's nominal small shape (B=2, max_len=8, dim=32) -> bypass ---
    B, max_len, dim = 2, 8, 32
    k1, k2, k3, k4 = jax.random.split(key, 4)
    features = jax.random.normal(k1, (B, max_len, dim), dtype=jnp.float32)
    lengths = jnp.array([5, 8], dtype=jnp.int32)

    batched, lens = forward_batch(features, lengths)
    batched = jax.block_until_ready(batched)
    assert jnp.allclose(batched, _reference(features, lengths)), "case 1 mismatch"

    f0 = jax.block_until_ready(forward(batched, lens, 0))
    assert f0.shape == (1, max_len, dim)
    assert jnp.allclose(f0[0, : int(lens[0])], features[0, : int(lens[0])])
    assert jnp.allclose(f0[0, int(lens[0]):], 0.0)

    # --- case 2: edge-case lengths (0 and max_len), still on the bypass path ---
    B2, L2, D2 = 16, 24, 48
    feats2 = jax.random.normal(k2, (B2, L2, D2), dtype=jnp.float32)
    lens2 = jnp.array([0, 1, 3, 7, 8, 12, 15, 24, 5, 24, 2, 9, 0, 16, 23, 11],
                      dtype=jnp.int32)
    out2, _ = forward_batch(feats2, lens2)
    out2 = jax.block_until_ready(out2)
    assert jnp.allclose(out2, _reference(feats2, lens2)), "case 2 mismatch"

    # --- case 3: moderate size -> Pallas path, grid split for megacore ---
    B3, L3, D3 = 16, 512, 128
    feats3 = jax.random.normal(k3, (B3, L3, D3), dtype=jnp.float32)
    lens3 = (jnp.arange(B3, dtype=jnp.int32) * 37) % (L3 + 1)
    out3, _ = forward_batch(feats3, lens3)
    out3 = jax.block_until_ready(out3)
    assert jnp.allclose(out3, _reference(feats3, lens3)), "case 3 mismatch"

    # --- case 4: ragged batch (B % 8 != 0), aliasing path exercised ---
    B4, L4, D4 = 10, 384, 96
    feats4 = jax.random.normal(k4, (B4, L4, D4), dtype=jnp.float32)
    lens4 = jnp.array([0, 384, 7, 100, 383, 50, 1, 200, 12, 300], dtype=jnp.int32)
    ref4 = _reference(feats4, lens4)
    out4, _ = forward_batch(feats4, lens4, donate_features=True)
    out4 = jax.block_until_ready(out4)
    assert jnp.allclose(out4, ref4), "case 4 mismatch"

    print("KERNEL_OK")
</pallas_src>

<mosaic_0001>
module attributes {stable_mosaic.version = 11 : i64} {
  func.func @_pad_mask_kernel(%arg0: i32, %arg1: i32, %arg2: memref<8x1xi32, #tpu.memory_space<vmem>>, %arg3: memref<8x65536xf32, #tpu.memory_space<vmem>>, %arg4: memref<8x65536xf32, #tpu.memory_space<vmem>>) attributes {dimension_semantics = [#tpu.dimension_semantics<parallel>, #tpu.dimension_semantics<parallel>], iteration_bounds = array<i64: 2, 1>, scalar_prefetch = 0 : i64, scratch_operands = 0 : i64, tpu.core_type = #tpu.core_type<tc>, window_params = [{transform_indices = @transform_0, window_bounds = array<i64: 8, 1>}, {transform_indices = @transform_1, window_bounds = array<i64: 8, 65536>}, {transform_indices = @transform_2, window_bounds = array<i64: 8, 65536>}]} {
    %c65536_i32 = arith.constant 65536 : i32
    %0 = arith.muli %arg1, %c65536_i32 : i32
    %1 = tpu.iota {dimensions = array<i32: 1>} : vector<8x65536xi32>
    %2 = vector.broadcast %0 : i32 to vector<8x65536xi32>
    %3 = arith.addi %2, %1 : vector<8x65536xi32>
    %c0 = arith.constant 0 : index
    %c0_0 = arith.constant 0 : index
    %4 = vector.load %arg3[%c0, %c0_0] : memref<8x65536xf32, #tpu.memory_space<vmem>>, vector<8x65536xf32>
    %c0_1 = arith.constant 0 : index
    %c0_2 = arith.constant 0 : index
    %5 = vector.load %arg2[%c0_1, %c0_2] : memref<8x1xi32, #tpu.memory_space<vmem>>, vector<8x1xi32>
    %6 = vector.broadcast %5 : vector<8x1xi32> to vector<8x65536xi32>
    %7 = arith.cmpi slt, %3, %6 : vector<8x65536xi32>
    %cst = arith.constant 0.000000e+00 : f32
    %8 = vector.broadcast %cst : f32 to vector<8x65536xf32>
    %9 = arith.select %7, %4, %8 : vector<8x65536xi1>, vector<8x65536xf32>
    %c0_3 = arith.constant 0 : index
    %c0_4 = arith.constant 0 : index
    %10 = vector.load %arg4[%c0_3, %c0_4] : memref<8x65536xf32, #tpu.memory_space<vmem>>, vector<8x65536xf32>
    tpu.vector_store %arg4[%c0_3, %c0_4], %9 {strides = array<i32>} : memref<8x65536xf32, #tpu.memory_space<vmem>>, vector<8x65536xf32>,
    return
  }
  func.func @transform_0(%arg0: i32, %arg1: i32) -> (i32, i32) {
    %c0_i32 = arith.constant 0 : i32
    %c0_i32_0 = arith.constant 0 : i32
    return %arg0, %c0_i32 : i32, i32
  }
  func.func @transform_1(%arg0: i32, %arg1: i32) -> (i32, i32) {
    %c0_i32 = arith.constant 0 : i32
    return %arg0, %arg1 : i32, i32
  }
  func.func @transform_2(%arg0: i32, %arg1: i32) -> (i32, i32) {
    %c0_i32 = arith.constant 0 : i32
    return %arg0, %arg1 : i32, i32
  }
}

</mosaic_0001>

<llo_original>
// kernel: tpu_custom_call.1
$region0: #{tpu_custom_call.1}
  #allocation0 [shape = 'u32[]', space=smem, size = 0x4, offset = 0x4, fixed_abs, tag = 'smem constant byte address 0x4 - core index']
  #allocation1 [shape = 'u32[144,128]{1,0:T(1,128)}', space=vmem, size = 0x12000, scoped, tag = 'internal scratch']
  %s0 = inlined_call_operand.vmem [shape: s32[16,1], index: 0, kind: input, shape index: {}]
  %s1 = inlined_call_operand.hbm [shape: f32[16,65536], index: 1, kind: input, shape index: {}]
  %s2 = inlined_call_operand.hbm [shape: f32[16,65536], index: 2, kind: output, shape index: {}]
  %s3 = sld [smem:[#allocation0]]
  $region45: #{tpu_custom_call.1} parent=0
    _
  %s5 = ssub.s32 1, %s3
  %s6 = scalar_select 0, %s5, %s3
  $region1: #{tpu_custom_call.1} parent=0
    #allocation2 [shape = 'u8[4194304]{0}', space=vmem, size = 0x400000, scoped, tag = 'input window, operand 1']
    #allocation3 [shape = 's32[2]{0}', space=sflag, size = 0x8, scoped, tag = 'scoped memory for tpu_custom_call.1']
    #allocation4 [shape = 's32[2]{0}', space=sflag, size = 0x8, scoped, tag = 'scoped memory for tpu_custom_call.1']
    #allocation5 [shape = 'u8[4194304]{0}', space=vmem, size = 0x400000, scoped, tag = 'output window, operand 0']
    %7 = vsyncpa [#allocation3], 0
    %s8 = scalar_lea.sflag [#allocation3], 1
    %9 = vsyncpa %s8, 0
    %10 = vsyncpa [#allocation4], 0
    %s11 = scalar_lea.sflag [#allocation4], 1
    %12 = vsyncpa %s11, 0
    loop: start=0, step=1, limit=4
    $region2: #{tpu_custom_call.1} parent=1 // loop_pre_header
      _
    $region3: #{tpu_custom_call.1} parent=1 // loop_header
      %s14 = sphi 0, %s18
      %p15 = scmp.ge.s32.totalorder %s14, 4
      %s21 = sphi 0, %s33
      %s22 = sphi 0, %s29
      %s23 = sphi 0, %s21
      %s24 = sphi 0, %s22
      %s25 = sphi 0, %s23
      %s26 = sphi 0, %s24
      %s36 = sphi 0, %s38
      %s39 = sphi 0, %s36
      %s40 = sphi 0, %s39
      %s56 = sphi 0, %s40
      %s64 = sphi 0, %s66
      %s67 = sphi 0, %s64
      %s68 = sphi 0, %s67
      %s84 = sphi 0, %s68
      %s92 = sphi 0, %s94
      %s95 = sphi 0, %s92
      %s96 = sphi 0, %s95
      %s112 = sphi 0, %s96
    $region4: #{tpu_custom_call.1} parent=1 // loop_header_branch
      %17 = sbr.rel (%p15) target = $region8
    $region5: #{tpu_custom_call.1} parent=1 // loop_body
      %s19 = ssub.s32 %s14, 1
      %s20 = ssub.s32 %s14, 2
      %s27 = sadd.s32 1, %s22
      %p28 = scmp.ge.s32.totalorder %s27, 1
      %s29 = scalar_select %p28, 0, %s27
      %s30 = sadd.s32 1, %s21
      %s31 = scalar_select %p28, %s30, %s21
      %p32 = scmp.ge.s32.totalorder %s31, 2
      %s33 = scalar_select %p32, 0, %s31
      %s34 = ssub.s32 %s21, %s33
      %p35 = scmp.eq.s32.totalorder %s34, 0
      %s37 = sadd.s32 %s36, 1
      %s38 = scalar_select %p35, %s36, %s37
      %p41 = pneg %p35
      %p42 = scmp.eq.s32.totalorder %s14, 1
      %p43 = por %p41, %p42
      %p44 = scmp.ne.s32.totalorder %s36, %s39
      %p45 = scmp.eq.s32.totalorder %s14, 0
      %p46 = por %p44, %p45
      %p47 = scmp.ne.s32.totalorder %s36, %s39
      %p48 = scmp.eq.s32.totalorder %s19, 1
      %p49 = por %p47, %p48
      %p50 = scmp.ne.s32.totalorder %s39, %s40
      %p51 = scmp.eq.s32.totalorder %s19, 0
      %p52 = por %p50, %p51
      %p53 = scmp.ne.s32.totalorder %s39, %s40
      %p54 = scmp.eq.s32.totalorder %s20, 1
      %p55 = por %p53, %p54
      %p57 = scmp.ne.s32.totalorder %s40, %s56
      %p58 = scmp.eq.s32.totalorder %s20, 0
      %p59 = por %p57, %p58
      %s60 = ssub.s32 %s21, %s33
      %s61 = ssub.s32 %s22, %s29
      %s62 = sor.u32 %s60, %s61
      %p63 = scmp.eq.s32.totalorder %s62, 0
      %s65 = sadd.s32 %s64, 1
      %s66 = scalar_select %p63, %s64, %s65
      %p69 = pneg %p63
      %p70 = scmp.eq.s32.totalorder %s14, 1
      %p71 = por %p69, %p70
      %p72 = scmp.ne.s32.totalorder %s64, %s67
      %p73 = scmp.eq.s32.totalorder %s14, 0
      %p74 = por %p72, %p73
      %p75 = scmp.ne.s32.totalorder %s64, %s67
      %p76 = scmp.eq.s32.totalorder %s19, 1
      %p77 = por %p75, %p76
      %p78 = scmp.ne.s32.totalorder %s67, %s68
      %p79 = scmp.eq.s32.totalorder %s19, 0
      %p80 = por %p78, %p79
      %p81 = scmp.ne.s32.totalorder %s67, %s68
      %p82 = scmp.eq.s32.totalorder %s20, 1
      %p83 = por %p81, %p82
      %p85 = scmp.ne.s32.totalorder %s68, %s84
      %p86 = scmp.eq.s32.totalorder %s20, 0
      %p87 = por %p85, %p86
      %s88 = ssub.s32 %s21, %s33
      %s89 = ssub.s32 %s22, %s29
      %s90 = sor.u32 %s88, %s89
      %p91 = scmp.eq.s32.totalorder %s90, 0
      %s93 = sadd.s32 %s92, 1
      %s94 = scalar_select %p91, %s92, %s93
      %p97 = pneg %p91
      %p98 = scmp.eq.s32.totalorder %s14, 1
      %p99 = por %p97, %p98
      %p100 = scmp.ne.s32.totalorder %s92, %s95
      %p101 = scmp.eq.s32.totalorder %s14, 0
      %p102 = por %p100, %p101
      %p103 = scmp.ne.s32.totalorder %s92, %s95
      %p104 = scmp.eq.s32.totalorder %s19, 1
      %p105 = por %p103, %p104
      %p106 = scmp.ne.s32.totalorder %s95, %s96
      %p107 = scmp.eq.s32.totalorder %s19, 0
      %p108 = por %p106, %p107
      %p109 = scmp.ne.s32.totalorder %s95, %s96
      %p110 = scmp.eq.s32.totalorder %s20, 1
      %p111 = por %p109, %p110
      %p113 = scmp.ne.s32.totalorder %s96, %s112
      %p114 = scmp.eq.s32.totalorder %s20, 0
      %p115 = por %p113, %p114
      %p116 = scmp.le.s32.totalorder 1, %s14
      %p117 = scmp.lt.s32.totalorder %s14, 3
      %p118 = pnand %p116, %p117
      %p119 = pneg %p118
      // Predicated region
      $region9: #{tpu_custom_call.1} parent=5 // pred_check
        _
      $region10: #{tpu_custom_call.1} parent=5 // pred_check_branch
        %121 = sbr.rel (%p118) target = $region12
      $region11: #{tpu_custom_call.1} parent=5 // pred_region
        %s122 = ssub.s32 %s14, 1
      $region12: #{tpu_custom_call.1} parent=5 // pred_fallthru
        _
      %p123 = scmp.lt.s32.totalorder %s14, 2
      // Predicated region
      $region13: #{tpu_custom_call.1} parent=5 // pred_check
        %p124 = pneg %p123
      $region14: #{tpu_custom_call.1} parent=5 // pred_check_branch
        %126 = sbr.rel (%p124) target = $region16
      $region15: #{tpu_custom_call.1} parent=5 // pred_region
        // Predicated region
        $region17: #{tpu_custom_call.1} parent=15 // pred_check
          %p127 = pneg %p46
        $region18: #{tpu_custom_call.1} parent=15 // pred_check_branch
          %129 = sbr.rel (%p127) target = $region20
        $region19: #{tpu_custom_call.1} parent=15 // pred_region
          %p130 = scmp.lt.s32.totalorder %s21, 1
          %s131 = scalar_select %p130, %s21, 1
          %s132 = smul.addr %s131, 8
          %s133 = scalar_lea.vmem %s0, %s132
        $region20: #{tpu_custom_call.1} parent=15 // pred_fallthru
          _
        // Predicated region
        $region21: #{tpu_custom_call.1} parent=15 // pred_check
          %p134 = pneg %p74
        $region22: #{tpu_custom_call.1} parent=15 // pred_check_branch
          %136 = sbr.rel (%p134) target = $region24
        $region23: #{tpu_custom_call.1} parent=15 // pred_region
          %s137 = sand.u32 %s64, 1
          %s138 = scalar_lea.sflag [#allocation3], %s137
          %s139 = sand.u32 %s64, 1
          %s140 = smul.addr %s139, 4096
          %s141 = scalar_lea.vmem [#allocation2], %s140
          %s142 = smul.u32 512, %s22
          %s144 = ssub.s32 65536, 65536
          %145 = vsyncadd %s138, %s144
          %s146 = smul.addr %s21, 512
          %s147 = sadd.s32 %s142, %s146
          %s148 = smul.addr %s147, 128
          %s149 = scalar_lea.hbm %s1, %s148
          %s151 = sshll.u32 %s141, 4
          %s152 = int_to_ptr.vmem [resolvable:$true] %s151
          %154 = dma.hbm_to_vmem [thread:$0]  %s149, 65536, %s152, %s138
        $region24: #{tpu_custom_call.1} parent=15 // pred_fallthru
          _
      $region16: #{tpu_custom_call.1} parent=5 // pred_fallthru
        _
      %p155 = scmp.le.s32.totalorder 1, %s14
      %p156 = scmp.lt.s32.totalorder %s14, 3
      %p157 = pnand %p155, %p156
      %p158 = pneg %p157
      // Predicated region
      $region25: #{tpu_custom_call.1} parent=5 // pred_check
        _
      $region26: #{tpu_custom_call.1} parent=5 // pred_check_branch
        %160 = sbr.rel (%p157) target = $region28
      $region27: #{tpu_custom_call.1} parent=5 // pred_region
        %s161 = ssub.s32 %s14, 1
        %s162 = sand.u32 %s67, 1
        %s163 = scalar_lea.sflag [#allocation3], %s162
        %s164 = sand.u32 %s67, 1
        %s165 = smul.addr %s164, 4096
        %s166 = scalar_lea.vmem [#allocation2], %s165
        // Predicated region
        $region29: #{tpu_custom_call.1} parent=27 // pred_check
          %p167 = pneg %p80
        $region30: #{tpu_custom_call.1} parent=27 // pred_check_branch
          %169 = sbr.rel (%p167) target = $region32
        $region31: #{tpu_custom_call.1} parent=27 // pred_region
          %170 = dma.done %s163, 65536
        $region32: #{tpu_custom_call.1} parent=27 // pred_fallthru
          _
        %p171 = scmp.lt.s32.totalorder %s23, 1
        %s172 = scalar_select %p171, %s23, 1
        %s173 = smul.addr %s172, 8
        %s174 = scalar_lea.vmem %s0, %s173
        %p175 = pneg %p52
        %p176 = pneg %p49
        %s177 = sand.u32 %s67, 1
        %s178 = scalar_lea.sflag [#allocation3], %s177
        %s179 = sand.u32 %s67, 1
        %s180 = smul.addr %s179, 4096
        %s181 = scalar_lea.vmem [#allocation2], %s180
        %p182 = pneg %p80
        %p183 = pneg %p77
        %p184 = pneg %p108
        %p185 = pneg %p105
        %s186 = sand.u32 %s95, 1
        %s187 = scalar_lea.sflag [#allocation4], %s186
        %s188 = sand.u32 %s95, 1
        %s189 = smul.addr %s188, 4096
        %s190 = scalar_lea.vmem [#allocation5], %s189
        %p191 = scmp.lt.s32.totalorder %s23, 1
        %s192 = scalar_select %p191, %s23, 1
        %s193 = smul.addr %s192, 8
        %s194 = scalar_lea.vmem %s0, %s193
        %s195 = smul.u32 512, %s24
        %s196 = smul.u32 512, %s24
        %s197 = smul.u32 %s24, 65536
        %v198 = vlaneseq
        %v199 = vand.u32 %v198, 127
        %v200 = vadd.s32 %v199, 128
        %v201 = vadd.s32 %v199, 256
        %v202 = vadd.s32 %v199, 384
        %v203 = vadd.s32 %v199, 512
        %v204 = vadd.s32 %v199, 640
        %v205 = vadd.s32 %v199, 768
        %v206 = vadd.s32 %v199, 896
        %v207 = vadd.s32 %v199, 1024
        %v208 = vadd.s32 %v199, 1152
        %v209 = vadd.s32 %v199, 1280
        %v210 = vadd.s32 %v199, 1408
        %v211 = vadd.s32 %v199, 1536
        %v212 = vadd.s32 %v199, 1664
        %v213 = vadd.s32 %v199, 1792
        %v214 = vadd.s32 %v199, 1920
        %v215 = vadd.s32 %v199, 2048
        %v216 = vadd.s32 %v199, 2176
        %v217 = vadd.s32 %v199, 2304
        %v218 = vadd.s32 %v199, 2432
        %v219 = vadd.s32 %v199, 2560
        %v220 = vadd.s32 %v199, 2688
        %v221 = vadd.s32 %v199, 2816
        %v222 = vadd.s32 %v199, 2944
        %v223 = vadd.s32 %v199, 3072
        %v224 = vadd.s32 %v199, 3200
        %v225 = vadd.s32 %v199, 3328
        %v226 = vadd.s32 %v199, 3456
        %v227 = vadd.s32 %v199, 3584
        %v228 = vadd.s32 %v199, 3712
        %v229 = vadd.s32 %v199, 3840
        %v230 = vadd.s32 %v199, 3968
        %v231 = vadd.s32 %v199, 4096
        %v232 = vadd.s32 %v199, 4224
        %v233 = vadd.s32 %v199, 4352
        %v234 = vadd.s32 %v199, 4480
        %v235 = vadd.s32 %v199, 4608
        %v236 = vadd.s32 %v199, 4736
        %v237 = vadd.s32 %v199, 4864
        %v238 = vadd.s32 %v199, 4992
        %v239 = vadd.s32 %v199, 5120
        %v240 = vadd.s32 %v199, 5248
        %v241 = vadd.s32 %v199, 5376
        %v242 = vadd.s32 %v199, 5504
        %v243 = vadd.s32 %v199, 5632
        %v244 = vadd.s32 %v199, 5760
        %v245 = vadd.s32 %v199, 5888
        %v246 = vadd.s32 %v199, 6016
        %v247 = vadd.s32 %v199, 6144
        %v248 = vadd.s32 %v199, 6272
        %v249 = vadd.s32 %v199, 6400
        %v250 = vadd.s32 %v199, 6528
        %v251 = vadd.s32 %v199, 6656
        %v252 = vadd.s32 %v199, 6784
        %v253 = vadd.s32 %v199, 6912
        %v254 = vadd.s32 %v199, 7040
        %v255 = vadd.s32 %v199, 7168
        %v256 = vadd.s32 %v199, 7296
        %v257 = vadd.s32 %v199, 7424
        %v258 = vadd.s32 %v199, 7552
        %v259 = vadd.s32 %v199, 7680
        %v260 = vadd.s32 %v199, 7808
        %v261 = vadd.s32 %v199, 7936
        %v262 = vadd.s32 %v199, 8064
        %v263 = vadd.s32 %v199, 8192
        %v264 = vadd.s32 %v199, 8320
        %v265 = vadd.s32 %v199, 8448
        %v266 = vadd.s32 %v199, 8576
        %v267 = vadd.s32 %v199, 8704
        %v268 = vadd.s32 %v199, 8832
        %v269 = vadd.s32 %v199, 8960
        %v270 = vadd.s32 %v199, 9088
        %v271 = vadd.s32 %v199, 9216
        %v272 = vadd.s32 %v199, 9344
        %v273 = vadd.s32 %v199, 9472
        %v274 = vadd.s32 %v199, 9600
        %v275 = vadd.s32 %v199, 9728
        %v276 = vadd.s32 %v199, 9856
        %v277 = vadd.s32 %v199, 9984
        %v278 = vadd.s32 %v199, 10112
        %v279 = vadd.s32 %v199, 10240
        %v280 = vadd.s32 %v199, 10368
        %v281 = vadd.s32 %v199, 10496
        %v282 = vadd.s32 %v199, 10624
        %v283 = vadd.s32 %v199, 10752
        %v284 = vadd.s32 %v199, 10880
        %v285 = vadd.s32 %v199, 11008
        %v286 = vadd.s32 %v199, 11136
        %v287 = vadd.s32 %v199, 11264
        %v288 = vadd.s32 %v199, 11392
        %v289 = vadd.s32 %v199, 11520
        %v290 = vadd.s32 %v199, 11648
        %v291 = vadd.s32 %v199, 11776
        %v292 = vadd.s32 %v199, 11904
        %v293 = vadd.s32 %v199, 12032
        %v294 = vadd.s32 %v199, 12160
        %v295 = vadd.s32 %v199, 12288
        %v296 = vadd.s32 %v199, 12416
        %v297 = vadd.s32 %v199, 12544
        %v298 = vadd.s32 %v199, 12672
        %v299 = vadd.s32 %v199, 12800
        %v300 = vadd.s32 %v199, 12928
        %v301 = vadd.s32 %v199, 13056
        %v302 = vadd.s32 %v199, 13184
        %v303 = vadd.s32 %v199, 13312
        %v304 = vadd.s32 %v199, 13440
        %v305 = vadd.s32 %v199, 13568
        %v306 = vadd.s32 %v199, 13696
        %v307 = vadd.s32 %v199, 13824
        %v308 = vadd.s32 %v199, 13952
        %v309 = vadd.s32 %v199, 14080
        %v310 = vadd.s32 %v199, 14208
        %v311 = vadd.s32 %v199, 14336
        %v312 = vadd.s32 %v199, 14464
        %v313 = vadd.s32 %v199, 14592
        %v314 = vadd.s32 %v199, 14720
        %v315 = vadd.s32 %v199, 14848
        %v316 = vadd.s32 %v199, 14976
        %v317 = vadd.s32 %v199, 15104
        %v318 = vadd.s32 %v199, 15232
        %v319 = vadd.s32 %v199, 15360
        %v320 = vadd.s32 %v199, 15488
        %v321 = vadd.s32 %v199, 15616
        %v322 = vadd.s32 %v199, 15744
        %v323 = vadd.s32 %v199, 15872
        %v324 = vadd.s32 %v199, 16000
        %v325 = vadd.s32 %v199, 16128
        %v326 = vadd.s32 %v199, 16256
        %v327 = vadd.s32 %v199, 16384
        %v328 = vadd.s32 %v199, 16512
        %v329 = vadd.s32 %v199, 16640
        %v330 = vadd.s32 %v199, 16768
        %v331 = vadd.s32 %v199, 16896
        %v332 = vadd.s32 %v199, 17024
        %v333 = vadd.s32 %v199, 17152
        %v334 = vadd.s32 %v199, 17280
        %v335 = vadd.s32 %v199, 17408
        %v336 = vadd.s32 %v199, 17536
        %v337 = vadd.s32 %v199, 17664
        %v338 = vadd.s32 %v199, 17792
        %v339 = vadd.s32 %v199, 17920
        %v340 = vadd.s32 %v199, 18048
        %v341 = vadd.s32 %v199, 18176
        %v342 = vadd.s32 %v199, 18304
        %v343 = vadd.s32 %v199, 18432
        %v344 = vadd.s32 %v199, 18560
        %v345 = vadd.s32 %v199, 18688
        %v346 = vadd.s32 %v199, 18816
        %v347 = vadd.s32 %v199, 18944
        %v348 = vadd.s32 %v199, 19072
        %v349 = vadd.s32 %v199, 19200
        %v350 = vadd.s32 %v199, 19328
        %v351 = vadd.s32 %v199, 19456
        %v352 = vadd.s32 %v199, 19584
        %v353 = vadd.s32 %v199, 19712
        %v354 = vadd.s32 %v199, 19840
        %v355 = vadd.s32 %v199, 19968
        %v356 = vadd.s32 %v199, 20096
        %v357 = vadd.s32 %v199, 20224
        %v358 = vadd.s32 %v199, 20352
        %v359 = vadd.s32 %v199, 20480
        %v360 = vadd.s32 %v199, 20608
        %v361 = vadd.s32 %v199, 20736
        %v362 = vadd.s32 %v199, 20864
        %v363 = vadd.s32 %v199, 20992
        %v364 = vadd.s32 %v199, 21120
        %v365 = vadd.s32 %v199, 21248
        %v366 = vadd.s32 %v199, 21376
        %v367 = vadd.s32 %v199, 21504
        %v368 = vadd.s32 %v199, 21632
        %v369 = vadd.s32 %v199, 21760
        %v370 = vadd.s32 %v199, 21888
        %v371 = vadd.s32 %v199, 22016
        %v372 = vadd.s32 %v199, 22144
        %v373 = vadd.s32 %v199, 22272
        %v374 = vadd.s32 %v199, 22400
        %v375 = vadd.s32 %v199, 22528
        %v376 = vadd.s32 %v199, 22656
        %v377 = vadd.s32 %v199, 22784
        %v378 = vadd.s32 %v199, 22912
        %v379 = vadd.s32 %v199, 23040
        %v380 = vadd.s32 %v199, 23168
        %v381 = vadd.s32 %v199, 23296
        %v382 = vadd.s32 %v199, 23424
        %v383 = vadd.s32 %v199, 23552
        %v384 = vadd.s32 %v199, 23680
        %v385 = vadd.s32 %v199, 23808
        %v386 = vadd.s32 %v199, 23936
        %v387 = vadd.s32 %v199, 24064
        %v388 = vadd.s32 %v199, 24192
        %v389 = vadd.s32 %v199, 24320
        %v390 = vadd.s32 %v199, 24448
        %v391 = vadd.s32 %v199, 24576
        %v392 = vadd.s32 %v199, 24704
        %v393 = vadd.s32 %v199, 24832
        %v394 = vadd.s32 %v199, 24960
        %v395 = vadd.s32 %v199, 25088
        %v396 = vadd.s32 %v199, 25216
        %v397 = vadd.s32 %v199, 25344
        %v398 = vadd.s32 %v199, 25472
        %v399 = vadd.s32 %v199, 25600
        %v400 = vadd.s32 %v199, 25728
        %v401 = vadd.s32 %v199, 25856
        %v402 = vadd.s32 %v199, 25984
        %v403 = vadd.s32 %v199, 26112
        %v404 = vadd.s32 %v199, 26240
        %v405 = vadd.s32 %v199, 26368
        %v406 = vadd.s32 %v199, 26496
        %v407 = vadd.s32 %v199, 26624
        %v408 = vadd.s32 %v199, 26752
        %v409 = vadd.s32 %v199, 26880
        %v410 = vadd.s32 %v199, 27008
        %v411 = vadd.s32 %v199, 27136
        %v412 = vadd.s32 %v199, 27264
        %v413 = vadd.s32 %v199, 27392
        %v414 = vadd.s32 %v199, 27520
        %v415 = vadd.s32 %v199, 27648
        %v416 = vadd.s32 %v199, 27776
        %v417 = vadd.s32 %v199, 27904
        %v418 = vadd.s32 %v199, 28032
        %v419 = vadd.s32 %v199, 28160
        %v420 = vadd.s32 %v199, 28288
        %v421 = vadd.s32 %v199, 28416
        %v422 = vadd.s32 %v199, 28544
        %v423 = vadd.s32 %v199, 28672
        %v424 = vadd.s32 %v199, 28800
        %v425 = vadd.s32 %v199, 28928
        %v426 = vadd.s32 %v199, 29056
        %v427 = vadd.s32 %v199, 29184
        %v428 = vadd.s32 %v199, 29312
        %v429 = vadd.s32 %v199, 29440
        %v430 = vadd.s32 %v199, 29568
        %v431 = vadd.s32 %v199, 29696
        %v432 = vadd.s32 %v199, 29824
        %v433 = vadd.s32 %v199, 29952
        %v434 = vadd.s32 %v199, 30080
        %v435 = vadd.s32 %v199, 30208
        %v436 = vadd.s32 %v199, 30336
        %v437 = vadd.s32 %v199, 30464
        %v438 = vadd.s32 %v199, 30592
        %v439 = vadd.s32 %v199, 30720
        %v440 = vadd.s32 %v199, 30848
        %v441 = vadd.s32 %v199, 30976
        %v442 = vadd.s32 %v199, 31104
        %v443 = vadd.s32 %v199, 31232
        %v444 = vadd.s32 %v199, 31360
        %v445 = vadd.s32 %v199, 31488
        %v446 = vadd.s32 %v199, 31616
        %v447 = vadd.s32 %v199, 31744
        %v448 = vadd.s32 %v199, 31872
        %v449 = vadd.s32 %v199, 32000
        %v450 = vadd.s32 %v199, 32128
        %v451 = vadd.s32 %v199, 32256
        %v452 = vadd.s32 %v199, 32384
        %v453 = vadd.s32 %v199, 32512
        %v454 = vadd.s32 %v199, 32640
        %v455 = vadd.s32 %v199, 32768
        %v456 = vadd.s32 %v199, 32896
        %v457 = vadd.s32 %v199, 33024
        %v458 = vadd.s32 %v199, 33152
        %v459 = vadd.s32 %v199, 33280
        %v460 = vadd.s32 %v199, 33408
        %v461 = vadd.s32 %v199, 33536
        %v462 = vadd.s32 %v199, 33664
        %v463 = vadd.s32 %v199, 33792
        %v464 = vadd.s32 %v199, 33920
        %v465 = vadd.s32 %v199, 34048
        %v466 = vadd.s32 %v199, 34176
        %v467 = vadd.s32 %v199, 34304
        %v468 = vadd.s32 %v199, 34432
        %v469 = vadd.s32 %v199, 34560
        %v470 = vadd.s32 %v199, 34688
        %v471 = vadd.s32 %v199, 34816
        %v472 = vadd.s32 %v199, 34944
        %v473 = vadd.s32 %v199, 35072
        %v474 = vadd.s32 %v199, 35200
        %v475 = vadd.s32 %v199, 35328
        %v476 = vadd.s32 %v199, 35456
        %v477 = vadd.s32 %v199, 35584
        %v478 = vadd.s32 %v199, 35712
        %v479 = vadd.s32 %v199, 35840
        %v480 = vadd.s32 %v199, 35968
        %v481 = vadd.s32 %v199, 36096
        %v482 = vadd.s32 %v199, 36224
        %v483 = vadd.s32 %v199, 36352
        %v484 = vadd.s32 %v199, 36480
        %v485 = vadd.s32 %v199, 36608
        %v486 = vadd.s32 %v199, 36736
        %v487 = vadd.s32 %v199, 36864
        %v488 = vadd.s32 %v199, 36992
        %v489 = vadd.s32 %v199, 37120
        %v490 = vadd.s32 %v199, 37248
        %v491 = vadd.s32 %v199, 37376
        %v492 = vadd.s32 %v199, 37504
        %v493 = vadd.s32 %v199, 37632
        %v494 = vadd.s32 %v199, 37760
        %v495 = vadd.s32 %v199, 37888
        %v496 = vadd.s32 %v199, 38016
        %v497 = vadd.s32 %v199, 38144
        %v498 = vadd.s32 %v199, 38272
        %v499 = vadd.s32 %v199, 38400
        %v500 = vadd.s32 %v199, 38528
        %v501 = vadd.s32 %v199, 38656
        %v502 = vadd.s32 %v199, 38784
        %v503 = vadd.s32 %v199, 38912
        %v504 = vadd.s32 %v199, 39040
        %v505 = vadd.s32 %v199, 39168
        %v506 = vadd.s32 %v199, 39296
        %v507 = vadd.s32 %v199, 39424
        %v508 = vadd.s32 %v199, 39552
        %v509 = vadd.s32 %v199, 39680
        %v510 = vadd.s32 %v199, 39808
        %v511 = vadd.s32 %v199, 39936
        %v512 = vadd.s32 %v199, 40064
        %v513 = vadd.s32 %v199, 40192
        %v514 = vadd.s32 %v199, 40320
        %v515 = vadd.s32 %v199, 40448
        %v516 = vadd.s32 %v199, 40576
        %v517 = vadd.s32 %v199, 40704
        %v518 = vadd.s32 %v199, 40832
        %v519 = vadd.s32 %v199, 40960
        %v520 = vadd.s32 %v199, 41088
        %v521 = vadd.s32 %v199, 41216
        %v522 = vadd.s32 %v199, 41344
        %v523 = vadd.s32 %v199, 41472
        %v524 = vadd.s32 %v199, 41600
        %v525 = vadd.s32 %v199, 41728
        %v526 = vadd.s32 %v199, 41856
        %v527 = vadd.s32 %v199, 41984
        %v528 = vadd.s32 %v199, 42112
        %v529 = vadd.s32 %v199, 42240
        %v530 = vadd.s32 %v199, 42368
        %v531 = vadd.s32 %v199, 42496
        %v532 = vadd.s32 %v199, 42624
        %v533 = vadd.s32 %v199, 42752
        %v534 = vadd.s32 %v199, 42880
        %v535 = vadd.s32 %v199, 43008
        %v536 = vadd.s32 %v199, 43136
        %v537 = vadd.s32 %v199, 43264
        %v538 = vadd.s32 %v199, 43392
        %v539 = vadd.s32 %v199, 43520
        %v540 = vadd.s32 %v199, 43648
        %v541 = vadd.s32 %v199, 43776
        %v542 = vadd.s32 %v199, 43904
        %v543 = vadd.s32 %v199, 44032
        %v544 = vadd.s32 %v199, 44160
        %v545 = vadd.s32 %v199, 44288
        %v546 = vadd.s32 %v199, 44416
        %v547 = vadd.s32 %v199, 44544
        %v548 = vadd.s32 %v199, 44672
        %v549 = vadd.s32 %v199, 44800
        %v550 = vadd.s32 %v199, 44928
        %v551 = vadd.s32 %v199, 45056
        %v552 = vadd.s32 %v199, 45184
        %v553 = vadd.s32 %v199, 45312
        %v554 = vadd.s32 %v199, 45440
        %v555 = vadd.s32 %v199, 45568
        %v556 = vadd.s32 %v199, 45696
        %v557 = vadd.s32 %v199, 45824
        %v558 = vadd.s32 %v199, 45952
        %v559 = vadd.s32 %v199, 46080
        %v560 = vadd.s32 %v199, 46208
        %v561 = vadd.s32 %v199, 46336
        %v562 = vadd.s32 %v199, 46464
        %v563 = vadd.s32 %v199, 46592
        %v564 = vadd.s32 %v199, 46720
        %v565 = vadd.s32 %v199, 46848
        %v566 = vadd.s32 %v199, 46976
        %v567 = vadd.s32 %v199, 47104
        %v568 = vadd.s32 %v199, 47232
        %v569 = vadd.s32 %v199, 47360
        %v570 = vadd.s32 %v199, 47488
        %v571 = vadd.s32 %v199, 47616
        %v572 = vadd.s32 %v199, 47744
        %v573 = vadd.s32 %v199, 47872
        %v574 = vadd.s32 %v199, 48000
        %v575 = vadd.s32 %v199, 48128
        %v576 = vadd.s32 %v199, 48256
        %v577 = vadd.s32 %v199, 48384
        %v578 = vadd.s32 %v199, 48512
        %v579 = vadd.s32 %v199, 48640
        %v580 = vadd.s32 %v199, 48768
        %v581 = vadd.s32 %v199, 48896
        %v582 = vadd.s32 %v199, 49024
        %v583 = vadd.s32 %v199, 49152
        %v584 = vadd.s32 %v199, 49280
        %v585 = vadd.s32 %v199, 49408
        %v586 = vadd.s32 %v199, 49536
        %v587 = vadd.s32 %v199, 49664
        %v588 = vadd.s32 %v199, 49792
        %v589 = vadd.s32 %v199, 49920
        %v590 = vadd.s32 %v199, 50048
        %v591 = vadd.s32 %v199, 50176
        %v592 = vadd.s32 %v199, 50304
        %v593 = vadd.s32 %v199, 50432
        %v594 = vadd.s32 %v199, 50560
        %v595 = vadd.s32 %v199, 50688
        %v596 = vadd.s32 %v199, 50816
        %v597 = vadd.s32 %v199, 50944
        %v598 = vadd.s32 %v199, 51072
        %v599 = vadd.s32 %v199, 51200
        %v600 = vadd.s32 %v199, 51328
        %v601 = vadd.s32 %v199, 51456
        %v602 = vadd.s32 %v199, 51584
        %v603 = vadd.s32 %v199, 51712
        %v604 = vadd.s32 %v199, 51840
        %v605 = vadd.s32 %v199, 51968
        %v606 = vadd.s32 %v199, 52096
        %v607 = vadd.s32 %v199, 52224
        %v608 = vadd.s32 %v199, 52352
        %v609 = vadd.s32 %v199, 52480
        %v610 = vadd.s32 %v199, 52608
        %v611 = vadd.s32 %v199, 52736
        %v612 = vadd.s32 %v199, 52864
        %v613 = vadd.s32 %v199, 52992
        %v614 = vadd.s32 %v199, 53120
        %v615 = vadd.s32 %v199, 53248
        %v616 = vadd.s32 %v199, 53376
        %v617 = vadd.s32 %v199, 53504
        %v618 = vadd.s32 %v199, 53632
        %v619 = vadd.s32 %v199, 53760
        %v620 = vadd.s32 %v199, 53888
        %v621 = vadd.s32 %v199, 54016
        %v622 = vadd.s32 %v199, 54144
        %v623 = vadd.s32 %v199, 54272
        %v624 = vadd.s32 %v199, 54400
        %v625 = vadd.s32 %v199, 54528
        %v626 = vadd.s32 %v199, 54656
        %v627 = vadd.s32 %v199, 54784
        %v628 = vadd.s32 %v199, 54912
        %v629 = vadd.s32 %v199, 55040
        %v630 = vadd.s32 %v199, 55168
        %v631 = vadd.s32 %v199, 55296
        %v632 = vadd.s32 %v199, 55424
        %v633 = vadd.s32 %v199, 55552
        %v634 = vadd.s32 %v199, 55680
        %v635 = vadd.s32 %v199, 55808
        %v636 = vadd.s32 %v199, 55936
        %v637 = vadd.s32 %v199, 56064
        %v638 = vadd.s32 %v199, 56192
        %v639 = vadd.s32 %v199, 56320
        %v640 = vadd.s32 %v199, 56448
        %v641 = vadd.s32 %v199, 56576
        %v642 = vadd.s32 %v199, 56704
        %v643 = vadd.s32 %v199, 56832
        %v644 = vadd.s32 %v199, 56960
        %v645 = vadd.s32 %v199, 57088
        %v646 = vadd.s32 %v199, 57216
        %v647 = vadd.s32 %v199, 57344
        %v648 = vadd.s32 %v199, 57472
        %v649 = vadd.s32 %v199, 57600
        %v650 = vadd.s32 %v199, 57728
        %v651 = vadd.s32 %v199, 57856
        %v652 = vadd.s32 %v199, 57984
        %v653 = vadd.s32 %v199, 58112
        %v654 = vadd.s32 %v199, 58240
        %v655 = vadd.s32 %v199, 58368
        %v656 = vadd.s32 %v199, 58496
        %v657 = vadd.s32 %v199, 58624
        %v658 = vadd.s32 %v199, 58752
        %v659 = vadd.s32 %v199, 58880
        %v660 = vadd.s32 %v199, 59008
        %v661 = vadd.s32 %v199, 59136
        %v662 = vadd.s32 %v199, 59264
        %v663 = vadd.s32 %v199, 59392
        %v664 = vadd.s32 %v199, 59520
        %v665 = vadd.s32 %v199, 59648
        %v666 = vadd.s32 %v199, 59776
        %v667 = vadd.s32 %v199, 59904
        %v668 = vadd.s32 %v199, 60032
        %v669 = vadd.s32 %v199, 60160
        %v670 = vadd.s32 %v199, 60288
        %v671 = vadd.s32 %v199, 60416
        %v672 = vadd.s32 %v199, 60544
        %v673 = vadd.s32 %v199, 60672
        %v674 = vadd.s32 %v199, 60800
        %v675 = vadd.s32 %v199, 60928
        %v676 = vadd.s32 %v199, 61056
        %v677 = vadd.s32 %v199, 61184
        %v678 = vadd.s32 %v199, 61312
        %v679 = vadd.s32 %v199, 61440
        %v680 = vadd.s32 %v199, 61568
        %v681 = vadd.s32 %v199, 61696
        %v682 = vadd.s32 %v199, 61824
        %v683 = vadd.s32 %v199, 61952
        %v684 = vadd.s32 %v199, 62080
        %v685 = vadd.s32 %v199, 62208
        %v686 = vadd.s32 %v199, 62336
        %v687 = vadd.s32 %v199, 62464
        %v688 = vadd.s32 %v199, 62592
        %v689 = vadd.s32 %v199, 62720
        %v690 = vadd.s32 %v199, 62848
        %v691 = vadd.s32 %v199, 62976
        %v692 = vadd.s32 %v199, 63104
        %v693 = vadd.s32 %v199, 63232
        %v694 = vadd.s32 %v199, 63360
        %v695 = vadd.s32 %v199, 63488
        %v696 = vadd.s32 %v199, 63616
        %v697 = vadd.s32 %v199, 63744
        %v698 = vadd.s32 %v199, 63872
        %v699 = vadd.s32 %v199, 64000
        %v700 = vadd.s32 %v199, 64128
        %v701 = vadd.s32 %v199, 64256
        %v702 = vadd.s32 %v199, 64384
        %v703 = vadd.s32 %v199, 64512
        %v704 = vadd.s32 %v199, 64640
        %v705 = vadd.s32 %v199, 64768
        %v706 = vadd.s32 %v199, 64896
        %v707 = vadd.s32 %v199, 65024
        %v708 = vadd.s32 %v199, 65152
        %v709 = vadd.s32 %v199, 65280
        %v710 = vadd.s32 %v199, 65408
        %v711 = vstv %s197
        %v712 = vadd.s32 %v711, %v199
        %v713 = vadd.s32 %v711, %v200
        %v714 = vadd.s32 %v711, %v201
        %v715 = vadd.s32 %v711, %v202
        %v716 = vadd.s32 %v711, %v203
        %v717 = vadd.s32 %v711, %v204
        %v718 = vadd.s32 %v711, %v205
        %v719 = vadd.s32 %v711, %v206
        %v720 = vadd.s32 %v711, %v207
        %v721 = vadd.s32 %v711, %v208
        %v722 = vadd.s32 %v711, %v209
        %v723 = vadd.s32 %v711, %v210
        %v724 = vadd.s32 %v711, %v211
        %v725 = vadd.s32 %v711, %v212
        %v726 = vadd.s32 %v711, %v213
        %v727 = vadd.s32 %v711, %v214
        %v728 = vadd.s32 %v711, %v215
        %v729 = vadd.s32 %v711, %v216
        %v730 = vadd.s32 %v711, %v217
        %v731 = vadd.s32 %v711, %v218
        %v732 = vadd.s32 %v711, %v219
        %v733 = vadd.s32 %v711, %v220
        %v734 = vadd.s32 %v711, %v221
        %v735 = vadd.s32 %v711, %v222
        %v736 = vadd.s32 %v711, %v223
        %v737 = vadd.s32 %v711, %v224
        %v738 = vadd.s32 %v711, %v225
        %v739 = vadd.s32 %v711, %v226
        %v740 = vadd.s32 %v711, %v227
        %v741 = vadd.s32 %v711, %v228
        %v742 = vadd.s32 %v711, %v229
        %v743 = vadd.s32 %v711, %v230
        %v744 = vadd.s32 %v711, %v231
        %v745 = vadd.s32 %v711, %v232
        %v746 = vadd.s32 %v711, %v233
        %v747 = vadd.s32 %v711, %v234
        %v748 = vadd.s32 %v711, %v235
        %v749 = vadd.s32 %v711, %v236
        %v750 = vadd.s32 %v711, %v237
        %v751 = vadd.s32 %v711, %v238
        %v752 = vadd.s32 %v711, %v239
        %v753 = vadd.s32 %v711, %v240
        %v754 = vadd.s32 %v711, %v241
        %v755 = vadd.s32 %v711, %v242
        %v756 = vadd.s32 %v711, %v243
        %v757 = vadd.s32 %v711, %v244
        %v758 = vadd.s32 %v711, %v245
        %v759 = vadd.s32 %v711, %v246
        %v760 = vadd.s32 %v711, %v247
        %v761 = vadd.s32 %v711, %v248
        %v762 = vadd.s32 %v711, %v249
        %v763 = vadd.s32 %v711, %v250
        %v764 = vadd.s32 %v711, %v251
        %v765 = vadd.s32 %v711, %v252
        %v766 = vadd.s32 %v711, %v253
        %v767 = vadd.s32 %v711, %v254
        %v768 = vadd.s32 %v711, %v255
        %v769 = vadd.s32 %v711, %v256
        %v770 = vadd.s32 %v711, %v257
        %v771 = vadd.s32 %v711, %v258
        %v772 = vadd.s32 %v711, %v259
        %v773 = vadd.s32 %v711, %v260
        %v774 = vadd.s32 %v711, %v261
        %v775 = vadd.s32 %v711, %v262
        %v776 = vadd.s32 %v711, %v263
        %v777 = vadd.s32 %v711, %v264
        %v778 = vadd.s32 %v711, %v265
        %v779 = vadd.s32 %v711, %v266
        %v780 = vadd.s32 %v711, %v267
        %v781 = vadd.s32 %v711, %v268
        %v782 = vadd.s32 %v711, %v269
        %v783 = vadd.s32 %v711, %v270
        %v784 = vadd.s32 %v711, %v271
        %v785 = vadd.s32 %v711, %v272
        %v786 = vadd.s32 %v711, %v273
        %v787 = vadd.s32 %v711, %v274
        %v788 = vadd.s32 %v711, %v275
        %v789 = vadd.s32 %v711, %v276
        %v790 = vadd.s32 %v711, %v277
        %v791 = vadd.s32 %v711, %v278
        %v792 = vadd.s32 %v711, %v279
        %v793 = vadd.s32 %v711, %v280
        %v794 = vadd.s32 %v711, %v281
        %v795 = vadd.s32 %v711, %v282
        %v796 = vadd.s32 %v711, %v283
        %v797 = vadd.s32 %v711, %v284
        %v798 = vadd.s32 %v711, %v285
        %v799 = vadd.s32 %v711, %v286
        %v800 = vadd.s32 %v711, %v287
        %v801 = vadd.s32 %v711, %v288
        %v802 = vadd.s32 %v711, %v289
        %v803 = vadd.s32 %v711, %v290
        %v804 = vadd.s32 %v711, %v291
        %v805 = vadd.s32 %v711, %v292
        %v806 = vadd.s32 %v711, %v293
        %v807 = vadd.s32 %v711, %v294
        %v808 = vadd.s32 %v711, %v295
        %v809 = vadd.s32 %v711, %v296
        %v810 = vadd.s32 %v711, %v297
        %v811 = vadd.s32 %v711, %v298
        %v812 = vadd.s32 %v711, %v299
        %v813 = vadd.s32 %v711, %v300
        %v814 = vadd.s32 %v711, %v301
        %v815 = vadd.s32 %v711, %v302
        %v816 = vadd.s32 %v711, %v303
        %v817 = vadd.s32 %v711, %v304
        %v818 = vadd.s32 %v711, %v305
        %v819 = vadd.s32 %v711, %v306
        %v820 = vadd.s32 %v711, %v307
        %v821 = vadd.s32 %v711, %v308
        %v822 = vadd.s32 %v711, %v309
        %v823 = vadd.s32 %v711, %v310
        %v824 = vadd.s32 %v711, %v311
        %v825 = vadd.s32 %v711, %v312
        %v826 = vadd.s32 %v711, %v313
        %v827 = vadd.s32 %v711, %v314
        %v828 = vadd.s32 %v711, %v315
        %v829 = vadd.s32 %v711, %v316
        %v830 = vadd.s32 %v711, %v317
        %v831 = vadd.s32 %v711, %v318
        %v832 = vadd.s32 %v711, %v319
        %v833 = vadd.s32 %v711, %v320
        %v834 = vadd.s32 %v711, %v321
        %v835 = vadd.s32 %v711, %v322
        %v836 = vadd.s32 %v711, %v323
        %v837 = vadd.s32 %v711, %v324
        %v838 = vadd.s32 %v711, %v325
        %v839 = vadd.s32 %v711, %v326
        %v840 = vadd.s32 %v711, %v327
        %v841 = vadd.s32 %v711, %v328
        %v842 = vadd.s32 %v711, %v329
        %v843 = vadd.s32 %v711, %v330
        %v844 = vadd.s32 %v711, %v331
        %v845 = vadd.s32 %v711, %v332
        %v846 = vadd.s32 %v711, %v333
        %v847 = vadd.s32 %v711, %v334
        %v848 = vadd.s32 %v711, %v335
        %v849 = vadd.s32 %v711, %v336
        %v850 = vadd.s32 %v711, %v337
        %v851 = vadd.s32 %v711, %v338
        %v852 = vadd.s32 %v711, %v339
        %v853 = vadd.s32 %v711, %v340
        %v854 = vadd.s32 %v711, %v341
        %v855 = vadd.s32 %v711, %v342
        %v856 = vadd.s32 %v711, %v343
        %v857 = vadd.s32 %v711, %v344
        %v858 = vadd.s32 %v711, %v345
        %v859 = vadd.s32 %v711, %v346
        %v860 = vadd.s32 %v711, %v347
        %v861 = vadd.s32 %v711, %v348
        %v862 = vadd.s32 %v711, %v349
        %v863 = vadd.s32 %v711, %v350
        %v864 = vadd.s32 %v711, %v351
        %v865 = vadd.s32 %v711, %v352
        %v866 = vadd.s32 %v711, %v353
        %v867 = vadd.s32 %v711, %v354
        %v868 = vadd.s32 %v711, %v355
        %v869 = vadd.s32 %v711, %v356
        %v870 = vadd.s32 %v711, %v357
        %v871 = vadd.s32 %v711, %v358
        %v872 = vadd.s32 %v711, %v359
        %v873 = vadd.s32 %v711, %v360
        %v874 = vadd.s32 %v711, %v361
        %v875 = vadd.s32 %v711, %v362
        %v876 = vadd.s32 %v711, %v363
        %v877 = vadd.s32 %v711, %v364
        %v878 = vadd.s32 %v711, %v365
        %v879 = vadd.s32 %v711, %v366
        %v880 = vadd.s32 %v711, %v367
        %v881 = vadd.s32 %v711, %v368
        %v882 = vadd.s32 %v711, %v369
        %v883 = vadd.s32 %v711, %v370
        %v884 = vadd.s32 %v711, %v371
        %v885 = vadd.s32 %v711, %v372
        %v886 = vadd.s32 %v711, %v373
        %v887 = vadd.s32 %v711, %v374
        %v888 = vadd.s32 %v711, %v375
        %v889 = vadd.s32 %v711, %v376
        %v890 = vadd.s32 %v711, %v377
        %v891 = vadd.s32 %v711, %v378
        %v892 = vadd.s32 %v711, %v379
        %v893 = vadd.s32 %v711, %v380
        %v894 = vadd.s32 %v711, %v381
        %v895 = vadd.s32 %v711, %v382
        %v896 = vadd.s32 %v711, %v383
        %v897 = vadd.s32 %v711, %v384
        %v898 = vadd.s32 %v711, %v385
        %v899 = vadd.s32 %v711, %v386
        %v900 = vadd.s32 %v711, %v387
        %v901 = vadd.s32 %v711, %v388
        %v902 = vadd.s32 %v711, %v389
        %v903 = vadd.s32 %v711, %v390
        %v904 = vadd.s32 %v711, %v391
        %v905 = vadd.s32 %v711, %v392
        %v906 = vadd.s32 %v711, %v393
        %v907 = vadd.s32 %v711, %v394
        %v908 = vadd.s32 %v711, %v395
        %v909 = vadd.s32 %v711, %v396
        %v910 = vadd.s32 %v711, %v397
        %v911 = vadd.s32 %v711, %v398
        %v912 = vadd.s32 %v711, %v399
        %v913 = vadd.s32 %v711, %v400
        %v914 = vadd.s32 %v711, %v401
        %v915 = vadd.s32 %v711, %v402
        %v916 = vadd.s32 %v711, %v403
        %v917 = vadd.s32 %v711, %v404
        %v918 = vadd.s32 %v711, %v405
        %v919 = vadd.s32 %v711, %v406
        %v920 = vadd.s32 %v711, %v407
        %v921 = vadd.s32 %v711, %v408
        %v922 = vadd.s32 %v711, %v409
        %v923 = vadd.s32 %v711, %v410
        %v924 = vadd.s32 %v711, %v411
        %v925 = vadd.s32 %v711, %v412
        %v926 = vadd.s32 %v711, %v413
        %v927 = vadd.s32 %v711, %v414
        %v928 = vadd.s32 %v711, %v415
        %v929 = vadd.s32 %v711, %v416
        %v930 = vadd.s32 %v711, %v417
        %v931 = vadd.s32 %v711, %v418
        %v932 = vadd.s32 %v711, %v419
        %v933 = vadd.s32 %v711, %v420
        %v934 = vadd.s32 %v711, %v421
        %v935 = vadd.s32 %v711, %v422
        %v936 = vadd.s32 %v711, %v423
        %v937 = vadd.s32 %v711, %v424
        %v938 = vadd.s32 %v711, %v425
        %v939 = vadd.s32 %v711, %v426
        %v940 = vadd.s32 %v711, %v427
        %v941 = vadd.s32 %v711, %v428
        %v942 = vadd.s32 %v711, %v429
        %v943 = vadd.s32 %v711, %v430
        %v944 = vadd.s32 %v711, %v431
        %v945 = vadd.s32 %v711, %v432
        %v946 = vadd.s32 %v711, %v433
        %v947 = vadd.s32 %v711, %v434
        %v948 = vadd.s32 %v711, %v435
        %v949 = vadd.s32 %v711, %v436
        %v950 = vadd.s32 %v711, %v437
        %v951 = vadd.s32 %v711, %v438
        %v952 = vadd.s32 %v711, %v439
        %v953 = vadd.s32 %v711, %v440
        %v954 = vadd.s32 %v711, %v441
        %v955 = vadd.s32 %v711, %v442
        %v956 = vadd.s32 %v711, %v443
        %v957 = vadd.s32 %v711, %v444
        %v958 = vadd.s32 %v711, %v445
        %v959 = vadd.s32 %v711, %v446
        %v960 = vadd.s32 %v711, %v447
        %v961 = vadd.s32 %v711, %v448
        %v962 = vadd.s32 %v711, %v449
        %v963 = vadd.s32 %v711, %v450
        %v964 = vadd.s32 %v711, %v451
        %v965 = vadd.s32 %v711, %v452
        %v966 = vadd.s32 %v711, %v453
        %v967 = vadd.s32 %v711, %v454
        %v968 = vadd.s32 %v711, %v455
        %v969 = vadd.s32 %v711, %v456
        %v970 = vadd.s32 %v711, %v457
        %v971 = vadd.s32 %v711, %v458
        %v972 = vadd.s32 %v711, %v459
        %v973 = vadd.s32 %v711, %v460
        %v974 = vadd.s32 %v711, %v461
        %v975 = vadd.s32 %v711, %v462
        %v976 = vadd.s32 %v711, %v463
        %v977 = vadd.s32 %v711, %v464
        %v978 = vadd.s32 %v711, %v465
        %v979 = vadd.s32 %v711, %v466
        %v980 = vadd.s32 %v711, %v467
        %v981 = vadd.s32 %v711, %v468
        %v982 = vadd.s32 %v711, %v469
        %v983 = vadd.s32 %v711, %v470
        %v984 = vadd.s32 %v711, %v471
        %v985 = vadd.s32 %v711, %v472
        %v986 = vadd.s32 %v711, %v473
        %v987 = vadd.s32 %v711, %v474
        %v988 = vadd.s32 %v711, %v475
        %v989 = vadd.s32 %v711, %v476
        %v990 = vadd.s32 %v711, %v477
        %v991 = vadd.s32 %v711, %v478
        %v992 = vadd.s32 %v711, %v479
        %v993 = vadd.s32 %v711, %v480
        %v994 = vadd.s32 %v711, %v481
        %v995 = vadd.s32 %v711, %v482
        %v996 = vadd.s32 %v711, %v483
        %v997 = vadd.s32 %v711, %v484
        %v998 = vadd.s32 %v711, %v485
        %v999 = vadd.s32 %v711, %v486
        %v1000 = vadd.s32 %v711, %v487
        %v1001 = vadd.s32 %v711, %v488
        %v1002 = vadd.s32 %v711, %v489
        %v1003 = vadd.s32 %v711, %v490
        %v1004 = vadd.s32 %v711, %v491
        %v1005 = vadd.s32 %v711, %v492
        %v1006 = vadd.s32 %v711, %v493
        %v1007 = vadd.s32 %v711, %v494
        %v1008 = vadd.s32 %v711, %v495
        %v1009 = vadd.s32 %v711, %v496
        %v1010 = vadd.s32 %v711, %v497
        %v1011 = vadd.s32 %v711, %v498
        %v1012 = vadd.s32 %v711, %v499
        %v1013 = vadd.s32 %v711, %v500
        %v1014 = vadd.s32 %v711, %v501
        %v1015 = vadd.s32 %v711, %v502
        %v1016 = vadd.s32 %v711, %v503
        %v1017 = vadd.s32 %v711, %v504
        %v1018 = vadd.s32 %v711, %v505
        %v1019 = vadd.s32 %v711, %v506
        %v1020 = vadd.s32 %v711, %v507
        %v1021 = vadd.s32 %v711, %v508
        %v1022 = vadd.s32 %v711, %v509
        %v1023 = vadd.s32 %v711, %v510
        %v1024 = vadd.s32 %v711, %v511
        %v1025 = vadd.s32 %v711, %v512
        %v1026 = vadd.s32 %v711, %v513
        %v1027 = vadd.s32 %v711, %v514
        %v1028 = vadd.s32 %v711, %v515
        %v1029 = vadd.s32 %v711, %v516
        %v1030 = vadd.s32 %v711, %v517
        %v1031 = vadd.s32 %v711, %v518
        %v1032 = vadd.s32 %v711, %v519
        %v1033 = vadd.s32 %v711, %v520
        %v1034 = vadd.s32 %v711, %v521
        %v1035 = vadd.s32 %v711, %v522
        %v1036 = vadd.s32 %v711, %v523
        %v1037 = vadd.s32 %v711, %v524
        %v1038 = vadd.s32 %v711, %v525
        %v1039 = vadd.s32 %v711, %v526
        %v1040 = vadd.s32 %v711, %v527
        %v1041 = vadd.s32 %v711, %v528
        %v1042 = vadd.s32 %v711, %v529
        %v1043 = vadd.s32 %v711, %v530
        %v1044 = vadd.s32 %v711, %v531
        %v1045 = vadd.s32 %v711, %v532
        %v1046 = vadd.s32 %v711, %v533
        %v1047 = vadd.s32 %v711, %v534
        %v1048 = vadd.s32 %v711, %v535
        %v1049 = vadd.s32 %v711, %v536
        %v1050 = vadd.s32 %v711, %v537
        %v1051 = vadd.s32 %v711, %v538
        %v1052 = vadd.s32 %v711, %v539
        %v1053 = vadd.s32 %v711, %v540
        %v1054 = vadd.s32 %v711, %v541
        %v1055 = vadd.s32 %v711, %v542
        %v1056 = vadd.s32 %v711, %v543
        %v1057 = vadd.s32 %v711, %v544
        %v1058 = vadd.s32 %v711, %v545
        %v1059 = vadd.s32 %v711, %v546
        %v1060 = vadd.s32 %v711, %v547
        %v1061 = vadd.s32 %v711, %v548
        %v1062 = vadd.s32 %v711, %v549
        %v1063 = vadd.s32 %v711, %v550
        %v1064 = vadd.s32 %v711, %v551
        %v1065 = vadd.s32 %v711, %v552
        %v1066 = vadd.s32 %v711, %v553
        %v1067 = vadd.s32 %v711, %v554
        %v1068 = vadd.s32 %v711, %v555
        %v1069 = vadd.s32 %v711, %v556
        %v1070 = vadd.s32 %v711, %v557
        %v1071 = vadd.s32 %v711, %v558
        %v1072 = vadd.s32 %v711, %v559
        %v1073 = vadd.s32 %v711, %v560
        %v1074 = vadd.s32 %v711, %v561
        %v1075 = vadd.s32 %v711, %v562
        %v1076 = vadd.s32 %v711, %v563
        %v1077 = vadd.s32 %v711, %v564
        %v1078 = vadd.s32 %v711, %v565
        %v1079 = vadd.s32 %v711, %v566
        %v1080 = vadd.s32 %v711, %v567
        %v1081 = vadd.s32 %v711, %v568
        %v1082 = vadd.s32 %v711, %v569
        %v1083 = vadd.s32 %v711, %v570
        %v1084 = vadd.s32 %v711, %v571
        %v1085 = vadd.s32 %v711, %v572
        %v1086 = vadd.s32 %v711, %v573
        %v1087 = vadd.s32 %v711, %v574
        %v1088 = vadd.s32 %v711, %v575
        %v1089 = vadd.s32 %v711, %v576
        %v1090 = vadd.s32 %v711, %v577
        %v1091 = vadd.s32 %v711, %v578
        %v1092 = vadd.s32 %v711, %v579
        %v1093 = vadd.s32 %v711, %v580
        %v1094 = vadd.s32 %v711, %v581
        %v1095 = vadd.s32 %v711, %v582
        %v1096 = vadd.s32 %v711, %v583
        %v1097 = vadd.s32 %v711, %v584
        %v1098 = vadd.s32 %v711, %v585
        %v1099 = vadd.s32 %v711, %v586
        %v1100 = vadd.s32 %v711, %v587
        %v1101 = vadd.s32 %v711, %v588
        %v1102 = vadd.s32 %v711, %v589
        %v1103 = vadd.s32 %v711, %v590
        %v1104 = vadd.s32 %v711, %v591
        %v1105 = vadd.s32 %v711, %v592
        %v1106 = vadd.s32 %v711, %v593
        %v1107 = vadd.s32 %v711, %v594
        %v1108 = vadd.s32 %v711, %v595
        %v1109 = vadd.s32 %v711, %v596
        %v1110 = vadd.s32 %v711, %v597
        %v1111 = vadd.s32 %v711, %v598
        %v1112 = vadd.s32 %v711, %v599
        %v1113 = vadd.s32 %v711, %v600
        %v1114 = vadd.s32 %v711, %v601
        %v1115 = vadd.s32 %v711, %v602
        %v1116 = vadd.s32 %v711, %v603
        %v1117 = vadd.s32 %v711, %v604
        %v1118 = vadd.s32 %v711, %v605
        %v1119 = vadd.s32 %v711, %v606
        %v1120 = vadd.s32 %v711, %v607
        %v1121 = vadd.s32 %v711, %v608
        %v1122 = vadd.s32 %v711, %v609
        %v1123 = vadd.s32 %v711, %v610
        %v1124 = vadd.s32 %v711, %v611
        %v1125 = vadd.s32 %v711, %v612
        %v1126 = vadd.s32 %v711, %v613
        %v1127 = vadd.s32 %v711, %v614
        %v1128 = vadd.s32 %v711, %v615
        %v1129 = vadd.s32 %v711, %v616
        %v1130 = vadd.s32 %v711, %v617
        %v1131 = vadd.s32 %v711, %v618
        %v1132 = vadd.s32 %v711, %v619
        %v1133 = vadd.s32 %v711, %v620
        %v1134 = vadd.s32 %v711, %v621
        %v1135 = vadd.s32 %v711, %v622
        %v1136 = vadd.s32 %v711, %v623
        %v1137 = vadd.s32 %v711, %v624
        %v1138 = vadd.s32 %v711, %v625
        %v1139 = vadd.s32 %v711, %v626
        %v1140 = vadd.s32 %v711, %v627
        %v1141 = vadd.s32 %v711, %v628
        %v1142 = vadd.s32 %v711, %v629
        %v1143 = vadd.s32 %v711, %v630
        %v1144 = vadd.s32 %v711, %v631
        %v1145 = vadd.s32 %v711, %v632
        %v1146 = vadd.s32 %v711, %v633
        %v1147 = vadd.s32 %v711, %v634
        %v1148 = vadd.s32 %v711, %v635
        %v1149 = vadd.s32 %v711, %v636
        %v1150 = vadd.s32 %v711, %v637
        %v1151 = vadd.s32 %v711, %v638
        %v1152 = vadd.s32 %v711, %v639
        %v1153 = vadd.s32 %v711, %v640
        %v1154 = vadd.s32 %v711, %v641
        %v1155 = vadd.s32 %v711, %v642
        %v1156 = vadd.s32 %v711, %v643
        %v1157 = vadd.s32 %v711, %v644
        %v1158 = vadd.s32 %v711, %v645
        %v1159 = vadd.s32 %v711, %v646
        %v1160 = vadd.s32 %v711, %v647
        %v1161 = vadd.s32 %v711, %v648
        %v1162 = vadd.s32 %v711, %v649
        %v1163 = vadd.s32 %v711, %v650
        %v1164 = vadd.s32 %v711, %v651
        %v1165 = vadd.s32 %v711, %v652
        %v1166 = vadd.s32 %v711, %v653
        %v1167 = vadd.s32 %v711, %v654
        %v1168 = vadd.s32 %v711, %v655
        %v1169 = vadd.s32 %v711, %v656
        %v1170 = vadd.s32 %v711, %v657
        %v1171 = vadd.s32 %v711, %v658
        %v1172 = vadd.s32 %v711, %v659
        %v1173 = vadd.s32 %v711, %v660
        %v1174 = vadd.s32 %v711, %v661
        %v1175 = vadd.s32 %v711, %v662
        %v1176 = vadd.s32 %v711, %v663
        %v1177 = vadd.s32 %v711, %v664
        %v1178 = vadd.s32 %v711, %v665
        %v1179 = vadd.s32 %v711, %v666
        %v1180 = vadd.s32 %v711, %v667
        %v1181 = vadd.s32 %v711, %v668
        %v1182 = vadd.s32 %v711, %v669
        %v1183 = vadd.s32 %v711, %v670
        %v1184 = vadd.s32 %v711, %v671
        %v1185 = vadd.s32 %v711, %v672
        %v1186 = vadd.s32 %v711, %v673
        %v1187 = vadd.s32 %v711, %v674
        %v1188 = vadd.s32 %v711, %v675
        %v1189 = vadd.s32 %v711, %v676
        %v1190 = vadd.s32 %v711, %v677
        %v1191 = vadd.s32 %v711, %v678
        %v1192 = vadd.s32 %v711, %v679
        %v1193 = vadd.s32 %v711, %v680
        %v1194 = vadd.s32 %v711, %v681
        %v1195 = vadd.s32 %v711, %v682
        %v1196 = vadd.s32 %v711, %v683
        %v1197 = vadd.s32 %v711, %v684
        %v1198 = vadd.s32 %v711, %v685
        %v1199 = vadd.s32 %v711, %v686
        %v1200 = vadd.s32 %v711, %v687
        %v1201 = vadd.s32 %v711, %v688
        %v1202 = vadd.s32 %v711, %v689
        %v1203 = vadd.s32 %v711, %v690
        %v1204 = vadd.s32 %v711, %v691
        %v1205 = vadd.s32 %v711, %v692
        %v1206 = vadd.s32 %v711, %v693
        %v1207 = vadd.s32 %v711, %v694
        %v1208 = vadd.s32 %v711, %v695
        %v1209 = vadd.s32 %v711, %v696
        %v1210 = vadd.s32 %v711, %v697
        %v1211 = vadd.s32 %v711, %v698
        %v1212 = vadd.s32 %v711, %v699
        %v1213 = vadd.s32 %v711, %v700
        %v1214 = vadd.s32 %v711, %v701
        %v1215 = vadd.s32 %v711, %v702
        %v1216 = vadd.s32 %v711, %v703
        %v1217 = vadd.s32 %v711, %v704
        %v1218 = vadd.s32 %v711, %v705
        %v1219 = vadd.s32 %v711, %v706
        %v1220 = vadd.s32 %v711, %v707
        %v1221 = vadd.s32 %v711, %v708
        %v1222 = vadd.s32 %v711, %v709
        %v1223 = vadd.s32 %v711, %v710
        %v1224 = vld [vmem:[%s166] sm:$0xff]
        %v1225 = vld [vmem:[%s166 + $0x8] sm:$0xff]
        %v1226 = vld [vmem:[%s166 + $0x10] sm:$0xff]
        %v1227 = vld [vmem:[%s166 + $0x18] sm:$0xff]
        %v1228 = vld [vmem:[%s166 + $0x20] sm:$0xff]
        %v1229 = vld [vmem:[%s166 + $0x28] sm:$0xff]
        %v1230 = vld [vmem:[%s166 + $0x30] sm:$0xff]
        %v1231 = vld [vmem:[%s166 + $0x38] sm:$0xff]
        %v1232 = vld [vmem:[%s166 + $0x40] sm:$0xff]
        %v1233 = vld [vmem:[%s166 + $0x48] sm:$0xff]
        %v1234 = vld [vmem:[%s166 + $0x50] sm:$0xff]
        %v1235 = vld [vmem:[%s166 + $0x58] sm:$0xff]
        %v1236 = vld [vmem:[%s166 + $0x60] sm:$0xff]
        %v1237 = vld [vmem:[%s166 + $0x68] sm:$0xff]
        %v1238 = vld [vmem:[%s166 + $0x70] sm:$0xff]
        %v1239 = vld [vmem:[%s166 + $0x78] sm:$0xff]
        %v1240 = vld [vmem:[%s166 + $0x80] sm:$0xff]
        %v1241 = vld [vmem:[%s166 + $0x88] sm:$0xff]
        %v1242 = vld [vmem:[%s166 + $0x90] sm:$0xff]
        %v1243 = vld [vmem:[%s166 + $0x98] sm:$0xff]
        %v1244 = vld [vmem:[%s166 + $0xa0] sm:$0xff]
        %v1245 = vld [vmem:[%s166 + $0xa8] sm:$0xff]
        %v1246 = vld [vmem:[%s166 + $0xb0] sm:$0xff]
        %v1247 = vld [vmem:[%s166 + $0xb8] sm:$0xff]
        %v1248 = vld [vmem:[%s166 + $0xc0] sm:$0xff]
        %v1249 = vld [vmem:[%s166 + $0xc8] sm:$0xff]
        %v1250 = vld [vmem:[%s166 + $0xd0] sm:$0xff]
        %v1251 = vld [vmem:[%s166 + $0xd8] sm:$0xff]
        %v1252 = vld [vmem:[%s166 + $0xe0] sm:$0xff]
        %v1253 = vld [vmem:[%s166 + $0xe8] sm:$0xff]
        %v1254 = vld [vmem:[%s166 + $0xf0] sm:$0xff]
        %v1255 = vld [vmem:[%s166 + $0xf8] sm:$0xff]
        %v1256 = vld [vmem:[%s166 + $0x100] sm:$0xff]
        %v1257 = vld [vmem:[%s166 + $0x108] sm:$0xff]
        %v1258 = vld [vmem:[%s166 + $0x110] sm:$0xff]
        %v1259 = vld [vmem:[%s166 + $0x118] sm:$0xff]
        %v1260 = vld [vmem:[%s166 + $0x120] sm:$0xff]
        %v1261 = vld [vmem:[%s166 + $0x128] sm:$0xff]
        %v1262 = vld [vmem:[%s166 + $0x130] sm:$0xff]
        %v1263 = vld [vmem:[%s166 + $0x138] sm:$0xff]
        %v1264 = vld [vmem:[%s166 + $0x140] sm:$0xff]
        %v1265 = vld [vmem:[%s166 + $0x148] sm:$0xff]
        %v1266 = vld [vmem:[%s166 + $0x150] sm:$0xff]
        %v1267 = vld [vmem:[%s166 + $0x158] sm:$0xff]
        %v1268 = vld [vmem:[%s166 + $0x160] sm:$0xff]
        %v1269 = vld [vmem:[%s166 + $0x168] sm:$0xff]
        %v1270 = vld [vmem:[%s166 + $0x170] sm:$0xff]
        %v1271 = vld [vmem:[%s166 + $0x178] sm:$0xff]
        %v1272 = vld [vmem:[%s166 + $0x180] sm:$0xff]
        %v1273 = vld [vmem:[%s166 + $0x188] sm:$0xff]
        %v1274 = vld [vmem:[%s166 + $0x190] sm:$0xff]
        %v1275 = vld [vmem:[%s166 + $0x198] sm:$0xff]
        %v1276 = vld [vmem:[%s166 + $0x1a0] sm:$0xff]
        %v1277 = vld [vmem:[%s166 + $0x1a8] sm:$0xff]
        %v1278 = vld [vmem:[%s166 + $0x1b0] sm:$0xff]
        %v1279 = vld [vmem:[%s166 + $0x1b8] sm:$0xff]
        %v1280 = vld [vmem:[%s166 + $0x1c0] sm:$0xff]
        %v1281 = vld [vmem:[%s166 + $0x1c8] sm:$0xff]
        %v1282 = vld [vmem:[%s166 + $0x1d0] sm:$0xff]
        %v1283 = vld [vmem:[%s166 + $0x1d8] sm:$0xff]
        %v1284 = vld [vmem:[%s166 + $0x1e0] sm:$0xff]
        %v1285 = vld [vmem:[%s166 + $0x1e8] sm:$0xff]
        %v1286 = vld [vmem:[%s166 + $0x1f0] sm:$0xff]
        %v1287 = vld [vmem:[%s166 + $0x1f8] sm:$0xff]
        %v1288 = vld [vmem:[%s166 + $0x200] sm:$0xff]
        %v1289 = vld [vmem:[%s166 + $0x208] sm:$0xff]
        %v1290 = vld [vmem:[%s166 + $0x210] sm:$0xff]
        %v1291 = vld [vmem:[%s166 + $0x218] sm:$0xff]
        %v1292 = vld [vmem:[%s166 + $0x220] sm:$0xff]
        %v1293 = vld [vmem:[%s166 + $0x228] sm:$0xff]
        %v1294 = vld [vmem:[%s166 + $0x230] sm:$0xff]
        %v1295 = vld [vmem:[%s166 + $0x238] sm:$0xff]
        %v1296 = vld [vmem:[%s166 + $0x240] sm:$0xff]
        %v1297 = vld [vmem:[%s166 + $0x248] sm:$0xff]
        %v1298 = vld [vmem:[%s166 + $0x250] sm:$0xff]
        %v1299 = vld [vmem:[%s166 + $0x258] sm:$0xff]
        %v1300 = vld [vmem:[%s166 + $0x260] sm:$0xff]
        %v1301 = vld [vmem:[%s166 + $0x268] sm:$0xff]
        %v1302 = vld [vmem:[%s166 + $0x270] sm:$0xff]
        %v1303 = vld [vmem:[%s166 + $0x278] sm:$0xff]
        %v1304 = vld [vmem:[%s166 + $0x280] sm:$0xff]
        %v1305 = vld [vmem:[%s166 + $0x288] sm:$0xff]
        %v1306 = vld [vmem:[%s166 + $0x290] sm:$0xff]
        %v1307 = vld [vmem:[%s166 + $0x298] sm:$0xff]
        %v1308 = vld [vmem:[%s166 + $0x2a0] sm:$0xff]
        %v1309 = vld [vmem:[%s166 + $0x2a8] sm:$0xff]
        %v1310 = vld [vmem:[%s166 + $0x2b0] sm:$0xff]
        %v1311 = vld [vmem:[%s166 + $0x2b8] sm:$0xff]
        %v1312 = vld [vmem:[%s166 + $0x2c0] sm:$0xff]
        %v1313 = vld [vmem:[%s166 + $0x2c8] sm:$0xff]
        %v1314 = vld [vmem:[%s166 + $0x2d0] sm:$0xff]
        %v1315 = vld [vmem:[%s166 + $0x2d8] sm:$0xff]
        %v1316 = vld [vmem:[%s166 + $0x2e0] sm:$0xff]
        %v1317 = vld [vmem:[%s166 + $0x2e8] sm:$0xff]
        %v1318 = vld [vmem:[%s166 + $0x2f0] sm:$0xff]
        %v1319 = vld [vmem:[%s166 + $0x2f8] sm:$0xff]
        %v1320 = vld [vmem:[%s166 + $0x300] sm:$0xff]
        %v1321 = vld [vmem:[%s166 + $0x308] sm:$0xff]
        %v1322 = vld [vmem:[%s166 + $0x310] sm:$0xff]
        %v1323 = vld [vmem:[%s166 + $0x318] sm:$0xff]
        %v1324 = vld [vmem:[%s166 + $0x320] sm:$0xff]
        %v1325 = vld [vmem:[%s166 + $0x328] sm:$0xff]
        %v1326 = vld [vmem:[%s166 + $0x330] sm:$0xff]
        %v1327 = vld [vmem:[%s166 + $0x338] sm:$0xff]
        %v1328 = vld [vmem:[%s166 + $0x340] sm:$0xff]
        %v1329 = vld [vmem:[%s166 + $0x348] sm:$0xff]
        %v1330 = vld [vmem:[%s166 + $0x350] sm:$0xff]
        %v1331 = vld [vmem:[%s166 + $0x358] sm:$0xff]
        %v1332 = vld [vmem:[%s166 + $0x360] sm:$0xff]
        %v1333 = vld [vmem:[%s166 + $0x368] sm:$0xff]
        %v1334 = vld [vmem:[%s166 + $0x370] sm:$0xff]
        %v1335 = vld [vmem:[%s166 + $0x378] sm:$0xff]
        %v1336 = vld [vmem:[%s166 + $0x380] sm:$0xff]
        %v1337 = vld [vmem:[%s166 + $0x388] sm:$0xff]
        %v1338 = vld [vmem:[%s166 + $0x390] sm:$0xff]
        %v1339 = vld [vmem:[%s166 + $0x398] sm:$0xff]
        %v1340 = vld [vmem:[%s166 + $0x3a0] sm:$0xff]
        %v1341 = vld [vmem:[%s166 + $0x3a8] sm:$0xff]
        %v1342 = vld [vmem:[%s166 + $0x3b0] sm:$0xff]
        %v1343 = vld [vmem:[%s166 + $0x3b8] sm:$0xff]
        %v1344 = vld [vmem:[%s166 + $0x3c0] sm:$0xff]
        %v1345 = vld [vmem:[%s166 + $0x3c8] sm:$0xff]
        %v1346 = vld [vmem:[%s166 + $0x3d0] sm:$0xff]
        %v1347 = vld [vmem:[%s166 + $0x3d8] sm:$0xff]
        %v1348 = vld [vmem:[%s166 + $0x3e0] sm:$0xff]
        %v1349 = vld [vmem:[%s166 + $0x3e8] sm:$0xff]
        %v1350 = vld [vmem:[%s166 + $0x3f0] sm:$0xff]
        %v1351 = vld [vmem:[%s166 + $0x3f8] sm:$0xff]
        %v1352 = vld [vmem:[%s166 + $0x400] sm:$0xff]
        %v1353 = vld [vmem:[%s166 + $0x408] sm:$0xff]
        %v1354 = vld [vmem:[%s166 + $0x410] sm:$0xff]
        %v1355 = vld [vmem:[%s166 + $0x418] sm:$0xff]
        %v1356 = vld [vmem:[%s166 + $0x420] sm:$0xff]
        %v1357 = vld [vmem:[%s166 + $0x428] sm:$0xff]
        %v1358 = vld [vmem:[%s166 + $0x430] sm:$0xff]
        %v1359 = vld [vmem:[%s166 + $0x438] sm:$0xff]
        %v1360 = vld [vmem:[%s166 + $0x440] sm:$0xff]
        %v1361 = vld [vmem:[%s166 + $0x448] sm:$0xff]
        %v1362 = vld [vmem:[%s166 + $0x450] sm:$0xff]
        %v1363 = vld [vmem:[%s166 + $0x458] sm:$0xff]
        %v1364 = vld [vmem:[%s166 + $0x460] sm:$0xff]
        %v1365 = vld [vmem:[%s166 + $0x468] sm:$0xff]
        %v1366 = vld [vmem:[%s166 + $0x470] sm:$0xff]
        %v1367 = vld [vmem:[%s166 + $0x478] sm:$0xff]
        %v1368 = vld [vmem:[%s166 + $0x480] sm:$0xff]
        %v1369 = vld [vmem:[%s166 + $0x488] sm:$0xff]
        %v1370 = vld [vmem:[%s166 + $0x490] sm:$0xff]
        %v1371 = vld [vmem:[%s166 + $0x498] sm:$0xff]
        %v1372 = vld [vmem:[%s166 + $0x4a0] sm:$0xff]
        %v1373 = vld [vmem:[%s166 + $0x4a8] sm:$0xff]
        %v1374 = vld [vmem:[%s166 + $0x4b0] sm:$0xff]
        %v1375 = vld [vmem:[%s166 + $0x4b8] sm:$0xff]
        %v1376 = vld [vmem:[%s166 + $0x4c0] sm:$0xff]
        %v1377 = vld [vmem:[%s166 + $0x4c8] sm:$0xff]
        %v1378 = vld [vmem:[%s166 + $0x4d0] sm:$0xff]
        %v1379 = vld [vmem:[%s166 + $0x4d8] sm:$0xff]
        %v1380 = vld [vmem:[%s166 + $0x4e0] sm:$0xff]
        %v1381 = vld [vmem:[%s166 + $0x4e8] sm:$0xff]
        %v1382 = vld [vmem:[%s166 + $0x4f0] sm:$0xff]
        %v1383 = vld [vmem:[%s166 + $0x4f8] sm:$0xff]
        %v1384 = vld [vmem:[%s166 + $0x500] sm:$0xff]
        %v1385 = vld [vmem:[%s166 + $0x508] sm:$0xff]
        %v1386 = vld [vmem:[%s166 + $0x510] sm:$0xff]
        %v1387 = vld [vmem:[%s166 + $0x518] sm:$0xff]
        %v1388 = vld [vmem:[%s166 + $0x520] sm:$0xff]
        %v1389 = vld [vmem:[%s166 + $0x528] sm:$0xff]
        %v1390 = vld [vmem:[%s166 + $0x530] sm:$0xff]
        %v1391 = vld [vmem:[%s166 + $0x538] sm:$0xff]
        %v1392 = vld [vmem:[%s166 + $0x540] sm:$0xff]
        %v1393 = vld [vmem:[%s166 + $0x548] sm:$0xff]
        %v1394 = vld [vmem:[%s166 + $0x550] sm:$0xff]
        %v1395 = vld [vmem:[%s166 + $0x558] sm:$0xff]
        %v1396 = vld [vmem:[%s166 + $0x560] sm:$0xff]
        %v1397 = vld [vmem:[%s166 + $0x568] sm:$0xff]
        %v1398 = vld [vmem:[%s166 + $0x570] sm:$0xff]
        %v1399 = vld [vmem:[%s166 + $0x578] sm:$0xff]
        %v1400 = vld [vmem:[%s166 + $0x580] sm:$0xff]
        %v1401 = vld [vmem:[%s166 + $0x588] sm:$0xff]
        %v1402 = vld [vmem:[%s166 + $0x590] sm:$0xff]
        %v1403 = vld [vmem:[%s166 + $0x598] sm:$0xff]
        %v1404 = vld [vmem:[%s166 + $0x5a0] sm:$0xff]
        %v1405 = vld [vmem:[%s166 + $0x5a8] sm:$0xff]
        %v1406 = vld [vmem:[%s166 + $0x5b0] sm:$0xff]
        %v1407 = vld [vmem:[%s166 + $0x5b8] sm:$0xff]
        %v1408 = vld [vmem:[%s166 + $0x5c0] sm:$0xff]
        %v1409 = vld [vmem:[%s166 + $0x5c8] sm:$0xff]
        %v1410 = vld [vmem:[%s166 + $0x5d0] sm:$0xff]
        %v1411 = vld [vmem:[%s166 + $0x5d8] sm:$0xff]
        %v1412 = vld [vmem:[%s166 + $0x5e0] sm:$0xff]
        %v1413 = vld [vmem:[%s166 + $0x5e8] sm:$0xff]
        %v1414 = vld [vmem:[%s166 + $0x5f0] sm:$0xff]
        %v1415 = vld [vmem:[%s166 + $0x5f8] sm:$0xff]
        %v1416 = vld [vmem:[%s166 + $0x600] sm:$0xff]
        %v1417 = vld [vmem:[%s166 + $0x608] sm:$0xff]
        %v1418 = vld [vmem:[%s166 + $0x610] sm:$0xff]
        %v1419 = vld [vmem:[%s166 + $0x618] sm:$0xff]
        %v1420 = vld [vmem:[%s166 + $0x620] sm:$0xff]
        %v1421 = vld [vmem:[%s166 + $0x628] sm:$0xff]
        %v1422 = vld [vmem:[%s166 + $0x630] sm:$0xff]
        %v1423 = vld [vmem:[%s166 + $0x638] sm:$0xff]
        %v1424 = vld [vmem:[%s166 + $0x640] sm:$0xff]
        %v1425 = vld [vmem:[%s166 + $0x648] sm:$0xff]
        %v1426 = vld [vmem:[%s166 + $0x650] sm:$0xff]
        %v1427 = vld [vmem:[%s166 + $0x658] sm:$0xff]
        %v1428 = vld [vmem:[%s166 + $0x660] sm:$0xff]
        %v1429 = vld [vmem:[%s166 + $0x668] sm:$0xff]
        %v1430 = vld [vmem:[%s166 + $0x670] sm:$0xff]
        %v1431 = vld [vmem:[%s166 + $0x678] sm:$0xff]
        %v1432 = vld [vmem:[%s166 + $0x680] sm:$0xff]
        %v1433 = vld [vmem:[%s166 + $0x688] sm:$0xff]
        %v1434 = vld [vmem:[%s166 + $0x690] sm:$0xff]
        %v1435 = vld [vmem:[%s166 + $0x698] sm:$0xff]
        %v1436 = vld [vmem:[%s166 + $0x6a0] sm:$0xff]
        %v1437 = vld [vmem:[%s166 + $0x6a8] sm:$0xff]
        %v1438 = vld [vmem:[%s166 + $0x6b0] sm:$0xff]
        %v1439 = vld [vmem:[%s166 + $0x6b8] sm:$0xff]
        %v1440 = vld [vmem:[%s166 + $0x6c0] sm:$0xff]
        %v1441 = vld [vmem:[%s166 + $0x6c8] sm:$0xff]
        %v1442 = vld [vmem:[%s166 + $0x6d0] sm:$0xff]
        %v1443 = vld [vmem:[%s166 + $0x6d8] sm:$0xff]
        %v1444 = vld [vmem:[%s166 + $0x6e0] sm:$0xff]
        %v1445 = vld [vmem:[%s166 + $0x6e8] sm:$0xff]
        %v1446 = vld [vmem:[%s166 + $0x6f0] sm:$0xff]
        %v1447 = vld [vmem:[%s166 + $0x6f8] sm:$0xff]
        %v1448 = vld [vmem:[%s166 + $0x700] sm:$0xff]
        %v1449 = vld [vmem:[%s166 + $0x708] sm:$0xff]
        %v1450 = vld [vmem:[%s166 + $0x710] sm:$0xff]
        %v1451 = vld [vmem:[%s166 + $0x718] sm:$0xff]
        %v1452 = vld [vmem:[%s166 + $0x720] sm:$0xff]
        %v1453 = vld [vmem:[%s166 + $0x728] sm:$0xff]
        %v1454 = vld [vmem:[%s166 + $0x730] sm:$0xff]
        %v1455 = vld [vmem:[%s166 + $0x738] sm:$0xff]
        %v1456 = vld [vmem:[%s166 + $0x740] sm:$0xff]
        %v1457 = vld [vmem:[%s166 + $0x748] sm:$0xff]
        %v1458 = vld [vmem:[%s166 + $0x750] sm:$0xff]
        %v1459 = vld [vmem:[%s166 + $0x758] sm:$0xff]
        %v1460 = vld [vmem:[%s166 + $0x760] sm:$0xff]
        %v1461 = vld [vmem:[%s166 + $0x768] sm:$0xff]
        %v1462 = vld [vmem:[%s166 + $0x770] sm:$0xff]
        %v1463 = vld [vmem:[%s166 + $0x778] sm:$0xff]
        %v1464 = vld [vmem:[%s166 + $0x780] sm:$0xff]
        %v1465 = vld [vmem:[%s166 + $0x788] sm:$0xff]
        %v1466 = vld [vmem:[%s166 + $0x790] sm:$0xff]
        %v1467 = vld [vmem:[%s166 + $0x798] sm:$0xff]
        %v1468 = vld [vmem:[%s166 + $0x7a0] sm:$0xff]
        %v1469 = vld [vmem:[%s166 + $0x7a8] sm:$0xff]
        %v1470 = vld [vmem:[%s166 + $0x7b0] sm:$0xff]
        %v1471 = vld [vmem:[%s166 + $0x7b8] sm:$0xff]
        %v1472 = vld [vmem:[%s166 + $0x7c0] sm:$0xff]
        %v1473 = vld [vmem:[%s166 + $0x7c8] sm:$0xff]
        %v1474 = vld [vmem:[%s166 + $0x7d0] sm:$0xff]
        %v1475 = vld [vmem:[%s166 + $0x7d8] sm:$0xff]
        %v1476 = vld [vmem:[%s166 + $0x7e0] sm:$0xff]
        %v1477 = vld [vmem:[%s166 + $0x7e8] sm:$0xff]
        %v1478 = vld [vmem:[%s166 + $0x7f0] sm:$0xff]
        %v1479 = vld [vmem:[%s166 + $0x7f8] sm:$0xff]
        %v1480 = vld [vmem:[%s166 + $0x800] sm:$0xff]
        %v1481 = vld [vmem:[%s166 + $0x808] sm:$0xff]
        %v1482 = vld [vmem:[%s166 + $0x810] sm:$0xff]
        %v1483 = vld [vmem:[%s166 + $0x818] sm:$0xff]
        %v1484 = vld [vmem:[%s166 + $0x820] sm:$0xff]
        %v1485 = vld [vmem:[%s166 + $0x828] sm:$0xff]
        %v1486 = vld [vmem:[%s166 + $0x830] sm:$0xff]
        %v1487 = vld [vmem:[%s166 + $0x838] sm:$0xff]
        %v1488 = vld [vmem:[%s166 + $0x840] sm:$0xff]
        %v1489 = vld [vmem:[%s166 + $0x848] sm:$0xff]
        %v1490 = vld [vmem:[%s166 + $0x850] sm:$0xff]
        %v1491 = vld [vmem:[%s166 + $0x858] sm:$0xff]
        %v1492 = vld [vmem:[%s166 + $0x860] sm:$0xff]
        %v1493 = vld [vmem:[%s166 + $0x868] sm:$0xff]
        %v1494 = vld [vmem:[%s166 + $0x870] sm:$0xff]
        %v1495 = vld [vmem:[%s166 + $0x878] sm:$0xff]
        %v1496 = vld [vmem:[%s166 + $0x880] sm:$0xff]
        %v1497 = vld [vmem:[%s166 + $0x888] sm:$0xff]
        %v1498 = vld [vmem:[%s166 + $0x890] sm:$0xff]
        %v1499 = vld [vmem:[%s166 + $0x898] sm:$0xff]
        %v1500 = vld [vmem:[%s166 + $0x8a0] sm:$0xff]
        %v1501 = vld [vmem:[%s166 + $0x8a8] sm:$0xff]
        %v1502 = vld [vmem:[%s166 + $0x8b0] sm:$0xff]
        %v1503 = vld [vmem:[%s166 + $0x8b8] sm:$0xff]
        %v1504 = vld [vmem:[%s166 + $0x8c0] sm:$0xff]
        %v1505 = vld [vmem:[%s166 + $0x8c8] sm:$0xff]
        %v1506 = vld [vmem:[%s166 + $0x8d0] sm:$0xff]
        %v1507 = vld [vmem:[%s166 + $0x8d8] sm:$0xff]
        %v1508 = vld [vmem:[%s166 + $0x8e0] sm:$0xff]
        %v1509 = vld [vmem:[%s166 + $0x8e8] sm:$0xff]
        %v1510 = vld [vmem:[%s166 + $0x8f0] sm:$0xff]
        %v1511 = vld [vmem:[%s166 + $0x8f8] sm:$0xff]
        %v1512 = vld [vmem:[%s166 + $0x900] sm:$0xff]
        %v1513 = vld [vmem:[%s166 + $0x908] sm:$0xff]
        %v1514 = vld [vmem:[%s166 + $0x910] sm:$0xff]
        %v1515 = vld [vmem:[%s166 + $0x918] sm:$0xff]
        %v1516 = vld [vmem:[%s166 + $0x920] sm:$0xff]
        %v1517 = vld [vmem:[%s166 + $0x928] sm:$0xff]
        %v1518 = vld [vmem:[%s166 + $0x930] sm:$0xff]
        %v1519 = vld [vmem:[%s166 + $0x938] sm:$0xff]
        %v1520 = vld [vmem:[%s166 + $0x940] sm:$0xff]
        %v1521 = vld [vmem:[%s166 + $0x948] sm:$0xff]
        %v1522 = vld [vmem:[%s166 + $0x950] sm:$0xff]
        %v1523 = vld [vmem:[%s166 + $0x958] sm:$0xff]
        %v1524 = vld [vmem:[%s166 + $0x960] sm:$0xff]
        %v1525 = vld [vmem:[%s166 + $0x968] sm:$0xff]
        %v1526 = vld [vmem:[%s166 + $0x970] sm:$0xff]
        %v1527 = vld [vmem:[%s166 + $0x978] sm:$0xff]
        %v1528 = vld [vmem:[%s166 + $0x980] sm:$0xff]
        %v1529 = vld [vmem:[%s166 + $0x988] sm:$0xff]
        %v1530 = vld [vmem:[%s166 + $0x990] sm:$0xff]
        %v1531 = vld [vmem:[%s166 + $0x998] sm:$0xff]
        %v1532 = vld [vmem:[%s166 + $0x9a0] sm:$0xff]
        %v1533 = vld [vmem:[%s166 + $0x9a8] sm:$0xff]
        %v1534 = vld [vmem:[%s166 + $0x9b0] sm:$0xff]
        %v1535 = vld [vmem:[%s166 + $0x9b8] sm:$0xff]
        %v1536 = vld [vmem:[%s166 + $0x9c0] sm:$0xff]
        %v1537 = vld [vmem:[%s166 + $0x9c8] sm:$0xff]
        %v1538 = vld [vmem:[%s166 + $0x9d0] sm:$0xff]
        %v1539 = vld [vmem:[%s166 + $0x9d8] sm:$0xff]
        %v1540 = vld [vmem:[%s166 + $0x9e0] sm:$0xff]
        %v1541 = vld [vmem:[%s166 + $0x9e8] sm:$0xff]
        %v1542 = vld [vmem:[%s166 + $0x9f0] sm:$0xff]
        %v1543 = vld [vmem:[%s166 + $0x9f8] sm:$0xff]
        %v1544 = vld [vmem:[%s166 + $0xa00] sm:$0xff]
        %v1545 = vld [vmem:[%s166 + $0xa08] sm:$0xff]
        %v1546 = vld [vmem:[%s166 + $0xa10] sm:$0xff]
        %v1547 = vld [vmem:[%s166 + $0xa18] sm:$0xff]
        %v1548 = vld [vmem:[%s166 + $0xa20] sm:$0xff]
        %v1549 = vld [vmem:[%s166 + $0xa28] sm:$0xff]
        %v1550 = vld [vmem:[%s166 + $0xa30] sm:$0xff]
        %v1551 = vld [vmem:[%s166 + $0xa38] sm:$0xff]
        %v1552 = vld [vmem:[%s166 + $0xa40] sm:$0xff]
        %v1553 = vld [vmem:[%s166 + $0xa48] sm:$0xff]
        %v1554 = vld [vmem:[%s166 + $0xa50] sm:$0xff]
        %v1555 = vld [vmem:[%s166 + $0xa58] sm:$0xff]
        %v1556 = vld [vmem:[%s166 + $0xa60] sm:$0xff]
        %v1557 = vld [vmem:[%s166 + $0xa68] sm:$0xff]
        %v1558 = vld [vmem:[%s166 + $0xa70] sm:$0xff]
        %v1559 = vld [vmem:[%s166 + $0xa78] sm:$0xff]
        %v1560 = vld [vmem:[%s166 + $0xa80] sm:$0xff]
        %v1561 = vld [vmem:[%s166 + $0xa88] sm:$0xff]
        %v1562 = vld [vmem:[%s166 + $0xa90] sm:$0xff]
        %v1563 = vld [vmem:[%s166 + $0xa98] sm:$0xff]
        %v1564 = vld [vmem:[%s166 + $0xaa0] sm:$0xff]
        %v1565 = vld [vmem:[%s166 + $0xaa8] sm:$0xff]
        %v1566 = vld [vmem:[%s166 + $0xab0] sm:$0xff]
        %v1567 = vld [vmem:[%s166 + $0xab8] sm:$0xff]
        %v1568 = vld [vmem:[%s166 + $0xac0] sm:$0xff]
        %v1569 = vld [vmem:[%s166 + $0xac8] sm:$0xff]
        %v1570 = vld [vmem:[%s166 + $0xad0] sm:$0xff]
        %v1571 = vld [vmem:[%s166 + $0xad8] sm:$0xff]
        %v1572 = vld [vmem:[%s166 + $0xae0] sm:$0xff]
        %v1573 = vld [vmem:[%s166 + $0xae8] sm:$0xff]
        %v1574 = vld [vmem:[%s166 + $0xaf0] sm:$0xff]
        %v1575 = vld [vmem:[%s166 + $0xaf8] sm:$0xff]
        %v1576 = vld [vmem:[%s166 + $0xb00] sm:$0xff]
        %v1577 = vld [vmem:[%s166 + $0xb08] sm:$0xff]
        %v1578 = vld [vmem:[%s166 + $0xb10] sm:$0xff]
        %v1579 = vld [vmem:[%s166 + $0xb18] sm:$0xff]
        %v1580 = vld [vmem:[%s166 + $0xb20] sm:$0xff]
        %v1581 = vld [vmem:[%s166 + $0xb28] sm:$0xff]
        %v1582 = vld [vmem:[%s166 + $0xb30] sm:$0xff]
        %v1583 = vld [vmem:[%s166 + $0xb38] sm:$0xff]
        %v1584 = vld [vmem:[%s166 + $0xb40] sm:$0xff]
        %v1585 = vld [vmem:[%s166 + $0xb48] sm:$0xff]
        %v1586 = vld [vmem:[%s166 + $0xb50] sm:$0xff]
        %v1587 = vld [vmem:[%s166 + $0xb58] sm:$0xff]
        %v1588 = vld [vmem:[%s166 + $0xb60] sm:$0xff]
        %v1589 = vld [vmem:[%s166 + $0xb68] sm:$0xff]
        %v1590 = vld [vmem:[%s166 + $0xb70] sm:$0xff]
        %v1591 = vld [vmem:[%s166 + $0xb78] sm:$0xff]
        %v1592 = vld [vmem:[%s166 + $0xb80] sm:$0xff]
        %v1593 = vld [vmem:[%s166 + $0xb88] sm:$0xff]
        %v1594 = vld [vmem:[%s166 + $0xb90] sm:$0xff]
        %v1595 = vld [vmem:[%s166 + $0xb98] sm:$0xff]
        %v1596 = vld [vmem:[%s166 + $0xba0] sm:$0xff]
        %v1597 = vld [vmem:[%s166 + $0xba8] sm:$0xff]
        %v1598 = vld [vmem:[%s166 + $0xbb0] sm:$0xff]
        %v1599 = vld [vmem:[%s166 + $0xbb8] sm:$0xff]
        %v1600 = vld [vmem:[%s166 + $0xbc0] sm:$0xff]
        %v1601 = vld [vmem:[%s166 + $0xbc8] sm:$0xff]
        %v1602 = vld [vmem:[%s166 + $0xbd0] sm:$0xff]
        %v1603 = vld [vmem:[%s166 + $0xbd8] sm:$0xff]
        %v1604 = vld [vmem:[%s166 + $0xbe0] sm:$0xff]
        %v1605 = vld [vmem:[%s166 + $0xbe8] sm:$0xff]
        %v1606 = vld [vmem:[%s166 + $0xbf0] sm:$0xff]
        %v1607 = vld [vmem:[%s166 + $0xbf8] sm:$0xff]
        %v1608 = vld [vmem:[%s166 + $0xc00] sm:$0xff]
        %v1609 = vld [vmem:[%s166 + $0xc08] sm:$0xff]
        %v1610 = vld [vmem:[%s166 + $0xc10] sm:$0xff]
        %v1611 = vld [vmem:[%s166 + $0xc18] sm:$0xff]
        %v1612 = vld [vmem:[%s166 + $0xc20] sm:$0xff]
        %v1613 = vld [vmem:[%s166 + $0xc28] sm:$0xff]
        %v1614 = vld [vmem:[%s166 + $0xc30] sm:$0xff]
        %v1615 = vld [vmem:[%s166 + $0xc38] sm:$0xff]
        %v1616 = vld [vmem:[%s166 + $0xc40] sm:$0xff]
        %v1617 = vld [vmem:[%s166 + $0xc48] sm:$0xff]
        %v1618 = vld [vmem:[%s166 + $0xc50] sm:$0xff]
        %v1619 = vld [vmem:[%s166 + $0xc58] sm:$0xff]
        %v1620 = vld [vmem:[%s166 + $0xc60] sm:$0xff]
        %v1621 = vld [vmem:[%s166 + $0xc68] sm:$0xff]
        %v1622 = vld [vmem:[%s166 + $0xc70] sm:$0xff]
        %v1623 = vld [vmem:[%s166 + $0xc78] sm:$0xff]
        %v1624 = vld [vmem:[%s166 + $0xc80] sm:$0xff]
        %v1625 = vld [vmem:[%s166 + $0xc88] sm:$0xff]
        %v1626 = vld [vmem:[%s166 + $0xc90] sm:$0xff]
        %v1627 = vld [vmem:[%s166 + $0xc98] sm:$0xff]
        %v1628 = vld [vmem:[%s166 + $0xca0] sm:$0xff]
        %v1629 = vld [vmem:[%s166 + $0xca8] sm:$0xff]
        %v1630 = vld [vmem:[%s166 + $0xcb0] sm:$0xff]
        %v1631 = vld [vmem:[%s166 + $0xcb8] sm:$0xff]
        %v1632 = vld [vmem:[%s166 + $0xcc0] sm:$0xff]
        %v1633 = vld [vmem:[%s166 + $0xcc8] sm:$0xff]
        %v1634 = vld [vmem:[%s166 + $0xcd0] sm:$0xff]
        %v1635 = vld [vmem:[%s166 + $0xcd8] sm:$0xff]
        %v1636 = vld [vmem:[%s166 + $0xce0] sm:$0xff]
        %v1637 = vld [vmem:[%s166 + $0xce8] sm:$0xff]
        %v1638 = vld [vmem:[%s166 + $0xcf0] sm:$0xff]
        %v1639 = vld [vmem:[%s166 + $0xcf8] sm:$0xff]
        %v1640 = vld [vmem:[%s166 + $0xd00] sm:$0xff]
        %v1641 = vld [vmem:[%s166 + $0xd08] sm:$0xff]
        %v1642 = vld [vmem:[%s166 + $0xd10] sm:$0xff]
        %v1643 = vld [vmem:[%s166 + $0xd18] sm:$0xff]
        %v1644 = vld [vmem:[%s166 + $0xd20] sm:$0xff]
        %v1645 = vld [vmem:[%s166 + $0xd28] sm:$0xff]
        %v1646 = vld [vmem:[%s166 + $0xd30] sm:$0xff]
        %v1647 = vld [vmem:[%s166 + $0xd38] sm:$0xff]
        %v1648 = vld [vmem:[%s166 + $0xd40] sm:$0xff]
        %v1649 = vld [vmem:[%s166 + $0xd48] sm:$0xff]
        %v1650 = vld [vmem:[%s166 + $0xd50] sm:$0xff]
        %v1651 = vld [vmem:[%s166 + $0xd58] sm:$0xff]
        %v1652 = vld [vmem:[%s166 + $0xd60] sm:$0xff]
        %v1653 = vld [vmem:[%s166 + $0xd68] sm:$0xff]
        %v1654 = vld [vmem:[%s166 + $0xd70] sm:$0xff]
        %v1655 = vld [vmem:[%s166 + $0xd78] sm:$0xff]
        %v1656 = vld [vmem:[%s166 + $0xd80] sm:$0xff]
        %v1657 = vld [vmem:[%s166 + $0xd88] sm:$0xff]
        %v1658 = vld [vmem:[%s166 + $0xd90] sm:$0xff]
        %v1659 = vld [vmem:[%s166 + $0xd98] sm:$0xff]
        %v1660 = vld [vmem:[%s166 + $0xda0] sm:$0xff]
        %v1661 = vld [vmem:[%s166 + $0xda8] sm:$0xff]
        %v1662 = vld [vmem:[%s166 + $0xdb0] sm:$0xff]
        %v1663 = vld [vmem:[%s166 + $0xdb8] sm:$0xff]
        %v1664 = vld [vmem:[%s166 + $0xdc0] sm:$0xff]
        %v1665 = vld [vmem:[%s166 + $0xdc8] sm:$0xff]
        %v1666 = vld [vmem:[%s166 + $0xdd0] sm:$0xff]
        %v1667 = vld [vmem:[%s166 + $0xdd8] sm:$0xff]
        %v1668 = vld [vmem:[%s166 + $0xde0] sm:$0xff]
        %v1669 = vld [vmem:[%s166 + $0xde8] sm:$0xff]
        %v1670 = vld [vmem:[%s166 + $0xdf0] sm:$0xff]
        %v1671 = vld [vmem:[%s166 + $0xdf8] sm:$0xff]
        %v1672 = vld [vmem:[%s166 + $0xe00] sm:$0xff]
        %v1673 = vld [vmem:[%s166 + $0xe08] sm:$0xff]
        %v1674 = vld [vmem:[%s166 + $0xe10] sm:$0xff]
        %v1675 = vld [vmem:[%s166 + $0xe18] sm:$0xff]
        %v1676 = vld [vmem:[%s166 + $0xe20] sm:$0xff]
        %v1677 = vld [vmem:[%s166 + $0xe28] sm:$0xff]
        %v1678 = vld [vmem:[%s166 + $0xe30] sm:$0xff]
        %v1679 = vld [vmem:[%s166 + $0xe38] sm:$0xff]
        %v1680 = vld [vmem:[%s166 + $0xe40] sm:$0xff]
        %v1681 = vld [vmem:[%s166 + $0xe48] sm:$0xff]
        %v1682 = vld [vmem:[%s166 + $0xe50] sm:$0xff]
        %v1683 = vld [vmem:[%s166 + $0xe58] sm:$0xff]
        %v1684 = vld [vmem:[%s166 + $0xe60] sm:$0xff]
        %v1685 = vld [vmem:[%s166 + $0xe68] sm:$0xff]
        %v1686 = vld [vmem:[%s166 + $0xe70] sm:$0xff]
        %v1687 = vld [vmem:[%s166 + $0xe78] sm:$0xff]
        %v1688 = vld [vmem:[%s166 + $0xe80] sm:$0xff]
        %v1689 = vld [vmem:[%s166 + $0xe88] sm:$0xff]
        %v1690 = vld [vmem:[%s166 + $0xe90] sm:$0xff]
        %v1691 = vld [vmem:[%s166 + $0xe98] sm:$0xff]
        %v1692 = vld [vmem:[%s166 + $0xea0] sm:$0xff]
        %v1693 = vld [vmem:[%s166 + $0xea8] sm:$0xff]
        %v1694 = vld [vmem:[%s166 + $0xeb0] sm:$0xff]
        %v1695 = vld [vmem:[%s166 + $0xeb8] sm:$0xff]
        %v1696 = vld [vmem:[%s166 + $0xec0] sm:$0xff]
        %v1697 = vld [vmem:[%s166 + $0xec8] sm:$0xff]
        %v1698 = vld [vmem:[%s166 + $0xed0] sm:$0xff]
        %v1699 = vld [vmem:[%s166 + $0xed8] sm:$0xff]
        %v1700 = vld [vmem:[%s166 + $0xee0] sm:$0xff]
        %v1701 = vld [vmem:[%s166 + $0xee8] sm:$0xff]
        %v1702 = vld [vmem:[%s166 + $0xef0] sm:$0xff]
        %v1703 = vld [vmem:[%s166 + $0xef8] sm:$0xff]
        %v1704 = vld [vmem:[%s166 + $0xf00] sm:$0xff]
        %v1705 = vld [vmem:[%s166 + $0xf08] sm:$0xff]
        %v1706 = vld [vmem:[%s166 + $0xf10] sm:$0xff]
        %v1707 = vld [vmem:[%s166 + $0xf18] sm:$0xff]
        %v1708 = vld [vmem:[%s166 + $0xf20] sm:$0xff]
        %v1709 = vld [vmem:[%s166 + $0xf28] sm:$0xff]
        %v1710 = vld [vmem:[%s166 + $0xf30] sm:$0xff]
        %v1711 = vld [vmem:[%s166 + $0xf38] sm:$0xff]
        %v1712 = vld [vmem:[%s166 + $0xf40] sm:$0xff]
        %v1713 = vld [vmem:[%s166 + $0xf48] sm:$0xff]
        %v1714 = vld [vmem:[%s166 + $0xf50] sm:$0xff]
        %v1715 = vld [vmem:[%s166 + $0xf58] sm:$0xff]
        %v1716 = vld [vmem:[%s166 + $0xf60] sm:$0xff]
        %v1717 = vld [vmem:[%s166 + $0xf68] sm:$0xff]
        %v1718 = vld [vmem:[%s166 + $0xf70] sm:$0xff]
        %v1719 = vld [vmem:[%s166 + $0xf78] sm:$0xff]
        %v1720 = vld [vmem:[%s166 + $0xf80] sm:$0xff]
        %v1721 = vld [vmem:[%s166 + $0xf88] sm:$0xff]
        %v1722 = vld [vmem:[%s166 + $0xf90] sm:$0xff]
        %v1723 = vld [vmem:[%s166 + $0xf98] sm:$0xff]
        %v1724 = vld [vmem:[%s166 + $0xfa0] sm:$0xff]
        %v1725 = vld [vmem:[%s166 + $0xfa8] sm:$0xff]
        %v1726 = vld [vmem:[%s166 + $0xfb0] sm:$0xff]
        %v1727 = vld [vmem:[%s166 + $0xfb8] sm:$0xff]
        %v1728 = vld [vmem:[%s166 + $0xfc0] sm:$0xff]
        %v1729 = vld [vmem:[%s166 + $0xfc8] sm:$0xff]
        %v1730 = vld [vmem:[%s166 + $0xfd0] sm:$0xff]
        %v1731 = vld [vmem:[%s166 + $0xfd8] sm:$0xff]
        %v1732 = vld [vmem:[%s166 + $0xfe0] sm:$0xff]
        %v1733 = vld [vmem:[%s166 + $0xfe8] sm:$0xff]
        %v1734 = vld [vmem:[%s166 + $0xff0] sm:$0xff]
        %v1735 = vld [vmem:[%s166 + $0xff8] sm:$0xff]
        %v1736 = vld [vmem:[%s194] sm:$0xff]
        %1737 = vset.pattern.permute.xlu0 0
        %1738 = vperm.xlu0 %1737, %v1736
        %v1739 = vpop.permute.xlu0 %1738
        %vm1740 = vcmp.lt.s32.totalorder %v712, %v1739
        %vm1741 = vcmp.lt.s32.totalorder %v713, %v1739
        %vm1742 = vcmp.lt.s32.totalorder %v714, %v1739
        %vm1743 = vcmp.lt.s32.totalorder %v715, %v1739
        %vm1744 = vcmp.lt.s32.totalorder %v716, %v1739
        %vm1745 = vcmp.lt.s32.totalorder %v717, %v1739
        %vm1746 = vcmp.lt.s32.totalorder %v718, %v1739
        %vm1747 = vcmp.lt.s32.totalorder %v719, %v1739
        %vm1748 = vcmp.lt.s32.totalorder %v720, %v1739
        %vm1749 = vcmp.lt.s32.totalorder %v721, %v1739
        %vm1750 = vcmp.lt.s32.totalorder %v722, %v1739
        %vm1751 = vcmp.lt.s32.totalorder %v723, %v1739
        %vm1752 = vcmp.lt.s32.totalorder %v724, %v1739
        %vm1753 = vcmp.lt.s32.totalorder %v725, %v1739
        %vm1754 = vcmp.lt.s32.totalorder %v726, %v1739
        %vm1755 = vcmp.lt.s32.totalorder %v727, %v1739
        %vm1756 = vcmp.lt.s32.totalorder %v728, %v1739
        %vm1757 = vcmp.lt.s32.totalorder %v729, %v1739
        %vm1758 = vcmp.lt.s32.totalorder %v730, %v1739
        %vm1759 = vcmp.lt.s32.totalorder %v731, %v1739
        %vm1760 = vcmp.lt.s32.totalorder %v732, %v1739
        %vm1761 = vcmp.lt.s32.totalorder %v733, %v1739
        %vm1762 = vcmp.lt.s32.totalorder %v734, %v1739
        %vm1763 = vcmp.lt.s32.totalorder %v735, %v1739
        %vm1764 = vcmp.lt.s32.totalorder %v736, %v1739
        %vm1765 = vcmp.lt.s32.totalorder %v737, %v1739
        %vm1766 = vcmp.lt.s32.totalorder %v738, %v1739
        %vm1767 = vcmp.lt.s32.totalorder %v739, %v1739
        %vm1768 = vcmp.lt.s32.totalorder %v740, %v1739
        %vm1769 = vcmp.lt.s32.totalorder %v741, %v1739
        %vm1770 = vcmp.lt.s32.totalorder %v742, %v1739
        %vm1771 = vcmp.lt.s32.totalorder %v743, %v1739
        %vm1772 = vcmp.lt.s32.totalorder %v744, %v1739
        %vm1773 = vcmp.lt.s32.totalorder %v745, %v1739
        %vm1774 = vcmp.lt.s32.totalorder %v746, %v1739
        %vm1775 = vcmp.lt.s32.totalorder %v747, %v1739
        %vm1776 = vcmp.lt.s32.totalorder %v748, %v1739
        %vm1777 = vcmp.lt.s32.totalorder %v749, %v1739
        %vm1778 = vcmp.lt.s32.totalorder %v750, %v1739
        %vm1779 = vcmp.lt.s32.totalorder %v751, %v1739
        %vm1780 = vcmp.lt.s32.totalorder %v752, %v1739
        %vm1781 = vcmp.lt.s32.totalorder %v753, %v1739
        %vm1782 = vcmp.lt.s32.totalorder %v754, %v1739
        %vm1783 = vcmp.lt.s32.totalorder %v755, %v1739
        %vm1784 = vcmp.lt.s32.totalorder %v756, %v1739
        %vm1785 = vcmp.lt.s32.totalorder %v757, %v1739
        %vm1786 = vcmp.lt.s32.totalorder %v758, %v1739
        %vm1787 = vcmp.lt.s32.totalorder %v759, %v1739
        %vm1788 = vcmp.lt.s32.totalorder %v760, %v1739
        %vm1789 = vcmp.lt.s32.totalorder %v761, %v1739
        %vm1790 = vcmp.lt.s32.totalorder %v762, %v1739
        %vm1791 = vcmp.lt.s32.totalorder %v763, %v1739
        %vm1792 = vcmp.lt.s32.totalorder %v764, %v1739
        %vm1793 = vcmp.lt.s32.totalorder %v765, %v1739
        %vm1794 = vcmp.lt.s32.totalorder %v766, %v1739
        %vm1795 = vcmp.lt.s32.totalorder %v767, %v1739
        %vm1796 = vcmp.lt.s32.totalorder %v768, %v1739
        %vm1797 = vcmp.lt.s32.totalorder %v769, %v1739
        %vm1798 = vcmp.lt.s32.totalorder %v770, %v1739
        %vm1799 = vcmp.lt.s32.totalorder %v771, %v1739
        %vm1800 = vcmp.lt.s32.totalorder %v772, %v1739
        %vm1801 = vcmp.lt.s32.totalorder %v773, %v1739
        %vm1802 = vcmp.lt.s32.totalorder %v774, %v1739
        %vm1803 = vcmp.lt.s32.totalorder %v775, %v1739
        %vm1804 = vcmp.lt.s32.totalorder %v776, %v1739
        %vm1805 = vcmp.lt.s32.totalorder %v777, %v1739
        %vm1806 = vcmp.lt.s32.totalorder %v778, %v1739
        %vm1807 = vcmp.lt.s32.totalorder %v779, %v1739
        %vm1808 = vcmp.lt.s32.totalorder %v780, %v1739
        %vm1809 = vcmp.lt.s32.totalorder %v781, %v1739
        %vm1810 = vcmp.lt.s32.totalorder %v782, %v1739
        %vm1811 = vcmp.lt.s32.totalorder %v783, %v1739
        %vm1812 = vcmp.lt.s32.totalorder %v784, %v1739
        %vm1813 = vcmp.lt.s32.totalorder %v785, %v1739
        %vm1814 = vcmp.lt.s32.totalorder %v786, %v1739
        %vm1815 = vcmp.lt.s32.totalorder %v787, %v1739
        %vm1816 = vcmp.lt.s32.totalorder %v788, %v1739
        %vm1817 = vcmp.lt.s32.totalorder %v789, %v1739
        %vm1818 = vcmp.lt.s32.totalorder %v790, %v1739
        %vm1819 = vcmp.lt.s32.totalorder %v791, %v1739
        %vm1820 = vcmp.lt.s32.totalorder %v792, %v1739
        %vm1821 = vcmp.lt.s32.totalorder %v793, %v1739
        %vm1822 = vcmp.lt.s32.totalorder %v794, %v1739
        %vm1823 = vcmp.lt.s32.totalorder %v795, %v1739
        %vm1824 = vcmp.lt.s32.totalorder %v796, %v1739
        %vm1825 = vcmp.lt.s32.totalorder %v797, %v1739
        %vm1826 = vcmp.lt.s32.totalorder %v798, %v1739
        %vm1827 = vcmp.lt.s32.totalorder %v799, %v1739
        %vm1828 = vcmp.lt.s32.totalorder %v800, %v1739
        %vm1829 = vcmp.lt.s32.totalorder %v801, %v1739
        %vm1830 = vcmp.lt.s32.totalorder %v802, %v1739
        %vm1831 = vcmp.lt.s32.totalorder %v803, %v1739
        %vm1832 = vcmp.lt.s32.totalorder %v804, %v1739
        %vm1833 = vcmp.lt.s32.totalorder %v805, %v1739
        %vm1834 = vcmp.lt.s32.totalorder %v806, %v1739
        %vm1835 = vcmp.lt.s32.totalorder %v807, %v1739
        %vm1836 = vcmp.lt.s32.totalorder %v808, %v1739
        %vm1837 = vcmp.lt.s32.totalorder %v809, %v1739
        %vm1838 = vcmp.lt.s32.totalorder %v810, %v1739
        %vm1839 = vcmp.lt.s32.totalorder %v811, %v1739
        %vm1840 = vcmp.lt.s32.totalorder %v812, %v1739
        %vm1841 = vcmp.lt.s32.totalorder %v813, %v1739
        %vm1842 = vcmp.lt.s32.totalorder %v814, %v1739
        %vm1843 = vcmp.lt.s32.totalorder %v815, %v1739
        %vm1844 = vcmp.lt.s32.totalorder %v816, %v1739
        %vm1845 = vcmp.lt.s32.totalorder %v817, %v1739
        %vm1846 = vcmp.lt.s32.totalorder %v818, %v1739
        %vm1847 = vcmp.lt.s32.totalorder %v819, %v1739
        %vm1848 = vcmp.lt.s32.totalorder %v820, %v1739
        %vm1849 = vcmp.lt.s32.totalorder %v821, %v1739
        %vm1850 = vcmp.lt.s32.totalorder %v822, %v1739
        %vm1851 = vcmp.lt.s32.totalorder %v823, %v1739
        %vm1852 = vcmp.lt.s32.totalorder %v824, %v1739
        %vm1853 = vcmp.lt.s32.totalorder %v825, %v1739
        %vm1854 = vcmp.lt.s32.totalorder %v826, %v1739
        %vm1855 = vcmp.lt.s32.totalorder %v827, %v1739
        %vm1856 = vcmp.lt.s32.totalorder %v828, %v1739
        %vm1857 = vcmp.lt.s32.totalorder %v829, %v1739
        %vm1858 = vcmp.lt.s32.totalorder %v830, %v1739
        %vm1859 = vcmp.lt.s32.totalorder %v831, %v1739
        %vm1860 = vcmp.lt.s32.totalorder %v832, %v1739
        %vm1861 = vcmp.lt.s32.totalorder %v833, %v1739
        %vm1862 = vcmp.lt.s32.totalorder %v834, %v1739
        %vm1863 = vcmp.lt.s32.totalorder %v835, %v1739
        %vm1864 = vcmp.lt.s32.totalorder %v836, %v1739
        %vm1865 = vcmp.lt.s32.totalorder %v837, %v1739
        %vm1866 = vcmp.lt.s32.totalorder %v838, %v1739
        %vm1867 = vcmp.lt.s32.totalorder %v839, %v1739
        %vm1868 = vcmp.lt.s32.totalorder %v840, %v1739
        %vm1869 = vcmp.lt.s32.totalorder %v841, %v1739
        %vm1870 = vcmp.lt.s32.totalorder %v842, %v1739
        %vm1871 = vcmp.lt.s32.totalorder %v843, %v1739
        %vm1872 = vcmp.lt.s32.totalorder %v844, %v1739
        %vm1873 = vcmp.lt.s32.totalorder %v845, %v1739
        %vm1874 = vcmp.lt.s32.totalorder %v846, %v1739
        %vm1875 = vcmp.lt.s32.totalorder %v847, %v1739
        %vm1876 = vcmp.lt.s32.totalorder %v848, %v1739
        %vm1877 = vcmp.lt.s32.totalorder %v849, %v1739
        %vm1878 = vcmp.lt.s32.totalorder %v850, %v1739
        %vm1879 = vcmp.lt.s32.totalorder %v851, %v1739
        %vm1880 = vcmp.lt.s32.totalorder %v852, %v1739
        %vm1881 = vcmp.lt.s32.totalorder %v853, %v1739
        %vm1882 = vcmp.lt.s32.totalorder %v854, %v1739
        %vm1883 = vcmp.lt.s32.totalorder %v855, %v1739
        %vm1884 = vcmp.lt.s32.totalorder %v856, %v1739
        %vm1885 = vcmp.lt.s32.totalorder %v857, %v1739
        %vm1886 = vcmp.lt.s32.totalorder %v858, %v1739
        %vm1887 = vcmp.lt.s32.totalorder %v859, %v1739
        %vm1888 = vcmp.lt.s32.totalorder %v860, %v1739
        %vm1889 = vcmp.lt.s32.totalorder %v861, %v1739
        %vm1890 = vcmp.lt.s32.totalorder %v862, %v1739
        %vm1891 = vcmp.lt.s32.totalorder %v863, %v1739
        %vm1892 = vcmp.lt.s32.totalorder %v864, %v1739
        %vm1893 = vcmp.lt.s32.totalorder %v865, %v1739
        %vm1894 = vcmp.lt.s32.totalorder %v866, %v1739
        %vm1895 = vcmp.lt.s32.totalorder %v867, %v1739
        %vm1896 = vcmp.lt.s32.totalorder %v868, %v1739
        %vm1897 = vcmp.lt.s32.totalorder %v869, %v1739
        %vm1898 = vcmp.lt.s32.totalorder %v870, %v1739
        %vm1899 = vcmp.lt.s32.totalorder %v871, %v1739
        %vm1900 = vcmp.lt.s32.totalorder %v872, %v1739
        %vm1901 = vcmp.lt.s32.totalorder %v873, %v1739
        %vm1902 = vcmp.lt.s32.totalorder %v874, %v1739
        %vm1903 = vcmp.lt.s32.totalorder %v875, %v1739
        %vm1904 = vcmp.lt.s32.totalorder %v876, %v1739
        %vm1905 = vcmp.lt.s32.totalorder %v877, %v1739
        %vm1906 = vcmp.lt.s32.totalorder %v878, %v1739
        %vm1907 = vcmp.lt.s32.totalorder %v879, %v1739
        %vm1908 = vcmp.lt.s32.totalorder %v880, %v1739
        %vm1909 = vcmp.lt.s32.totalorder %v881, %v1739
        %vm1910 = vcmp.lt.s32.totalorder %v882, %v1739
        %vm1911 = vcmp.lt.s32.totalorder %v883, %v1739
        %vm1912 = vcmp.lt.s32.totalorder %v884, %v1739
        %vm1913 = vcmp.lt.s32.totalorder %v885, %v1739
        %vm1914 = vcmp.lt.s32.totalorder %v886, %v1739
        %vm1915 = vcmp.lt.s32.totalorder %v887, %v1739
        %vm1916 = vcmp.lt.s32.totalorder %v888, %v1739
        %vm1917 = vcmp.lt.s32.totalorder %v889, %v1739
        %vm1918 = vcmp.lt.s32.totalorder %v890, %v1739
        %vm1919 = vcmp.lt.s32.totalorder %v891, %v1739
        %vm1920 = vcmp.lt.s32.totalorder %v892, %v1739
        %vm1921 = vcmp.lt.s32.totalorder %v893, %v1739
        %vm1922 = vcmp.lt.s32.totalorder %v894, %v1739
        %vm1923 = vcmp.lt.s32.totalorder %v895, %v1739
        %vm1924 = vcmp.lt.s32.totalorder %v896, %v1739
        %vm1925 = vcmp.lt.s32.totalorder %v897, %v1739
        %vm1926 = vcmp.lt.s32.totalorder %v898, %v1739
        %vm1927 = vcmp.lt.s32.totalorder %v899, %v1739
        %vm1928 = vcmp.lt.s32.totalorder %v900, %v1739
        %vm1929 = vcmp.lt.s32.totalorder %v901, %v1739
        %vm1930 = vcmp.lt.s32.totalorder %v902, %v1739
        %vm1931 = vcmp.lt.s32.totalorder %v903, %v1739
        %vm1932 = vcmp.lt.s32.totalorder %v904, %v1739
        %vm1933 = vcmp.lt.s32.totalorder %v905, %v1739
        %vm1934 = vcmp.lt.s32.totalorder %v906, %v1739
        %vm1935 = vcmp.lt.s32.totalorder %v907, %v1739
        %vm1936 = vcmp.lt.s32.totalorder %v908, %v1739
        %vm1937 = vcmp.lt.s32.totalorder %v909, %v1739
        %vm1938 = vcmp.lt.s32.totalorder %v910, %v1739
        %vm1939 = vcmp.lt.s32.totalorder %v911, %v1739
        %vm1940 = vcmp.lt.s32.totalorder %v912, %v1739
        %vm1941 = vcmp.lt.s32.totalorder %v913, %v1739
        %vm1942 = vcmp.lt.s32.totalorder %v914, %v1739
        %vm1943 = vcmp.lt.s32.totalorder %v915, %v1739
        %vm1944 = vcmp.lt.s32.totalorder %v916, %v1739
        %vm1945 = vcmp.lt.s32.totalorder %v917, %v1739
        %vm1946 = vcmp.lt.s32.totalorder %v918, %v1739
        %vm1947 = vcmp.lt.s32.totalorder %v919, %v1739
        %vm1948 = vcmp.lt.s32.totalorder %v920, %v1739
        %vm1949 = vcmp.lt.s32.totalorder %v921, %v1739
        %vm1950 = vcmp.lt.s32.totalorder %v922, %v1739
        %vm1951 = vcmp.lt.s32.totalorder %v923, %v1739
        %vm1952 = vcmp.lt.s32.totalorder %v924, %v1739
        %vm1953 = vcmp.lt.s32.totalorder %v925, %v1739
        %vm1954 = vcmp.lt.s32.totalorder %v926, %v1739
        %vm1955 = vcmp.lt.s32.totalorder %v927, %v1739
        %vm1956 = vcmp.lt.s32.totalorder %v928, %v1739
        %vm1957 = vcmp.lt.s32.totalorder %v929, %v1739
        %vm1958 = vcmp.lt.s32.totalorder %v930, %v1739
        %vm1959 = vcmp.lt.s32.totalorder %v931, %v1739
        %vm1960 = vcmp.lt.s32.totalorder %v932, %v1739
        %vm1961 = vcmp.lt.s32.totalorder %v933, %v1739
        %vm1962 = vcmp.lt.s32.totalorder %v934, %v1739
        %vm1963 = vcmp.lt.s32.totalorder %v935, %v1739
        %vm1964 = vcmp.lt.s32.totalorder %v936, %v1739
        %vm1965 = vcmp.lt.s32.totalorder %v937, %v1739
        %vm1966 = vcmp.lt.s32.totalorder %v938, %v1739
        %vm1967 = vcmp.lt.s32.totalorder %v939, %v1739
        %vm1968 = vcmp.lt.s32.totalorder %v940, %v1739
        %vm1969 = vcmp.lt.s32.totalorder %v941, %v1739
        %vm1970 = vcmp.lt.s32.totalorder %v942, %v1739
        %vm1971 = vcmp.lt.s32.totalorder %v943, %v1739
        %vm1972 = vcmp.lt.s32.totalorder %v944, %v1739
        %vm1973 = vcmp.lt.s32.totalorder %v945, %v1739
        %vm1974 = vcmp.lt.s32.totalorder %v946, %v1739
        %vm1975 = vcmp.lt.s32.totalorder %v947, %v1739
        %vm1976 = vcmp.lt.s32.totalorder %v948, %v1739
        %vm1977 = vcmp.lt.s32.totalorder %v949, %v1739
        %vm1978 = vcmp.lt.s32.totalorder %v950, %v1739
        %vm1979 = vcmp.lt.s32.totalorder %v951, %v1739
        %vm1980 = vcmp.lt.s32.totalorder %v952, %v1739
        %vm1981 = vcmp.lt.s32.totalorder %v953, %v1739
        %vm1982 = vcmp.lt.s32.totalorder %v954, %v1739
        %vm1983 = vcmp.lt.s32.totalorder %v955, %v1739
        %vm1984 = vcmp.lt.s32.totalorder %v956, %v1739
        %vm1985 = vcmp.lt.s32.totalorder %v957, %v1739
        %vm1986 = vcmp.lt.s32.totalorder %v958, %v1739
        %vm1987 = vcmp.lt.s32.totalorder %v959, %v1739
        %vm1988 = vcmp.lt.s32.totalorder %v960, %v1739
        %vm1989 = vcmp.lt.s32.totalorder %v961, %v1739
        %vm1990 = vcmp.lt.s32.totalorder %v962, %v1739
        %vm1991 = vcmp.lt.s32.totalorder %v963, %v1739
        %vm1992 = vcmp.lt.s32.totalorder %v964, %v1739
        %vm1993 = vcmp.lt.s32.totalorder %v965, %v1739
        %vm1994 = vcmp.lt.s32.totalorder %v966, %v1739
        %vm1995 = vcmp.lt.s32.totalorder %v967, %v1739
        %vm1996 = vcmp.lt.s32.totalorder %v968, %v1739
        %vm1997 = vcmp.lt.s32.totalorder %v969, %v1739
        %vm1998 = vcmp.lt.s32.totalorder %v970, %v1739
        %vm1999 = vcmp.lt.s32.totalorder %v971, %v1739
        %vm2000 = vcmp.lt.s32.totalorder %v972, %v1739
        %vm2001 = vcmp.lt.s32.totalorder %v973, %v1739
        %vm2002 = vcmp.lt.s32.totalorder %v974, %v1739
        %vm2003 = vcmp.lt.s32.totalorder %v975, %v1739
        %vm2004 = vcmp.lt.s32.totalorder %v976, %v1739
        %vm2005 = vcmp.lt.s32.totalorder %v977, %v1739
        %vm2006 = vcmp.lt.s32.totalorder %v978, %v1739
        %vm2007 = vcmp.lt.s32.totalorder %v979, %v1739
        %vm2008 = vcmp.lt.s32.totalorder %v980, %v1739
        %vm2009 = vcmp.lt.s32.totalorder %v981, %v1739
        %vm2010 = vcmp.lt.s32.totalorder %v982, %v1739
        %vm2011 = vcmp.lt.s32.totalorder %v983, %v1739
        %vm2012 = vcmp.lt.s32.totalorder %v984, %v1739
        %vm2013 = vcmp.lt.s32.totalorder %v985, %v1739
        %vm2014 = vcmp.lt.s32.totalorder %v986, %v1739
        %vm2015 = vcmp.lt.s32.totalorder %v987, %v1739
        %vm2016 = vcmp.lt.s32.totalorder %v988, %v1739
        %vm2017 = vcmp.lt.s32.totalorder %v989, %v1739
        %vm2018 = vcmp.lt.s32.totalorder %v990, %v1739
        %vm2019 = vcmp.lt.s32.totalorder %v991, %v1739
        %vm2020 = vcmp.lt.s32.totalorder %v992, %v1739
        %vm2021 = vcmp.lt.s32.totalorder %v993, %v1739
        %vm2022 = vcmp.lt.s32.totalorder %v994, %v1739
        %vm2023 = vcmp.lt.s32.totalorder %v995, %v1739
        %vm2024 = vcmp.lt.s32.totalorder %v996, %v1739
        %vm2025 = vcmp.lt.s32.totalorder %v997, %v1739
        %vm2026 = vcmp.lt.s32.totalorder %v998, %v1739
        %vm2027 = vcmp.lt.s32.totalorder %v999, %v1739
        %vm2028 = vcmp.lt.s32.totalorder %v1000, %v1739
        %vm2029 = vcmp.lt.s32.totalorder %v1001, %v1739
        %vm2030 = vcmp.lt.s32.totalorder %v1002, %v1739
        %vm2031 = vcmp.lt.s32.totalorder %v1003, %v1739
        %vm2032 = vcmp.lt.s32.totalorder %v1004, %v1739
        %vm2033 = vcmp.lt.s32.totalorder %v1005, %v1739
        %vm2034 = vcmp.lt.s32.totalorder %v1006, %v1739
        %vm2035 = vcmp.lt.s32.totalorder %v1007, %v1739
        %vm2036 = vcmp.lt.s32.totalorder %v1008, %v1739
        %vm2037 = vcmp.lt.s32.totalorder %v1009, %v1739
        %vm2038 = vcmp.lt.s32.totalorder %v1010, %v1739
        %vm2039 = vcmp.lt.s32.totalorder %v1011, %v1739
        %vm2040 = vcmp.lt.s32.totalorder %v1012, %v1739
        %vm2041 = vcmp.lt.s32.totalorder %v1013, %v1739
        %vm2042 = vcmp.lt.s32.totalorder %v1014, %v1739
        %vm2043 = vcmp.lt.s32.totalorder %v1015, %v1739
        %vm2044 = vcmp.lt.s32.totalorder %v1016, %v1739
        %vm2045 = vcmp.lt.s32.totalorder %v1017, %v1739
        %vm2046 = vcmp.lt.s32.totalorder %v1018, %v1739
        %vm2047 = vcmp.lt.s32.totalorder %v1019, %v1739
        %vm2048 = vcmp.lt.s32.totalorder %v1020, %v1739
        %vm2049 = vcmp.lt.s32.totalorder %v1021, %v1739
        %vm2050 = vcmp.lt.s32.totalorder %v1022, %v1739
        %vm2051 = vcmp.lt.s32.totalorder %v1023, %v1739
        %vm2052 = vcmp.lt.s32.totalorder %v1024, %v1739
        %vm2053 = vcmp.lt.s32.totalorder %v1025, %v1739
        %vm2054 = vcmp.lt.s32.totalorder %v1026, %v1739
        %vm2055 = vcmp.lt.s32.totalorder %v1027, %v1739
        %vm2056 = vcmp.lt.s32.totalorder %v1028, %v1739
        %vm2057 = vcmp.lt.s32.totalorder %v1029, %v1739
        %vm2058 = vcmp.lt.s32.totalorder %v1030, %v1739
        %vm2059 = vcmp.lt.s32.totalorder %v1031, %v1739
        %vm2060 = vcmp.lt.s32.totalorder %v1032, %v1739
        %vm2061 = vcmp.lt.s32.totalorder %v1033, %v1739
        %vm2062 = vcmp.lt.s32.totalorder %v1034, %v1739
        %vm2063 = vcmp.lt.s32.totalorder %v1035, %v1739
        %vm2064 = vcmp.lt.s32.totalorder %v1036, %v1739
        %vm2065 = vcmp.lt.s32.totalorder %v1037, %v1739
        %vm2066 = vcmp.lt.s32.totalorder %v1038, %v1739
        %vm2067 = vcmp.lt.s32.totalorder %v1039, %v1739
        %vm2068 = vcmp.lt.s32.totalorder %v1040, %v1739
        %vm2069 = vcmp.lt.s32.totalorder %v1041, %v1739
        %vm2070 = vcmp.lt.s32.totalorder %v1042, %v1739
        %vm2071 = vcmp.lt.s32.totalorder %v1043, %v1739
        %vm2072 = vcmp.lt.s32.totalorder %v1044, %v1739
        %vm2073 = vcmp.lt.s32.totalorder %v1045, %v1739
        %vm2074 = vcmp.lt.s32.totalorder %v1046, %v1739
        %vm2075 = vcmp.lt.s32.totalorder %v1047, %v1739
        %vm2076 = vcmp.lt.s32.totalorder %v1048, %v1739
        %vm2077 = vcmp.lt.s32.totalorder %v1049, %v1739
        %vm2078 = vcmp.lt.s32.totalorder %v1050, %v1739
        %vm2079 = vcmp.lt.s32.totalorder %v1051, %v1739
        %vm2080 = vcmp.lt.s32.totalorder %v1052, %v1739
        %vm2081 = vcmp.lt.s32.totalorder %v1053, %v1739
        %vm2082 = vcmp.lt.s32.totalorder %v1054, %v1739
        %vm2083 = vcmp.lt.s32.totalorder %v1055, %v1739
        %vm2084 = vcmp.lt.s32.totalorder %v1056, %v1739
        %vm2085 = vcmp.lt.s32.totalorder %v1057, %v1739
        %vm2086 = vcmp.lt.s32.totalorder %v1058, %v1739
        %vm2087 = vcmp.lt.s32.totalorder %v1059, %v1739
        %vm2088 = vcmp.lt.s32.totalorder %v1060, %v1739
        %vm2089 = vcmp.lt.s32.totalorder %v1061, %v1739
        %vm2090 = vcmp.lt.s32.totalorder %v1062, %v1739
        %vm2091 = vcmp.lt.s32.totalorder %v1063, %v1739
        %vm2092 = vcmp.lt.s32.totalorder %v1064, %v1739
        %vm2093 = vcmp.lt.s32.totalorder %v1065, %v1739
        %vm2094 = vcmp.lt.s32.totalorder %v1066, %v1739
        %vm2095 = vcmp.lt.s32.totalorder %v1067, %v1739
        %vm2096 = vcmp.lt.s32.totalorder %v1068, %v1739
        %vm2097 = vcmp.lt.s32.totalorder %v1069, %v1739
        %vm2098 = vcmp.lt.s32.totalorder %v1070, %v1739
        %vm2099 = vcmp.lt.s32.totalorder %v1071, %v1739
        %vm2100 = vcmp.lt.s32.totalorder %v1072, %v1739
        %vm2101 = vcmp.lt.s32.totalorder %v1073, %v1739
        %vm2102 = vcmp.lt.s32.totalorder %v1074, %v1739
        %vm2103 = vcmp.lt.s32.totalorder %v1075, %v1739
        %vm2104 = vcmp.lt.s32.totalorder %v1076, %v1739
        %vm2105 = vcmp.lt.s32.totalorder %v1077, %v1739
        %vm2106 = vcmp.lt.s32.totalorder %v1078, %v1739
        %vm2107 = vcmp.lt.s32.totalorder %v1079, %v1739
        %vm2108 = vcmp.lt.s32.totalorder %v1080, %v1739
        %vm2109 = vcmp.lt.s32.totalorder %v1081, %v1739
        %vm2110 = vcmp.lt.s32.totalorder %v1082, %v1739
        %vm2111 = vcmp.lt.s32.totalorder %v1083, %v1739
        %vm2112 = vcmp.lt.s32.totalorder %v1084, %v1739
        %vm2113 = vcmp.lt.s32.totalorder %v1085, %v1739
        %vm2114 = vcmp.lt.s32.totalorder %v1086, %v1739
        %vm2115 = vcmp.lt.s32.totalorder %v1087, %v1739
        %vm2116 = vcmp.lt.s32.totalorder %v1088, %v1739
        %vm2117 = vcmp.lt.s32.totalorder %v1089, %v1739
        %vm2118 = vcmp.lt.s32.totalorder %v1090, %v1739
        %vm2119 = vcmp.lt.s32.totalorder %v1091, %v1739
        %vm2120 = vcmp.lt.s32.totalorder %v1092, %v1739
        %vm2121 = vcmp.lt.s32.totalorder %v1093, %v1739
        %vm2122 = vcmp.lt.s32.totalorder %v1094, %v1739
        %vm2123 = vcmp.lt.s32.totalorder %v1095, %v1739
        %vm2124 = vcmp.lt.s32.totalorder %v1096, %v1739
        %vm2125 = vcmp.lt.s32.totalorder %v1097, %v1739
        %vm2126 = vcmp.lt.s32.totalorder %v1098, %v1739
        %vm2127 = vcmp.lt.s32.totalorder %v1099, %v1739
        %vm2128 = vcmp.lt.s32.totalorder %v1100, %v1739
        %vm2129 = vcmp.lt.s32.totalorder %v1101, %v1739
        %vm2130 = vcmp.lt.s32.totalorder %v1102, %v1739
        %vm2131 = vcmp.lt.s32.totalorder %v1103, %v1739
        %vm2132 = vcmp.lt.s32.totalorder %v1104, %v1739
        %vm2133 = vcmp.lt.s32.totalorder %v1105, %v1739
        %vm2134 = vcmp.lt.s32.totalorder %v1106, %v1739
        %vm2135 = vcmp.lt.s32.totalorder %v1107, %v1739
        %vm2136 = vcmp.lt.s32.totalorder %v1108, %v1739
        %vm2137 = vcmp.lt.s32.totalorder %v1109, %v1739
        %vm2138 = vcmp.lt.s32.totalorder %v1110, %v1739
        %vm2139 = vcmp.lt.s32.totalorder %v1111, %v1739
        %vm2140 = vcmp.lt.s32.totalorder %v1112, %v1739
        %vm2141 = vcmp.lt.s32.totalorder %v1113, %v1739
        %vm2142 = vcmp.lt.s32.totalorder %v1114, %v1739
        %vm2143 = vcmp.lt.s32.totalorder %v1115, %v1739
        %vm2144 = vcmp.lt.s32.totalorder %v1116, %v1739
        %vm2145 = vcmp.lt.s32.totalorder %v1117, %v1739
        %vm2146 = vcmp.lt.s32.totalorder %v1118, %v1739
        %vm2147 = vcmp.lt.s32.totalorder %v1119, %v1739
        %vm2148 = vcmp.lt.s32.totalorder %v1120, %v1739
        %vm2149 = vcmp.lt.s32.totalorder %v1121, %v1739
        %vm2150 = vcmp.lt.s32.totalorder %v1122, %v1739
        %vm2151 = vcmp.lt.s32.totalorder %v1123, %v1739
        %vm2152 = vcmp.lt.s32.totalorder %v1124, %v1739
        %vm2153 = vcmp.lt.s32.totalorder %v1125, %v1739
        %vm2154 = vcmp.lt.s32.totalorder %v1126, %v1739
        %vm2155 = vcmp.lt.s32.totalorder %v1127, %v1739
        %vm2156 = vcmp.lt.s32.totalorder %v1128, %v1739
        %vm2157 = vcmp.lt.s32.totalorder %v1129, %v1739
        %vm2158 = vcmp.lt.s32.totalorder %v1130, %v1739
        %vm2159 = vcmp.lt.s32.totalorder %v1131, %v1739
        %vm2160 = vcmp.lt.s32.totalorder %v1132, %v1739
        %vm2161 = vcmp.lt.s32.totalorder %v1133, %v1739
        %vm2162 = vcmp.lt.s32.totalorder %v1134, %v1739
        %vm2163 = vcmp.lt.s32.totalorder %v1135, %v1739
        %vm2164 = vcmp.lt.s32.totalorder %v1136, %v1739
        %vm2165 = vcmp.lt.s32.totalorder %v1137, %v1739
        %vm2166 = vcmp.lt.s32.totalorder %v1138, %v1739
        %vm2167 = vcmp.lt.s32.totalorder %v1139, %v1739
        %vm2168 = vcmp.lt.s32.totalorder %v1140, %v1739
        %vm2169 = vcmp.lt.s32.totalorder %v1141, %v1739
        %vm2170 = vcmp.lt.s32.totalorder %v1142, %v1739
        %vm2171 = vcmp.lt.s32.totalorder %v1143, %v1739
        %vm2172 = vcmp.lt.s32.totalorder %v1144, %v1739
        %vm2173 = vcmp.lt.s32.totalorder %v1145, %v1739
        %vm2174 = vcmp.lt.s32.totalorder %v1146, %v1739
        %vm2175 = vcmp.lt.s32.totalorder %v1147, %v1739
        %vm2176 = vcmp.lt.s32.totalorder %v1148, %v1739
        %vm2177 = vcmp.lt.s32.totalorder %v1149, %v1739
        %vm2178 = vcmp.lt.s32.totalorder %v1150, %v1739
        %vm2179 = vcmp.lt.s32.totalorder %v1151, %v1739
        %vm2180 = vcmp.lt.s32.totalorder %v1152, %v1739
        %vm2181 = vcmp.lt.s32.totalorder %v1153, %v1739
        %vm2182 = vcmp.lt.s32.totalorder %v1154, %v1739
        %vm2183 = vcmp.lt.s32.totalorder %v1155, %v1739
        %vm2184 = vcmp.lt.s32.totalorder %v1156, %v1739
        %vm2185 = vcmp.lt.s32.totalorder %v1157, %v1739
        %vm2186 = vcmp.lt.s32.totalorder %v1158, %v1739
        %vm2187 = vcmp.lt.s32.totalorder %v1159, %v1739
        %vm2188 = vcmp.lt.s32.totalorder %v1160, %v1739
        %vm2189 = vcmp.lt.s32.totalorder %v1161, %v1739
        %vm2190 = vcmp.lt.s32.totalorder %v1162, %v1739
        %vm2191 = vcmp.lt.s32.totalorder %v1163, %v1739
        %vm2192 = vcmp.lt.s32.totalorder %v1164, %v1739
        %vm2193 = vcmp.lt.s32.totalorder %v1165, %v1739
        %vm2194 = vcmp.lt.s32.totalorder %v1166, %v1739
        %vm2195 = vcmp.lt.s32.totalorder %v1167, %v1739
        %vm2196 = vcmp.lt.s32.totalorder %v1168, %v1739
        %vm2197 = vcmp.lt.s32.totalorder %v1169, %v1739
        %vm2198 = vcmp.lt.s32.totalorder %v1170, %v1739
        %vm2199 = vcmp.lt.s32.totalorder %v1171, %v1739
        %vm2200 = vcmp.lt.s32.totalorder %v1172, %v1739
        %vm2201 = vcmp.lt.s32.totalorder %v1173, %v1739
        %vm2202 = vcmp.lt.s32.totalorder %v1174, %v1739
        %vm2203 = vcmp.lt.s32.totalorder %v1175, %v1739
        %vm2204 = vcmp.lt.s32.totalorder %v1176, %v1739
        %vm2205 = vcmp.lt.s32.totalorder %v1177, %v1739
        %vm2206 = vcmp.lt.s32.totalorder %v1178, %v1739
        %vm2207 = vcmp.lt.s32.totalorder %v1179, %v1739
        %vm2208 = vcmp.lt.s32.totalorder %v1180, %v1739
        %vm2209 = vcmp.lt.s32.totalorder %v1181, %v1739
        %vm2210 = vcmp.lt.s32.totalorder %v1182, %v1739
        %vm2211 = vcmp.lt.s32.totalorder %v1183, %v1739
        %vm2212 = vcmp.lt.s32.totalorder %v1184, %v1739
        %vm2213 = vcmp.lt.s32.totalorder %v1185, %v1739
        %vm2214 = vcmp.lt.s32.totalorder %v1186, %v1739
        %vm2215 = vcmp.lt.s32.totalorder %v1187, %v1739
        %vm2216 = vcmp.lt.s32.totalorder %v1188, %v1739
        %vm2217 = vcmp.lt.s32.totalorder %v1189, %v1739
        %vm2218 = vcmp.lt.s32.totalorder %v1190, %v1739
        %vm2219 = vcmp.lt.s32.totalorder %v1191, %v1739
        %vm2220 = vcmp.lt.s32.totalorder %v1192, %v1739
        %vm2221 = vcmp.lt.s32.totalorder %v1193, %v1739
        %vm2222 = vcmp.lt.s32.totalorder %v1194, %v1739
        %vm2223 = vcmp.lt.s32.totalorder %v1195, %v1739
        %vm2224 = vcmp.lt.s32.totalorder %v1196, %v1739
        %vm2225 = vcmp.lt.s32.totalorder %v1197, %v1739
        %vm2226 = vcmp.lt.s32.totalorder %v1198, %v1739
        %vm2227 = vcmp.lt.s32.totalorder %v1199, %v1739
        %vm2228 = vcmp.lt.s32.totalorder %v1200, %v1739
        %vm2229 = vcmp.lt.s32.totalorder %v1201, %v1739
        %vm2230 = vcmp.lt.s32.totalorder %v1202, %v1739
        %vm2231 = vcmp.lt.s32.totalorder %v1203, %v1739
        %vm2232 = vcmp.lt.s32.totalorder %v1204, %v1739
        %vm2233 = vcmp.lt.s32.totalorder %v1205, %v1739
        %vm2234 = vcmp.lt.s32.totalorder %v1206, %v1739
        %vm2235 = vcmp.lt.s32.totalorder %v1207, %v1739
        %vm2236 = vcmp.lt.s32.totalorder %v1208, %v1739
        %vm2237 = vcmp.lt.s32.totalorder %v1209, %v1739
        %vm2238 = vcmp.lt.s32.totalorder %v1210, %v1739
        %vm2239 = vcmp.lt.s32.totalorder %v1211, %v1739
        %vm2240 = vcmp.lt.s32.totalorder %v1212, %v1739
        %vm2241 = vcmp.lt.s32.totalorder %v1213, %v1739
        %vm2242 = vcmp.lt.s32.totalorder %v1214, %v1739
        %vm2243 = vcmp.lt.s32.totalorder %v1215, %v1739
        %vm2244 = vcmp.lt.s32.totalorder %v1216, %v1739
        %vm2245 = vcmp.lt.s32.totalorder %v1217, %v1739
        %vm2246 = vcmp.lt.s32.totalorder %v1218, %v1739
        %vm2247 = vcmp.lt.s32.totalorder %v1219, %v1739
        %vm2248 = vcmp.lt.s32.totalorder %v1220, %v1739
        %vm2249 = vcmp.lt.s32.totalorder %v1221, %v1739
        %vm2250 = vcmp.lt.s32.totalorder %v1222, %v1739
        %vm2251 = vcmp.lt.s32.totalorder %v1223, %v1739
        %v2252 = vsel %vm1740, %v1224, 0.0
        %v2253 = vsel %vm1741, %v1225, 0.0
        %v2254 = vsel %vm1742, %v1226, 0.0
        %v2255 = vsel %vm1743, %v1227, 0.0
        %v2256 = vsel %vm1744, %v1228, 0.0
        %v2257 = vsel %vm1745, %v1229, 0.0
        %v2258 = vsel %vm1746, %v1230, 0.0
        %v2259 = vsel %vm1747, %v1231, 0.0
        %v2260 = vsel %vm1748, %v1232, 0.0
        %v2261 = vsel %vm1749, %v1233, 0.0
        %v2262 = vsel %vm1750, %v1234, 0.0
        %v2263 = vsel %vm1751, %v1235, 0.0
        %v2264 = vsel %vm1752, %v1236, 0.0
        %v2265 = vsel %vm1753, %v1237, 0.0
        %v2266 = vsel %vm1754, %v1238, 0.0
        %v2267 = vsel %vm1755, %v1239, 0.0
        %v2268 = vsel %vm1756, %v1240, 0.0
        %v2269 = vsel %vm1757, %v1241, 0.0
        %v2270 = vsel %vm1758, %v1242, 0.0
        %v2271 = vsel %vm1759, %v1243, 0.0
        %v2272 = vsel %vm1760, %v1244, 0.0
        %v2273 = vsel %vm1761, %v1245, 0.0
        %v2274 = vsel %vm1762, %v1246, 0.0
        %v2275 = vsel %vm1763, %v1247, 0.0
        %v2276 = vsel %vm1764, %v1248, 0.0
        %v2277 = vsel %vm1765, %v1249, 0.0
        %v2278 = vsel %vm1766, %v1250, 0.0
        %v2279 = vsel %vm1767, %v1251, 0.0
        %v2280 = vsel %vm1768, %v1252, 0.0
        %v2281 = vsel %vm1769, %v1253, 0.0
        %v2282 = vsel %vm1770, %v1254, 0.0
        %v2283 = vsel %vm1771, %v1255, 0.0
        %v2284 = vsel %vm1772, %v1256, 0.0
        %v2285 = vsel %vm1773, %v1257, 0.0
        %v2286 = vsel %vm1774, %v1258, 0.0
        %v2287 = vsel %vm1775, %v1259, 0.0
        %v2288 = vsel %vm1776, %v1260, 0.0
        %v2289 = vsel %vm1777, %v1261, 0.0
        %v2290 = vsel %vm1778, %v1262, 0.0
        %v2291 = vsel %vm1779, %v1263, 0.0
        %v2292 = vsel %vm1780, %v1264, 0.0
        %v2293 = vsel %vm1781, %v1265, 0.0
        %v2294 = vsel %vm1782, %v1266, 0.0
        %v2295 = vsel %vm1783, %v1267, 0.0
        %v2296 = vsel %vm1784, %v1268, 0.0
        %v2297 = vsel %vm1785, %v1269, 0.0
        %v2298 = vsel %vm1786, %v1270, 0.0
        %v2299 = vsel %vm1787, %v1271, 0.0
        %v2300 = vsel %vm1788, %v1272, 0.0
        %v2301 = vsel %vm1789, %v1273, 0.0
        %v2302 = vsel %vm1790, %v1274, 0.0
        %v2303 = vsel %vm1791, %v1275, 0.0
        %v2304 = vsel %vm1792, %v1276, 0.0
        %v2305 = vsel %vm1793, %v1277, 0.0
        %v2306 = vsel %vm1794, %v1278, 0.0
        %v2307 = vsel %vm1795, %v1279, 0.0
        %v2308 = vsel %vm1796, %v1280, 0.0
        %v2309 = vsel %vm1797, %v1281, 0.0
        %v2310 = vsel %vm1798, %v1282, 0.0
        %v2311 = vsel %vm1799, %v1283, 0.0
        %v2312 = vsel %vm1800, %v1284, 0.0
        %v2313 = vsel %vm1801, %v1285, 0.0
        %v2314 = vsel %vm1802, %v1286, 0.0
        %v2315 = vsel %vm1803, %v1287, 0.0
        %v2316 = vsel %vm1804, %v1288, 0.0
        %v2317 = vsel %vm1805, %v1289, 0.0
        %v2318 = vsel %vm1806, %v1290, 0.0
        %v2319 = vsel %vm1807, %v1291, 0.0
        %v2320 = vsel %vm1808, %v1292, 0.0
        %v2321 = vsel %vm1809, %v1293, 0.0
        %v2322 = vsel %vm1810, %v1294, 0.0
        %v2323 = vsel %vm1811, %v1295, 0.0
        %v2324 = vsel %vm1812, %v1296, 0.0
        %v2325 = vsel %vm1813, %v1297, 0.0
        %v2326 = vsel %vm1814, %v1298, 0.0
        %v2327 = vsel %vm1815, %v1299, 0.0
        %v2328 = vsel %vm1816, %v1300, 0.0
        %v2329 = vsel %vm1817, %v1301, 0.0
        %v2330 = vsel %vm1818, %v1302, 0.0
        %v2331 = vsel %vm1819, %v1303, 0.0
        %v2332 = vsel %vm1820, %v1304, 0.0
        %v2333 = vsel %vm1821, %v1305, 0.0
        %v2334 = vsel %vm1822, %v1306, 0.0
        %v2335 = vsel %vm1823, %v1307, 0.0
        %v2336 = vsel %vm1824, %v1308, 0.0
        %v2337 = vsel %vm1825, %v1309, 0.0
        %v2338 = vsel %vm1826, %v1310, 0.0
        %v2339 = vsel %vm1827, %v1311, 0.0
        %v2340 = vsel %vm1828, %v1312, 0.0
        %v2341 = vsel %vm1829, %v1313, 0.0
        %v2342 = vsel %vm1830, %v1314, 0.0
        %v2343 = vsel %vm1831, %v1315, 0.0
        %v2344 = vsel %vm1832, %v1316, 0.0
        %v2345 = vsel %vm1833, %v1317, 0.0
        %v2346 = vsel %vm1834, %v1318, 0.0
        %v2347 = vsel %vm1835, %v1319, 0.0
        %v2348 = vsel %vm1836, %v1320, 0.0
        %v2349 = vsel %vm1837, %v1321, 0.0
        %v2350 = vsel %vm1838, %v1322, 0.0
        %v2351 = vsel %vm1839, %v1323, 0.0
        %v2352 = vsel %vm1840, %v1324, 0.0
        %v2353 = vsel %vm1841, %v1325, 0.0
        %v2354 = vsel %vm1842, %v1326, 0.0
        %v2355 = vsel %vm1843, %v1327, 0.0
        %v2356 = vsel %vm1844, %v1328, 0.0
        %v2357 = vsel %vm1845, %v1329, 0.0
        %v2358 = vsel %vm1846, %v1330, 0.0
        %v2359 = vsel %vm1847, %v1331, 0.0
        %v2360 = vsel %vm1848, %v1332, 0.0
        %v2361 = vsel %vm1849, %v1333, 0.0
        %v2362 = vsel %vm1850, %v1334, 0.0
        %v2363 = vsel %vm1851, %v1335, 0.0
        %v2364 = vsel %vm1852, %v1336, 0.0
        %v2365 = vsel %vm1853, %v1337, 0.0
        %v2366 = vsel %vm1854, %v1338, 0.0
        %v2367 = vsel %vm1855, %v1339, 0.0
        %v2368 = vsel %vm1856, %v1340, 0.0
        %v2369 = vsel %vm1857, %v1341, 0.0
        %v2370 = vsel %vm1858, %v1342, 0.0
        %v2371 = vsel %vm1859, %v1343, 0.0
        %v2372 = vsel %vm1860, %v1344, 0.0
        %v2373 = vsel %vm1861, %v1345, 0.0
        %v2374 = vsel %vm1862, %v1346, 0.0
        %v2375 = vsel %vm1863, %v1347, 0.0
        %v2376 = vsel %vm1864, %v1348, 0.0
        %v2377 = vsel %vm1865, %v1349, 0.0
        %v2378 = vsel %vm1866, %v1350, 0.0
        %v2379 = vsel %vm1867, %v1351, 0.0
        %v2380 = vsel %vm1868, %v1352, 0.0
        %v2381 = vsel %vm1869, %v1353, 0.0
        %v2382 = vsel %vm1870, %v1354, 0.0
        %v2383 = vsel %vm1871, %v1355, 0.0
        %v2384 = vsel %vm1872, %v1356, 0.0
        %v2385 = vsel %vm1873, %v1357, 0.0
        %v2386 = vsel %vm1874, %v1358, 0.0
        %v2387 = vsel %vm1875, %v1359, 0.0
        %v2388 = vsel %vm1876, %v1360, 0.0
        %v2389 = vsel %vm1877, %v1361, 0.0
        %v2390 = vsel %vm1878, %v1362, 0.0
        %v2391 = vsel %vm1879, %v1363, 0.0
        %v2392 = vsel %vm1880, %v1364, 0.0
        %v2393 = vsel %vm1881, %v1365, 0.0
        %v2394 = vsel %vm1882, %v1366, 0.0
        %v2395 = vsel %vm1883, %v1367, 0.0
        %v2396 = vsel %vm1884, %v1368, 0.0
        %v2397 = vsel %vm1885, %v1369, 0.0
        %v2398 = vsel %vm1886, %v1370, 0.0
        %v2399 = vsel %vm1887, %v1371, 0.0
        %v2400 = vsel %vm1888, %v1372, 0.0
        %v2401 = vsel %vm1889, %v1373, 0.0
        %v2402 = vsel %vm1890, %v1374, 0.0
        %v2403 = vsel %vm1891, %v1375, 0.0
        %v2404 = vsel %vm1892, %v1376, 0.0
        %v2405 = vsel %vm1893, %v1377, 0.0
        %v2406 = vsel %vm1894, %v1378, 0.0
        %v2407 = vsel %vm1895, %v1379, 0.0
        %v2408 = vsel %vm1896, %v1380, 0.0
        %v2409 = vsel %vm1897, %v1381, 0.0
        %v2410 = vsel %vm1898, %v1382, 0.0
        %v2411 = vsel %vm1899, %v1383, 0.0
        %v2412 = vsel %vm1900, %v1384, 0.0
        %v2413 = vsel %vm1901, %v1385, 0.0
        %v2414 = vsel %vm1902, %v1386, 0.0
        %v2415 = vsel %vm1903, %v1387, 0.0
        %v2416 = vsel %vm1904, %v1388, 0.0
        %v2417 = vsel %vm1905, %v1389, 0.0
        %v2418 = vsel %vm1906, %v1390, 0.0
        %v2419 = vsel %vm1907, %v1391, 0.0
        %v2420 = vsel %vm1908, %v1392, 0.0
        %v2421 = vsel %vm1909, %v1393, 0.0
        %v2422 = vsel %vm1910, %v1394, 0.0
        %v2423 = vsel %vm1911, %v1395, 0.0
        %v2424 = vsel %vm1912, %v1396, 0.0
        %v2425 = vsel %vm1913, %v1397, 0.0
        %v2426 = vsel %vm1914, %v1398, 0.0
        %v2427 = vsel %vm1915, %v1399, 0.0
        %v2428 = vsel %vm1916, %v1400, 0.0
        %v2429 = vsel %vm1917, %v1401, 0.0
        %v2430 = vsel %vm1918, %v1402, 0.0
        %v2431 = vsel %vm1919, %v1403, 0.0
        %v2432 = vsel %vm1920, %v1404, 0.0
        %v2433 = vsel %vm1921, %v1405, 0.0
        %v2434 = vsel %vm1922, %v1406, 0.0
        %v2435 = vsel %vm1923, %v1407, 0.0
        %v2436 = vsel %vm1924, %v1408, 0.0
        %v2437 = vsel %vm1925, %v1409, 0.0
        %v2438 = vsel %vm1926, %v1410, 0.0
        %v2439 = vsel %vm1927, %v1411, 0.0
        %v2440 = vsel %vm1928, %v1412, 0.0
        %v2441 = vsel %vm1929, %v1413, 0.0
        %v2442 = vsel %vm1930, %v1414, 0.0
        %v2443 = vsel %vm1931, %v1415, 0.0
        %v2444 = vsel %vm1932, %v1416, 0.0
        %v2445 = vsel %vm1933, %v1417, 0.0
        %v2446 = vsel %vm1934, %v1418, 0.0
        %v2447 = vsel %vm1935, %v1419, 0.0
        %v2448 = vsel %vm1936, %v1420, 0.0
        %v2449 = vsel %vm1937, %v1421, 0.0
        %v2450 = vsel %vm1938, %v1422, 0.0
        %v2451 = vsel %vm1939, %v1423, 0.0
        %v2452 = vsel %vm1940, %v1424, 0.0
        %v2453 = vsel %vm1941, %v1425, 0.0
        %v2454 = vsel %vm1942, %v1426, 0.0
        %v2455 = vsel %vm1943, %v1427, 0.0
        %v2456 = vsel %vm1944, %v1428, 0.0
        %v2457 = vsel %vm1945, %v1429, 0.0
        %v2458 = vsel %vm1946, %v1430, 0.0
        %v2459 = vsel %vm1947, %v1431, 0.0
        %v2460 = vsel %vm1948, %v1432, 0.0
        %v2461 = vsel %vm1949, %v1433, 0.0
        %v2462 = vsel %vm1950, %v1434, 0.0
        %v2463 = vsel %vm1951, %v1435, 0.0
        %v2464 = vsel %vm1952, %v1436, 0.0
        %v2465 = vsel %vm1953, %v1437, 0.0
        %v2466 = vsel %vm1954, %v1438, 0.0
        %v2467 = vsel %vm1955, %v1439, 0.0
        %v2468 = vsel %vm1956, %v1440, 0.0
        %v2469 = vsel %vm1957, %v1441, 0.0
        %v2470 = vsel %vm1958, %v1442, 0.0
        %v2471 = vsel %vm1959, %v1443, 0.0
        %v2472 = vsel %vm1960, %v1444, 0.0
        %v2473 = vsel %vm1961, %v1445, 0.0
        %v2474 = vsel %vm1962, %v1446, 0.0
        %v2475 = vsel %vm1963, %v1447, 0.0
        %v2476 = vsel %vm1964, %v1448, 0.0
        %v2477 = vsel %vm1965, %v1449, 0.0
        %v2478 = vsel %vm1966, %v1450, 0.0
        %v2479 = vsel %vm1967, %v1451, 0.0
        %v2480 = vsel %vm1968, %v1452, 0.0
        %v2481 = vsel %vm1969, %v1453, 0.0
        %v2482 = vsel %vm1970, %v1454, 0.0
        %v2483 = vsel %vm1971, %v1455, 0.0
        %v2484 = vsel %vm1972, %v1456, 0.0
        %v2485 = vsel %vm1973, %v1457, 0.0
        %v2486 = vsel %vm1974, %v1458, 0.0
        %v2487 = vsel %vm1975, %v1459, 0.0
        %v2488 = vsel %vm1976, %v1460, 0.0
        %v2489 = vsel %vm1977, %v1461, 0.0
        %v2490 = vsel %vm1978, %v1462, 0.0
        %v2491 = vsel %vm1979, %v1463, 0.0
        %v2492 = vsel %vm1980, %v1464, 0.0
        %v2493 = vsel %vm1981, %v1465, 0.0
        %v2494 = vsel %vm1982, %v1466, 0.0
        %v2495 = vsel %vm1983, %v1467, 0.0
        %v2496 = vsel %vm1984, %v1468, 0.0
        %v2497 = vsel %vm1985, %v1469, 0.0
        %v2498 = vsel %vm1986, %v1470, 0.0
        %v2499 = vsel %vm1987, %v1471, 0.0
        %v2500 = vsel %vm1988, %v1472, 0.0
        %v2501 = vsel %vm1989, %v1473, 0.0
        %v2502 = vsel %vm1990, %v1474, 0.0
        %v2503 = vsel %vm1991, %v1475, 0.0
        %v2504 = vsel %vm1992, %v1476, 0.0
        %v2505 = vsel %vm1993, %v1477, 0.0
        %v2506 = vsel %vm1994, %v1478, 0.0
        %v2507 = vsel %vm1995, %v1479, 0.0
        %v2508 = vsel %vm1996, %v1480, 0.0
        %v2509 = vsel %vm1997, %v1481, 0.0
        %v2510 = vsel %vm1998, %v1482, 0.0
        %v2511 = vsel %vm1999, %v1483, 0.0
        %v2512 = vsel %vm2000, %v1484, 0.0
        %v2513 = vsel %vm2001, %v1485, 0.0
        %v2514 = vsel %vm2002, %v1486, 0.0
        %v2515 = vsel %vm2003, %v1487, 0.0
        %v2516 = vsel %vm2004, %v1488, 0.0
        %v2517 = vsel %vm2005, %v1489, 0.0
        %v2518 = vsel %vm2006, %v1490, 0.0
        %v2519 = vsel %vm2007, %v1491, 0.0
        %v2520 = vsel %vm2008, %v1492, 0.0
        %v2521 = vsel %vm2009, %v1493, 0.0
        %v2522 = vsel %vm2010, %v1494, 0.0
        %v2523 = vsel %vm2011, %v1495, 0.0
        %v2524 = vsel %vm2012, %v1496, 0.0
        %v2525 = vsel %vm2013, %v1497, 0.0
        %v2526 = vsel %vm2014, %v1498, 0.0
        %v2527 = vsel %vm2015, %v1499, 0.0
        %v2528 = vsel %vm2016, %v1500, 0.0
        %v2529 = vsel %vm2017, %v1501, 0.0
        %v2530 = vsel %vm2018, %v1502, 0.0
        %v2531 = vsel %vm2019, %v1503, 0.0
        %v2532 = vsel %vm2020, %v1504, 0.0
        %v2533 = vsel %vm2021, %v1505, 0.0
        %v2534 = vsel %vm2022, %v1506, 0.0
        %v2535 = vsel %vm2023, %v1507, 0.0
        %v2536 = vsel %vm2024, %v1508, 0.0
        %v2537 = vsel %vm2025, %v1509, 0.0
        %v2538 = vsel %vm2026, %v1510, 0.0
        %v2539 = vsel %vm2027, %v1511, 0.0
        %v2540 = vsel %vm2028, %v1512, 0.0
        %v2541 = vsel %vm2029, %v1513, 0.0
        %v2542 = vsel %vm2030, %v1514, 0.0
        %v2543 = vsel %vm2031, %v1515, 0.0
        %v2544 = vsel %vm2032, %v1516, 0.0
        %v2545 = vsel %vm2033, %v1517, 0.0
        %v2546 = vsel %vm2034, %v1518, 0.0
        %v2547 = vsel %vm2035, %v1519, 0.0
        %v2548 = vsel %vm2036, %v1520, 0.0
        %v2549 = vsel %vm2037, %v1521, 0.0
        %v2550 = vsel %vm2038, %v1522, 0.0
        %v2551 = vsel %vm2039, %v1523, 0.0
        %v2552 = vsel %vm2040, %v1524, 0.0
        %v2553 = vsel %vm2041, %v1525, 0.0
        %v2554 = vsel %vm2042, %v1526, 0.0
        %v2555 = vsel %vm2043, %v1527, 0.0
        %v2556 = vsel %vm2044, %v1528, 0.0
        %v2557 = vsel %vm2045, %v1529, 0.0
        %v2558 = vsel %vm2046, %v1530, 0.0
        %v2559 = vsel %vm2047, %v1531, 0.0
        %v2560 = vsel %vm2048, %v1532, 0.0
        %v2561 = vsel %vm2049, %v1533, 0.0
        %v2562 = vsel %vm2050, %v1534, 0.0
        %v2563 = vsel %vm2051, %v1535, 0.0
        %v2564 = vsel %vm2052, %v1536, 0.0
        %v2565 = vsel %vm2053, %v1537, 0.0
        %v2566 = vsel %vm2054, %v1538, 0.0
        %v2567 = vsel %vm2055, %v1539, 0.0
        %v2568 = vsel %vm2056, %v1540, 0.0
        %v2569 = vsel %vm2057, %v1541, 0.0
        %v2570 = vsel %vm2058, %v1542, 0.0
        %v2571 = vsel %vm2059, %v1543, 0.0
        %v2572 = vsel %vm2060, %v1544, 0.0
        %v2573 = vsel %vm2061, %v1545, 0.0
        %v2574 = vsel %vm2062, %v1546, 0.0
        %v2575 = vsel %vm2063, %v1547, 0.0
        %v2576 = vsel %vm2064, %v1548, 0.0
        %v2577 = vsel %vm2065, %v1549, 0.0
        %v2578 = vsel %vm2066, %v1550, 0.0
        %v2579 = vsel %vm2067, %v1551, 0.0
        %v2580 = vsel %vm2068, %v1552, 0.0
        %v2581 = vsel %vm2069, %v1553, 0.0
        %v2582 = vsel %vm2070, %v1554, 0.0
        %v2583 = vsel %vm2071, %v1555, 0.0
        %v2584 = vsel %vm2072, %v1556, 0.0
        %v2585 = vsel %vm2073, %v1557, 0.0
        %v2586 = vsel %vm2074, %v1558, 0.0
        %v2587 = vsel %vm2075, %v1559, 0.0
        %v2588 = vsel %vm2076, %v1560, 0.0
        %v2589 = vsel %vm2077, %v1561, 0.0
        %v2590 = vsel %vm2078, %v1562, 0.0
        %v2591 = vsel %vm2079, %v1563, 0.0
        %v2592 = vsel %vm2080, %v1564, 0.0
        %v2593 = vsel %vm2081, %v1565, 0.0
        %v2594 = vsel %vm2082, %v1566, 0.0
        %v2595 = vsel %vm2083, %v1567, 0.0
        %v2596 = vsel %vm2084, %v1568, 0.0
        %v2597 = vsel %vm2085, %v1569, 0.0
        %v2598 = vsel %vm2086, %v1570, 0.0
        %v2599 = vsel %vm2087, %v1571, 0.0
        %v2600 = vsel %vm2088, %v1572, 0.0
        %v2601 = vsel %vm2089, %v1573, 0.0
        %v2602 = vsel %vm2090, %v1574, 0.0
        %v2603 = vsel %vm2091, %v1575, 0.0
        %v2604 = vsel %vm2092, %v1576, 0.0
        %v2605 = vsel %vm2093, %v1577, 0.0
        %v2606 = vsel %vm2094, %v1578, 0.0
        %v2607 = vsel %vm2095, %v1579, 0.0
        %v2608 = vsel %vm2096, %v1580, 0.0
        %v2609 = vsel %vm2097, %v1581, 0.0
        %v2610 = vsel %vm2098, %v1582, 0.0
        %v2611 = vsel %vm2099, %v1583, 0.0
        %v2612 = vsel %vm2100, %v1584, 0.0
        %v2613 = vsel %vm2101, %v1585, 0.0
        %v2614 = vsel %vm2102, %v1586, 0.0
        %v2615 = vsel %vm2103, %v1587, 0.0
        %v2616 = vsel %vm2104, %v1588, 0.0
        %v2617 = vsel %vm2105, %v1589, 0.0
        %v2618 = vsel %vm2106, %v1590, 0.0
        %v2619 = vsel %vm2107, %v1591, 0.0
        %v2620 = vsel %vm2108, %v1592, 0.0
        %v2621 = vsel %vm2109, %v1593, 0.0
        %v2622 = vsel %vm2110, %v1594, 0.0
        %v2623 = vsel %vm2111, %v1595, 0.0
        %v2624 = vsel %vm2112, %v1596, 0.0
        %v2625 = vsel %vm2113, %v1597, 0.0
        %v2626 = vsel %vm2114, %v1598, 0.0
        %v2627 = vsel %vm2115, %v1599, 0.0
        %v2628 = vsel %vm2116, %v1600, 0.0
        %v2629 = vsel %vm2117, %v1601, 0.0
        %v2630 = vsel %vm2118, %v1602, 0.0
        %v2631 = vsel %vm2119, %v1603, 0.0
        %v2632 = vsel %vm2120, %v1604, 0.0
        %v2633 = vsel %vm2121, %v1605, 0.0
        %v2634 = vsel %vm2122, %v1606, 0.0
        %v2635 = vsel %vm2123, %v1607, 0.0
        %v2636 = vsel %vm2124, %v1608, 0.0
        %v2637 = vsel %vm2125, %v1609, 0.0
        %v2638 = vsel %vm2126, %v1610, 0.0
        %v2639 = vsel %vm2127, %v1611, 0.0
        %v2640 = vsel %vm2128, %v1612, 0.0
        %v2641 = vsel %vm2129, %v1613, 0.0
        %v2642 = vsel %vm2130, %v1614, 0.0
        %v2643 = vsel %vm2131, %v1615, 0.0
        %v2644 = vsel %vm2132, %v1616, 0.0
        %v2645 = vsel %vm2133, %v1617, 0.0
        %v2646 = vsel %vm2134, %v1618, 0.0
        %v2647 = vsel %vm2135, %v1619, 0.0
        %v2648 = vsel %vm2136, %v1620, 0.0
        %v2649 = vsel %vm2137, %v1621, 0.0
        %v2650 = vsel %vm2138, %v1622, 0.0
        %v2651 = vsel %vm2139, %v1623, 0.0
        %v2652 = vsel %vm2140, %v1624, 0.0
        %v2653 = vsel %vm2141, %v1625, 0.0
        %v2654 = vsel %vm2142, %v1626, 0.0
        %v2655 = vsel %vm2143, %v1627, 0.0
        %v2656 = vsel %vm2144, %v1628, 0.0
        %v2657 = vsel %vm2145, %v1629, 0.0
        %v2658 = vsel %vm2146, %v1630, 0.0
        %v2659 = vsel %vm2147, %v1631, 0.0
        %v2660 = vsel %vm2148, %v1632, 0.0
        %v2661 = vsel %vm2149, %v1633, 0.0
        %v2662 = vsel %vm2150, %v1634, 0.0
        %v2663 = vsel %vm2151, %v1635, 0.0
        %v2664 = vsel %vm2152, %v1636, 0.0
        %v2665 = vsel %vm2153, %v1637, 0.0
        %v2666 = vsel %vm2154, %v1638, 0.0
        %v2667 = vsel %vm2155, %v1639, 0.0
        %v2668 = vsel %vm2156, %v1640, 0.0
        %v2669 = vsel %vm2157, %v1641, 0.0
        %v2670 = vsel %vm2158, %v1642, 0.0
        %v2671 = vsel %vm2159, %v1643, 0.0
        %v2672 = vsel %vm2160, %v1644, 0.0
        %v2673 = vsel %vm2161, %v1645, 0.0
        %v2674 = vsel %vm2162, %v1646, 0.0
        %v2675 = vsel %vm2163, %v1647, 0.0
        %v2676 = vsel %vm2164, %v1648, 0.0
        %v2677 = vsel %vm2165, %v1649, 0.0
        %v2678 = vsel %vm2166, %v1650, 0.0
        %v2679 = vsel %vm2167, %v1651, 0.0
        %v2680 = vsel %vm2168, %v1652, 0.0
        %v2681 = vsel %vm2169, %v1653, 0.0
        %v2682 = vsel %vm2170, %v1654, 0.0
        %v2683 = vsel %vm2171, %v1655, 0.0
        %v2684 = vsel %vm2172, %v1656, 0.0
        %v2685 = vsel %vm2173, %v1657, 0.0
        %v2686 = vsel %vm2174, %v1658, 0.0
        %v2687 = vsel %vm2175, %v1659, 0.0
        %v2688 = vsel %vm2176, %v1660, 0.0
        %v2689 = vsel %vm2177, %v1661, 0.0
        %v2690 = vsel %vm2178, %v1662, 0.0
        %v2691 = vsel %vm2179, %v1663, 0.0
        %v2692 = vsel %vm2180, %v1664, 0.0
        %v2693 = vsel %vm2181, %v1665, 0.0
        %v2694 = vsel %vm2182, %v1666, 0.0
        %v2695 = vsel %vm2183, %v1667, 0.0
        %v2696 = vsel %vm2184, %v1668, 0.0
        %v2697 = vsel %vm2185, %v1669, 0.0
        %v2698 = vsel %vm2186, %v1670, 0.0
        %v2699 = vsel %vm2187, %v1671, 0.0
        %v2700 = vsel %vm2188, %v1672, 0.0
        %v2701 = vsel %vm2189, %v1673, 0.0
        %v2702 = vsel %vm2190, %v1674, 0.0
        %v2703 = vsel %vm2191, %v1675, 0.0
        %v2704 = vsel %vm2192, %v1676, 0.0
        %v2705 = vsel %vm2193, %v1677, 0.0
        %v2706 = vsel %vm2194, %v1678, 0.0
        %v2707 = vsel %vm2195, %v1679, 0.0
        %v2708 = vsel %vm2196, %v1680, 0.0
        %v2709 = vsel %vm2197, %v1681, 0.0
        %v2710 = vsel %vm2198, %v1682, 0.0
        %v2711 = vsel %vm2199, %v1683, 0.0
        %v2712 = vsel %vm2200, %v1684, 0.0
        %v2713 = vsel %vm2201, %v1685, 0.0
        %v2714 = vsel %vm2202, %v1686, 0.0
        %v2715 = vsel %vm2203, %v1687, 0.0
        %v2716 = vsel %vm2204, %v1688, 0.0
        %v2717 = vsel %vm2205, %v1689, 0.0
        %v2718 = vsel %vm2206, %v1690, 0.0
        %v2719 = vsel %vm2207, %v1691, 0.0
        %v2720 = vsel %vm2208, %v1692, 0.0
        %v2721 = vsel %vm2209, %v1693, 0.0
        %v2722 = vsel %vm2210, %v1694, 0.0
        %v2723 = vsel %vm2211, %v1695, 0.0
        %v2724 = vsel %vm2212, %v1696, 0.0
        %v2725 = vsel %vm2213, %v1697, 0.0
        %v2726 = vsel %vm2214, %v1698, 0.0
        %v2727 = vsel %vm2215, %v1699, 0.0
        %v2728 = vsel %vm2216, %v1700, 0.0
        %v2729 = vsel %vm2217, %v1701, 0.0
        %v2730 = vsel %vm2218, %v1702, 0.0
        %v2731 = vsel %vm2219, %v1703, 0.0
        %v2732 = vsel %vm2220, %v1704, 0.0
        %v2733 = vsel %vm2221, %v1705, 0.0
        %v2734 = vsel %vm2222, %v1706, 0.0
        %v2735 = vsel %vm2223, %v1707, 0.0
        %v2736 = vsel %vm2224, %v1708, 0.0
        %v2737 = vsel %vm2225, %v1709, 0.0
        %v2738 = vsel %vm2226, %v1710, 0.0
        %v2739 = vsel %vm2227, %v1711, 0.0
        %v2740 = vsel %vm2228, %v1712, 0.0
        %v2741 = vsel %vm2229, %v1713, 0.0
        %v2742 = vsel %vm2230, %v1714, 0.0
        %v2743 = vsel %vm2231, %v1715, 0.0
        %v2744 = vsel %vm2232, %v1716, 0.0
        %v2745 = vsel %vm2233, %v1717, 0.0
        %v2746 = vsel %vm2234, %v1718, 0.0
        %v2747 = vsel %vm2235, %v1719, 0.0
        %v2748 = vsel %vm2236, %v1720, 0.0
        %v2749 = vsel %vm2237, %v1721, 0.0
        %v2750 = vsel %vm2238, %v1722, 0.0
        %v2751 = vsel %vm2239, %v1723, 0.0
        %v2752 = vsel %vm2240, %v1724, 0.0
        %v2753 = vsel %vm2241, %v1725, 0.0
        %v2754 = vsel %vm2242, %v1726, 0.0
        %v2755 = vsel %vm2243, %v1727, 0.0
        %v2756 = vsel %vm2244, %v1728, 0.0
        %v2757 = vsel %vm2245, %v1729, 0.0
        %v2758 = vsel %vm2246, %v1730, 0.0
        %v2759 = vsel %vm2247, %v1731, 0.0
        %v2760 = vsel %vm2248, %v1732, 0.0
        %v2761 = vsel %vm2249, %v1733, 0.0
        %v2762 = vsel %vm2250, %v1734, 0.0
        %v2763 = vsel %vm2251, %v1735, 0.0
        %2764 = vst [vmem:[%s190] sm:$0xff] %v2252
        %2765 = vst [vmem:[%s190 + $0x8] sm:$0xff] %v2253
        %2766 = vst [vmem:[%s190 + $0x10] sm:$0xff] %v2254
        %2767 = vst [vmem:[%s190 + $0x18] sm:$0xff] %v2255
        %2768 = vst [vmem:[%s190 + $0x20] sm:$0xff] %v2256
        %2769 = vst [vmem:[%s190 + $0x28] sm:$0xff] %v2257
        %2770 = vst [vmem:[%s190 + $0x30] sm:$0xff] %v2258
        %2771 = vst [vmem:[%s190 + $0x38] sm:$0xff] %v2259
        %2772 = vst [vmem:[%s190 + $0x40] sm:$0xff] %v2260
        %2773 = vst [vmem:[%s190 + $0x48] sm:$0xff] %v2261
        %2774 = vst [vmem:[%s190 + $0x50] sm:$0xff] %v2262
        %2775 = vst [vmem:[%s190 + $0x58] sm:$0xff] %v2263
        %2776 = vst [vmem:[%s190 + $0x60] sm:$0xff] %v2264
        %2777 = vst [vmem:[%s190 + $0x68] sm:$0xff] %v2265
        %2778 = vst [vmem:[%s190 + $0x70] sm:$0xff] %v2266
        %2779 = vst [vmem:[%s190 + $0x78] sm:$0xff] %v2267
        %2780 = vst [vmem:[%s190 + $0x80] sm:$0xff] %v2268
        %2781 = vst [vmem:[%s190 + $0x88] sm:$0xff] %v2269
        %2782 = vst [vmem:[%s190 + $0x90] sm:$0xff] %v2270
        %2783 = vst [vmem:[%s190 + $0x98] sm:$0xff] %v2271
        %2784 = vst [vmem:[%s190 + $0xa0] sm:$0xff] %v2272
        %2785 = vst [vmem:[%s190 + $0xa8] sm:$0xff] %v2273
        %2786 = vst [vmem:[%s190 + $0xb0] sm:$0xff] %v2274
        %2787 = vst [vmem:[%s190 + $0xb8] sm:$0xff] %v2275
        %2788 = vst [vmem:[%s190 + $0xc0] sm:$0xff] %v2276
        %2789 = vst [vmem:[%s190 + $0xc8] sm:$0xff] %v2277
        %2790 = vst [vmem:[%s190 + $0xd0] sm:$0xff] %v2278
        %2791 = vst [vmem:[%s190 + $0xd8] sm:$0xff] %v2279
        %2792 = vst [vmem:[%s190 + $0xe0] sm:$0xff] %v2280
        %2793 = vst [vmem:[%s190 + $0xe8] sm:$0xff] %v2281
        %2794 = vst [vmem:[%s190 + $0xf0] sm:$0xff] %v2282
        %2795 = vst [vmem:[%s190 + $0xf8] sm:$0xff] %v2283
        %2796 = vst [vmem:[%s190 + $0x100] sm:$0xff] %v2284
        %2797 = vst [vmem:[%s190 + $0x108] sm:$0xff] %v2285
        %2798 = vst [vmem:[%s190 + $0x110] sm:$0xff] %v2286
        %2799 = vst [vmem:[%s190 + $0x118] sm:$0xff] %v2287
        %2800 = vst [vmem:[%s190 + $0x120] sm:$0xff] %v2288
        %2801 = vst [vmem:[%s190 + $0x128] sm:$0xff] %v2289
        %2802 = vst [vmem:[%s190 + $0x130] sm:$0xff] %v2290
        %2803 = vst [vmem:[%s190 + $0x138] sm:$0xff] %v2291
        %2804 = vst [vmem:[%s190 + $0x140] sm:$0xff] %v2292
        %2805 = vst [vmem:[%s190 + $0x148] sm:$0xff] %v2293
        %2806 = vst [vmem:[%s190 + $0x150] sm:$0xff] %v2294
        %2807 = vst [vmem:[%s190 + $0x158] sm:$0xff] %v2295
        %2808 = vst [vmem:[%s190 + $0x160] sm:$0xff] %v2296
        %2809 = vst [vmem:[%s190 + $0x168] sm:$0xff] %v2297
        %2810 = vst [vmem:[%s190 + $0x170] sm:$0xff] %v2298
        %2811 = vst [vmem:[%s190 + $0x178] sm:$0xff] %v2299
        %2812 = vst [vmem:[%s190 + $0x180] sm:$0xff] %v2300
        %2813 = vst [vmem:[%s190 + $0x188] sm:$0xff] %v2301
        %2814 = vst [vmem:[%s190 + $0x190] sm:$0xff] %v2302
        %2815 = vst [vmem:[%s190 + $0x198] sm:$0xff] %v2303
        %2816 = vst [vmem:[%s190 + $0x1a0] sm:$0xff] %v2304
        %2817 = vst [vmem:[%s190 + $0x1a8] sm:$0xff] %v2305
        %2818 = vst [vmem:[%s190 + $0x1b0] sm:$0xff] %v2306
        %2819 = vst [vmem:[%s190 + $0x1b8] sm:$0xff] %v2307
        %2820 = vst [vmem:[%s190 + $0x1c0] sm:$0xff] %v2308
        %2821 = vst [vmem:[%s190 + $0x1c8] sm:$0xff] %v2309
        %2822 = vst [vmem:[%s190 + $0x1d0] sm:$0xff] %v2310
        %2823 = vst [vmem:[%s190 + $0x1d8] sm:$0xff] %v2311
        %2824 = vst [vmem:[%s190 + $0x1e0] sm:$0xff] %v2312
        %2825 = vst [vmem:[%s190 + $0x1e8] sm:$0xff] %v2313
        %2826 = vst [vmem:[%s190 + $0x1f0] sm:$0xff] %v2314
        %2827 = vst [vmem:[%s190 + $0x1f8] sm:$0xff] %v2315
        %2828 = vst [vmem:[%s190 + $0x200] sm:$0xff] %v2316
        %2829 = vst [vmem:[%s190 + $0x208] sm:$0xff] %v2317
        %2830 = vst [vmem:[%s190 + $0x210] sm:$0xff] %v2318
        %2831 = vst [vmem:[%s190 + $0x218] sm:$0xff] %v2319
        %2832 = vst [vmem:[%s190 + $0x220] sm:$0xff] %v2320
        %2833 = vst [vmem:[%s190 + $0x228] sm:$0xff] %v2321
        %2834 = vst [vmem:[%s190 + $0x230] sm:$0xff] %v2322
        %2835 = vst [vmem:[%s190 + $0x238] sm:$0xff] %v2323
        %2836 = vst [vmem:[%s190 + $0x240] sm:$0xff] %v2324
        %2837 = vst [vmem:[%s190 + $0x248] sm:$0xff] %v2325
        %2838 = vst [vmem:[%s190 + $0x250] sm:$0xff] %v2326
        %2839 = vst [vmem:[%s190 + $0x258] sm:$0xff] %v2327
        %2840 = vst [vmem:[%s190 + $0x260] sm:$0xff] %v2328
        %2841 = vst [vmem:[%s190 + $0x268] sm:$0xff] %v2329
        %2842 = vst [vmem:[%s190 + $0x270] sm:$0xff] %v2330
        %2843 = vst [vmem:[%s190 + $0x278] sm:$0xff] %v2331
        %2844 = vst [vmem:[%s190 + $0x280] sm:$0xff] %v2332
        %2845 = vst [vmem:[%s190 + $0x288] sm:$0xff] %v2333
        %2846 = vst [vmem:[%s190 + $0x290] sm:$0xff] %v2334
        %2847 = vst [vmem:[%s190 + $0x298] sm:$0xff] %v2335
        %2848 = vst [vmem:[%s190 + $0x2a0] sm:$0xff] %v2336
        %2849 = vst [vmem:[%s190 + $0x2a8] sm:$0xff] %v2337
        %2850 = vst [vmem:[%s190 + $0x2b0] sm:$0xff] %v2338
        %2851 = vst [vmem:[%s190 + $0x2b8] sm:$0xff] %v2339
        %2852 = vst [vmem:[%s190 + $0x2c0] sm:$0xff] %v2340
        %2853 = vst [vmem:[%s190 + $0x2c8] sm:$0xff] %v2341
        %2854 = vst [vmem:[%s190 + $0x2d0] sm:$0xff] %v2342
        %2855 = vst [vmem:[%s190 + $0x2d8] sm:$0xff] %v2343
        %2856 = vst [vmem:[%s190 + $0x2e0] sm:$0xff] %v2344
        %2857 = vst [vmem:[%s190 + $0x2e8] sm:$0xff] %v2345
        %2858 = vst [vmem:[%s190 + $0x2f0] sm:$0xff] %v2346
        %2859 = vst [vmem:[%s190 + $0x2f8] sm:$0xff] %v2347
        %2860 = vst [vmem:[%s190 + $0x300] sm:$0xff] %v2348
        %2861 = vst [vmem:[%s190 + $0x308] sm:$0xff] %v2349
        %2862 = vst [vmem:[%s190 + $0x310] sm:$0xff] %v2350
        %2863 = vst [vmem:[%s190 + $0x318] sm:$0xff] %v2351
        %2864 = vst [vmem:[%s190 + $0x320] sm:$0xff] %v2352
        %2865 = vst [vmem:[%s190 + $0x328] sm:$0xff] %v2353
        %2866 = vst [vmem:[%s190 + $0x330] sm:$0xff] %v2354
        %2867 = vst [vmem:[%s190 + $0x338] sm:$0xff] %v2355
        %2868 = vst [vmem:[%s190 + $0x340] sm:$0xff] %v2356
        %2869 = vst [vmem:[%s190 + $0x348] sm:$0xff] %v2357
        %2870 = vst [vmem:[%s190 + $0x350] sm:$0xff] %v2358
        %2871 = vst [vmem:[%s190 + $0x358] sm:$0xff] %v2359
        %2872 = vst [vmem:[%s190 + $0x360] sm:$0xff] %v2360
        %2873 = vst [vmem:[%s190 + $0x368] sm:$0xff] %v2361
        %2874 = vst [vmem:[%s190 + $0x370] sm:$0xff] %v2362
        %2875 = vst [vmem:[%s190 + $0x378] sm:$0xff] %v2363
        %2876 = vst [vmem:[%s190 + $0x380] sm:$0xff] %v2364
        %2877 = vst [vmem:[%s190 + $0x388] sm:$0xff] %v2365
        %2878 = vst [vmem:[%s190 + $0x390] sm:$0xff] %v2366
        %2879 = vst [vmem:[%s190 + $0x398] sm:$0xff] %v2367
        %2880 = vst [vmem:[%s190 + $0x3a0] sm:$0xff] %v2368
        %2881 = vst [vmem:[%s190 + $0x3a8] sm:$0xff] %v2369
        %2882 = vst [vmem:[%s190 + $0x3b0] sm:$0xff] %v2370
        %2883 = vst [vmem:[%s190 + $0x3b8] sm:$0xff] %v2371
        %2884 = vst [vmem:[%s190 + $0x3c0] sm:$0xff] %v2372
        %2885 = vst [vmem:[%s190 + $0x3c8] sm:$0xff] %v2373
        %2886 = vst [vmem:[%s190 + $0x3d0] sm:$0xff] %v2374
        %2887 = vst [vmem:[%s190 + $0x3d8] sm:$0xff] %v2375
        %2888 = vst [vmem:[%s190 + $0x3e0] sm:$0xff] %v2376
        %2889 = vst [vmem:[%s190 + $0x3e8] sm:$0xff] %v2377
        %2890 = vst [vmem:[%s190 + $0x3f0] sm:$0xff] %v2378
        %2891 = vst [vmem:[%s190 + $0x3f8] sm:$0xff] %v2379
        %2892 = vst [vmem:[%s190 + $0x400] sm:$0xff] %v2380
        %2893 = vst [vmem:[%s190 + $0x408] sm:$0xff] %v2381
        %2894 = vst [vmem:[%s190 + $0x410] sm:$0xff] %v2382
        %2895 = vst [vmem:[%s190 + $0x418] sm:$0xff] %v2383
        %2896 = vst [vmem:[%s190 + $0x420] sm:$0xff] %v2384
        %2897 = vst [vmem:[%s190 + $0x428] sm:$0xff] %v2385
        %2898 = vst [vmem:[%s190 + $0x430] sm:$0xff] %v2386
        %2899 = vst [vmem:[%s190 + $0x438] sm:$0xff] %v2387
        %2900 = vst [vmem:[%s190 + $0x440] sm:$0xff] %v2388
        %2901 = vst [vmem:[%s190 + $0x448] sm:$0xff] %v2389
        %2902 = vst [vmem:[%s190 + $0x450] sm:$0xff] %v2390
        %2903 = vst [vmem:[%s190 + $0x458] sm:$0xff] %v2391
        %2904 = vst [vmem:[%s190 + $0x460] sm:$0xff] %v2392
        %2905 = vst [vmem:[%s190 + $0x468] sm:$0xff] %v2393
        %2906 = vst [vmem:[%s190 + $0x470] sm:$0xff] %v2394
        %2907 = vst [vmem:[%s190 + $0x478] sm:$0xff] %v2395
        %2908 = vst [vmem:[%s190 + $0x480] sm:$0xff] %v2396
        %2909 = vst [vmem:[%s190 + $0x488] sm:$0xff] %v2397
        %2910 = vst [vmem:[%s190 + $0x490] sm:$0xff] %v2398
        %2911 = vst [vmem:[%s190 + $0x498] sm:$0xff] %v2399
        %2912 = vst [vmem:[%s190 + $0x4a0] sm:$0xff] %v2400
        %2913 = vst [vmem:[%s190 + $0x4a8] sm:$0xff] %v2401
        %2914 = vst [vmem:[%s190 + $0x4b0] sm:$0xff] %v2402
        %2915 = vst [vmem:[%s190 + $0x4b8] sm:$0xff] %v2403
        %2916 = vst [vmem:[%s190 + $0x4c0] sm:$0xff] %v2404
        %2917 = vst [vmem:[%s190 + $0x4c8] sm:$0xff] %v2405
        %2918 = vst [vmem:[%s190 + $0x4d0] sm:$0xff] %v2406
        %2919 = vst [vmem:[%s190 + $0x4d8] sm:$0xff] %v2407
        %2920 = vst [vmem:[%s190 + $0x4e0] sm:$0xff] %v2408
        %2921 = vst [vmem:[%s190 + $0x4e8] sm:$0xff] %v2409
        %2922 = vst [vmem:[%s190 + $0x4f0] sm:$0xff] %v2410
        %2923 = vst [vmem:[%s190 + $0x4f8] sm:$0xff] %v2411
        %2924 = vst [vmem:[%s190 + $0x500] sm:$0xff] %v2412
        %2925 = vst [vmem:[%s190 + $0x508] sm:$0xff] %v2413
        %2926 = vst [vmem:[%s190 + $0x510] sm:$0xff] %v2414
        %2927 = vst [vmem:[%s190 + $0x518] sm:$0xff] %v2415
        %2928 = vst [vmem:[%s190 + $0x520] sm:$0xff] %v2416
        %2929 = vst [vmem:[%s190 + $0x528] sm:$0xff] %v2417
        %2930 = vst [vmem:[%s190 + $0x530] sm:$0xff] %v2418
        %2931 = vst [vmem:[%s190 + $0x538] sm:$0xff] %v2419
        %2932 = vst [vmem:[%s190 + $0x540] sm:$0xff] %v2420
        %2933 = vst [vmem:[%s190 + $0x548] sm:$0xff] %v2421
        %2934 = vst [vmem:[%s190 + $0x550] sm:$0xff] %v2422
        %2935 = vst [vmem:[%s190 + $0x558] sm:$0xff] %v2423
        %2936 = vst [vmem:[%s190 + $0x560] sm:$0xff] %v2424
        %2937 = vst [vmem:[%s190 + $0x568] sm:$0xff] %v2425
        %2938 = vst [vmem:[%s190 + $0x570] sm:$0xff] %v2426
        %2939 = vst [vmem:[%s190 + $0x578] sm:$0xff] %v2427
        %2940 = vst [vmem:[%s190 + $0x580] sm:$0xff] %v2428
        %2941 = vst [vmem:[%s190 + $0x588] sm:$0xff] %v2429
        %2942 = vst [vmem:[%s190 + $0x590] sm:$0xff] %v2430
        %2943 = vst [vmem:[%s190 + $0x598] sm:$0xff] %v2431
        %2944 = vst [vmem:[%s190 + $0x5a0] sm:$0xff] %v2432
        %2945 = vst [vmem:[%s190 + $0x5a8] sm:$0xff] %v2433
        %2946 = vst [vmem:[%s190 + $0x5b0] sm:$0xff] %v2434
        %2947 = vst [vmem:[%s190 + $0x5b8] sm:$0xff] %v2435
        %2948 = vst [vmem:[%s190 + $0x5c0] sm:$0xff] %v2436
        %2949 = vst [vmem:[%s190 + $0x5c8] sm:$0xff] %v2437
        %2950 = vst [vmem:[%s190 + $0x5d0] sm:$0xff] %v2438
        %2951 = vst [vmem:[%s190 + $0x5d8] sm:$0xff] %v2439
        %2952 = vst [vmem:[%s190 + $0x5e0] sm:$0xff] %v2440
        %2953 = vst [vmem:[%s190 + $0x5e8] sm:$0xff] %v2441
        %2954 = vst [vmem:[%s190 + $0x5f0] sm:$0xff] %v2442
        %2955 = vst [vmem:[%s190 + $0x5f8] sm:$0xff] %v2443
        %2956 = vst [vmem:[%s190 + $0x600] sm:$0xff] %v2444
        %2957 = vst [vmem:[%s190 + $0x608] sm:$0xff] %v2445
        %2958 = vst [vmem:[%s190 + $0x610] sm:$0xff] %v2446
        %2959 = vst [vmem:[%s190 + $0x618] sm:$0xff] %v2447
        %2960 = vst [vmem:[%s190 + $0x620] sm:$0xff] %v2448
        %2961 = vst [vmem:[%s190 + $0x628] sm:$0xff] %v2449
        %2962 = vst [vmem:[%s190 + $0x630] sm:$0xff] %v2450
        %2963 = vst [vmem:[%s190 + $0x638] sm:$0xff] %v2451
        %2964 = vst [vmem:[%s190 + $0x640] sm:$0xff] %v2452
        %2965 = vst [vmem:[%s190 + $0x648] sm:$0xff] %v2453
        %2966 = vst [vmem:[%s190 + $0x650] sm:$0xff] %v2454
        %2967 = vst [vmem:[%s190 + $0x658] sm:$0xff] %v2455
        %2968 = vst [vmem:[%s190 + $0x660] sm:$0xff] %v2456
        %2969 = vst [vmem:[%s190 + $0x668] sm:$0xff] %v2457
        %2970 = vst [vmem:[%s190 + $0x670] sm:$0xff] %v2458
        %2971 = vst [vmem:[%s190 + $0x678] sm:$0xff] %v2459
        %2972 = vst [vmem:[%s190 + $0x680] sm:$0xff] %v2460
        %2973 = vst [vmem:[%s190 + $0x688] sm:$0xff] %v2461
        %2974 = vst [vmem:[%s190 + $0x690] sm:$0xff] %v2462
        %2975 = vst [vmem:[%s190 + $0x698] sm:$0xff] %v2463
        %2976 = vst [vmem:[%s190 + $0x6a0] sm:$0xff] %v2464
        %2977 = vst [vmem:[%s190 + $0x6a8] sm:$0xff] %v2465
        %2978 = vst [vmem:[%s190 + $0x6b0] sm:$0xff] %v2466
        %2979 = vst [vmem:[%s190 + $0x6b8] sm:$0xff] %v2467
        %2980 = vst [vmem:[%s190 + $0x6c0] sm:$0xff] %v2468
        %2981 = vst [vmem:[%s190 + $0x6c8] sm:$0xff] %v2469
        %2982 = vst [vmem:[%s190 + $0x6d0] sm:$0xff] %v2470
        %2983 = vst [vmem:[%s190 + $0x6d8] sm:$0xff] %v2471
        %2984 = vst [vmem:[%s190 + $0x6e0] sm:$0xff] %v2472
        %2985 = vst [vmem:[%s190 + $0x6e8] sm:$0xff] %v2473
        %2986 = vst [vmem:[%s190 + $0x6f0] sm:$0xff] %v2474
        %2987 = vst [vmem:[%s190 + $0x6f8] sm:$0xff] %v2475
        %2988 = vst [vmem:[%s190 + $0x700] sm:$0xff] %v2476
        %2989 = vst [vmem:[%s190 + $0x708] sm:$0xff] %v2477
        %2990 = vst [vmem:[%s190 + $0x710] sm:$0xff] %v2478
        %2991 = vst [vmem:[%s190 + $0x718] sm:$0xff] %v2479
        %2992 = vst [vmem:[%s190 + $0x720] sm:$0xff] %v2480
        %2993 = vst [vmem:[%s190 + $0x728] sm:$0xff] %v2481
        %2994 = vst [vmem:[%s190 + $0x730] sm:$0xff] %v2482
        %2995 = vst [vmem:[%s190 + $0x738] sm:$0xff] %v2483
        %2996 = vst [vmem:[%s190 + $0x740] sm:$0xff] %v2484
        %2997 = vst [vmem:[%s190 + $0x748] sm:$0xff] %v2485
        %2998 = vst [vmem:[%s190 + $0x750] sm:$0xff] %v2486
        %2999 = vst [vmem:[%s190 + $0x758] sm:$0xff] %v2487
        %3000 = vst [vmem:[%s190 + $0x760] sm:$0xff] %v2488
        %3001 = vst [vmem:[%s190 + $0x768] sm:$0xff] %v2489
        %3002 = vst [vmem:[%s190 + $0x770] sm:$0xff] %v2490
        %3003 = vst [vmem:[%s190 + $0x778] sm:$0xff] %v2491
        %3004 = vst [vmem:[%s190 + $0x780] sm:$0xff] %v2492
        %3005 = vst [vmem:[%s190 + $0x788] sm:$0xff] %v2493
        %3006 = vst [vmem:[%s190 + $0x790] sm:$0xff] %v2494
        %3007 = vst [vmem:[%s190 + $0x798] sm:$0xff] %v2495
        %3008 = vst [vmem:[%s190 + $0x7a0] sm:$0xff] %v2496
        %3009 = vst [vmem:[%s190 + $0x7a8] sm:$0xff] %v2497
        %3010 = vst [vmem:[%s190 + $0x7b0] sm:$0xff] %v2498
        %3011 = vst [vmem:[%s190 + $0x7b8] sm:$0xff] %v2499
        %3012 = vst [vmem:[%s190 + $0x7c0] sm:$0xff] %v2500
        %3013 = vst [vmem:[%s190 + $0x7c8] sm:$0xff] %v2501
        %3014 = vst [vmem:[%s190 + $0x7d0] sm:$0xff] %v2502
        %3015 = vst [vmem:[%s190 + $0x7d8] sm:$0xff] %v2503
        %3016 = vst [vmem:[%s190 + $0x7e0] sm:$0xff] %v2504
        %3017 = vst [vmem:[%s190 + $0x7e8] sm:$0xff] %v2505
        %3018 = vst [vmem:[%s190 + $0x7f0] sm:$0xff] %v2506
        %3019 = vst [vmem:[%s190 + $0x7f8] sm:$0xff] %v2507
        %3020 = vst [vmem:[%s190 + $0x800] sm:$0xff] %v2508
        %3021 = vst [vmem:[%s190 + $0x808] sm:$0xff] %v2509
        %3022 = vst [vmem:[%s190 + $0x810] sm:$0xff] %v2510
        %3023 = vst [vmem:[%s190 + $0x818] sm:$0xff] %v2511
        %3024 = vst [vmem:[%s190 + $0x820] sm:$0xff] %v2512
        %3025 = vst [vmem:[%s190 + $0x828] sm:$0xff] %v2513
        %3026 = vst [vmem:[%s190 + $0x830] sm:$0xff] %v2514
        %3027 = vst [vmem:[%s190 + $0x838] sm:$0xff] %v2515
        %3028 = vst [vmem:[%s190 + $0x840] sm:$0xff] %v2516
        %3029 = vst [vmem:[%s190 + $0x848] sm:$0xff] %v2517
        %3030 = vst [vmem:[%s190 + $0x850] sm:$0xff] %v2518
        %3031 = vst [vmem:[%s190 + $0x858] sm:$0xff] %v2519
        %3032 = vst [vmem:[%s190 + $0x860] sm:$0xff] %v2520
        %3033 = vst [vmem:[%s190 + $0x868] sm:$0xff] %v2521
        %3034 = vst [vmem:[%s190 + $0x870] sm:$0xff] %v2522
        %3035 = vst [vmem:[%s190 + $0x878] sm:$0xff] %v2523
        %3036 = vst [vmem:[%s190 + $0x880] sm:$0xff] %v2524
        %3037 = vst [vmem:[%s190 + $0x888] sm:$0xff] %v2525
        %3038 = vst [vmem:[%s190 + $0x890] sm:$0xff] %v2526
        %3039 = vst [vmem:[%s190 + $0x898] sm:$0xff] %v2527
        %3040 = vst [vmem:[%s190 + $0x8a0] sm:$0xff] %v2528
        %3041 = vst [vmem:[%s190 + $0x8a8] sm:$0xff] %v2529
        %3042 = vst [vmem:[%s190 + $0x8b0] sm:$0xff] %v2530
        %3043 = vst [vmem:[%s190 + $0x8b8] sm:$0xff] %v2531
        %3044 = vst [vmem:[%s190 + $0x8c0] sm:$0xff] %v2532
        %3045 = vst [vmem:[%s190 + $0x8c8] sm:$0xff] %v2533
        %3046 = vst [vmem:[%s190 + $0x8d0] sm:$0xff] %v2534
        %3047 = vst [vmem:[%s190 + $0x8d8] sm:$0xff] %v2535
        %3048 = vst [vmem:[%s190 + $0x8e0] sm:$0xff] %v2536
        %3049 = vst [vmem:[%s190 + $0x8e8] sm:$0xff] %v2537
        %3050 = vst [vmem:[%s190 + $0x8f0] sm:$0xff] %v2538
        %3051 = vst [vmem:[%s190 + $0x8f8] sm:$0xff] %v2539
        %3052 = vst [vmem:[%s190 + $0x900] sm:$0xff] %v2540
        %3053 = vst [vmem:[%s190 + $0x908] sm:$0xff] %v2541
        %3054 = vst [vmem:[%s190 + $0x910] sm:$0xff] %v2542
        %3055 = vst [vmem:[%s190 + $0x918] sm:$0xff] %v2543
        %3056 = vst [vmem:[%s190 + $0x920] sm:$0xff] %v2544
        %3057 = vst [vmem:[%s190 + $0x928] sm:$0xff] %v2545
        %3058 = vst [vmem:[%s190 + $0x930] sm:$0xff] %v2546
        %3059 = vst [vmem:[%s190 + $0x938] sm:$0xff] %v2547
        %3060 = vst [vmem:[%s190 + $0x940] sm:$0xff] %v2548
        %3061 = vst [vmem:[%s190 + $0x948] sm:$0xff] %v2549
        %3062 = vst [vmem:[%s190 + $0x950] sm:$0xff] %v2550
        %3063 = vst [vmem:[%s190 + $0x958] sm:$0xff] %v2551
        %3064 = vst [vmem:[%s190 + $0x960] sm:$0xff] %v2552
        %3065 = vst [vmem:[%s190 + $0x968] sm:$0xff] %v2553
        %3066 = vst [vmem:[%s190 + $0x970] sm:$0xff] %v2554
        %3067 = vst [vmem:[%s190 + $0x978] sm:$0xff] %v2555
        %3068 = vst [vmem:[%s190 + $0x980] sm:$0xff] %v2556
        %3069 = vst [vmem:[%s190 + $0x988] sm:$0xff] %v2557
        %3070 = vst [vmem:[%s190 + $0x990] sm:$0xff] %v2558
        %3071 = vst [vmem:[%s190 + $0x998] sm:$0xff] %v2559
        %3072 = vst [vmem:[%s190 + $0x9a0] sm:$0xff] %v2560
        %3073 = vst [vmem:[%s190 + $0x9a8] sm:$0xff] %v2561
        %3074 = vst [vmem:[%s190 + $0x9b0] sm:$0xff] %v2562
        %3075 = vst [vmem:[%s190 + $0x9b8] sm:$0xff] %v2563
        %3076 = vst [vmem:[%s190 + $0x9c0] sm:$0xff] %v2564
        %3077 = vst [vmem:[%s190 + $0x9c8] sm:$0xff] %v2565
        %3078 = vst [vmem:[%s190 + $0x9d0] sm:$0xff] %v2566
        %3079 = vst [vmem:[%s190 + $0x9d8] sm:$0xff] %v2567
        %3080 = vst [vmem:[%s190 + $0x9e0] sm:$0xff] %v2568
        %3081 = vst [vmem:[%s190 + $0x9e8] sm:$0xff] %v2569
        %3082 = vst [vmem:[%s190 + $0x9f0] sm:$0xff] %v2570
        %3083 = vst [vmem:[%s190 + $0x9f8] sm:$0xff] %v2571
        %3084 = vst [vmem:[%s190 + $0xa00] sm:$0xff] %v2572
        %3085 = vst [vmem:[%s190 + $0xa08] sm:$0xff] %v2573
        %3086 = vst [vmem:[%s190 + $0xa10] sm:$0xff] %v2574
        %3087 = vst [vmem:[%s190 + $0xa18] sm:$0xff] %v2575
        %3088 = vst [vmem:[%s190 + $0xa20] sm:$0xff] %v2576
        %3089 = vst [vmem:[%s190 + $0xa28] sm:$0xff] %v2577
        %3090 = vst [vmem:[%s190 + $0xa30] sm:$0xff] %v2578
        %3091 = vst [vmem:[%s190 + $0xa38] sm:$0xff] %v2579
        %3092 = vst [vmem:[%s190 + $0xa40] sm:$0xff] %v2580
        %3093 = vst [vmem:[%s190 + $0xa48] sm:$0xff] %v2581
        %3094 = vst [vmem:[%s190 + $0xa50] sm:$0xff] %v2582
        %3095 = vst [vmem:[%s190 + $0xa58] sm:$0xff] %v2583
        %3096 = vst [vmem:[%s190 + $0xa60] sm:$0xff] %v2584
        %3097 = vst [vmem:[%s190 + $0xa68] sm:$0xff] %v2585
        %3098 = vst [vmem:[%s190 + $0xa70] sm:$0xff] %v2586
        %3099 = vst [vmem:[%s190 + $0xa78] sm:$0xff] %v2587
        %3100 = vst [vmem:[%s190 + $0xa80] sm:$0xff] %v2588
        %3101 = vst [vmem:[%s190 + $0xa88] sm:$0xff] %v2589
        %3102 = vst [vmem:[%s190 + $0xa90] sm:$0xff] %v2590
        %3103 = vst [vmem:[%s190 + $0xa98] sm:$0xff] %v2591
        %3104 = vst [vmem:[%s190 + $0xaa0] sm:$0xff] %v2592
        %3105 = vst [vmem:[%s190 + $0xaa8] sm:$0xff] %v2593
        %3106 = vst [vmem:[%s190 + $0xab0] sm:$0xff] %v2594
        %3107 = vst [vmem:[%s190 + $0xab8] sm:$0xff] %v2595
        %3108 = vst [vmem:[%s190 + $0xac0] sm:$0xff] %v2596
        %3109 = vst [vmem:[%s190 + $0xac8] sm:$0xff] %v2597
        %3110 = vst [vmem:[%s190 + $0xad0] sm:$0xff] %v2598
        %3111 = vst [vmem:[%s190 + $0xad8] sm:$0xff] %v2599
        %3112 = vst [vmem:[%s190 + $0xae0] sm:$0xff] %v2600
        %3113 = vst [vmem:[%s190 + $0xae8] sm:$0xff] %v2601
        %3114 = vst [vmem:[%s190 + $0xaf0] sm:$0xff] %v2602
        %3115 = vst [vmem:[%s190 + $0xaf8] sm:$0xff] %v2603
        %3116 = vst [vmem:[%s190 + $0xb00] sm:$0xff] %v2604
        %3117 = vst [vmem:[%s190 + $0xb08] sm:$0xff] %v2605
        %3118 = vst [vmem:[%s190 + $0xb10] sm:$0xff] %v2606
        %3119 = vst [vmem:[%s190 + $0xb18] sm:$0xff] %v2607
        %3120 = vst [vmem:[%s190 + $0xb20] sm:$0xff] %v2608
        %3121 = vst [vmem:[%s190 + $0xb28] sm:$0xff] %v2609
        %3122 = vst [vmem:[%s190 + $0xb30] sm:$0xff] %v2610
        %3123 = vst [vmem:[%s190 + $0xb38] sm:$0xff] %v2611
        %3124 = vst [vmem:[%s190 + $0xb40] sm:$0xff] %v2612
        %3125 = vst [vmem:[%s190 + $0xb48] sm:$0xff] %v2613
        %3126 = vst [vmem:[%s190 + $0xb50] sm:$0xff] %v2614
        %3127 = vst [vmem:[%s190 + $0xb58] sm:$0xff] %v2615
        %3128 = vst [vmem:[%s190 + $0xb60] sm:$0xff] %v2616
        %3129 = vst [vmem:[%s190 + $0xb68] sm:$0xff] %v2617
        %3130 = vst [vmem:[%s190 + $0xb70] sm:$0xff] %v2618
        %3131 = vst [vmem:[%s190 + $0xb78] sm:$0xff] %v2619
        %3132 = vst [vmem:[%s190 + $0xb80] sm:$0xff] %v2620
        %3133 = vst [vmem:[%s190 + $0xb88] sm:$0xff] %v2621
        %3134 = vst [vmem:[%s190 + $0xb90] sm:$0xff] %v2622
        %3135 = vst [vmem:[%s190 + $0xb98] sm:$0xff] %v2623
        %3136 = vst [vmem:[%s190 + $0xba0] sm:$0xff] %v2624
        %3137 = vst [vmem:[%s190 + $0xba8] sm:$0xff] %v2625
        %3138 = vst [vmem:[%s190 + $0xbb0] sm:$0xff] %v2626
        %3139 = vst [vmem:[%s190 + $0xbb8] sm:$0xff] %v2627
        %3140 = vst [vmem:[%s190 + $0xbc0] sm:$0xff] %v2628
        %3141 = vst [vmem:[%s190 + $0xbc8] sm:$0xff] %v2629
        %3142 = vst [vmem:[%s190 + $0xbd0] sm:$0xff] %v2630
        %3143 = vst [vmem:[%s190 + $0xbd8] sm:$0xff] %v2631
        %3144 = vst [vmem:[%s190 + $0xbe0] sm:$0xff] %v2632
        %3145 = vst [vmem:[%s190 + $0xbe8] sm:$0xff] %v2633
        %3146 = vst [vmem:[%s190 + $0xbf0] sm:$0xff] %v2634
        %3147 = vst [vmem:[%s190 + $0xbf8] sm:$0xff] %v2635
        %3148 = vst [vmem:[%s190 + $0xc00] sm:$0xff] %v2636
        %3149 = vst [vmem:[%s190 + $0xc08] sm:$0xff] %v2637
        %3150 = vst [vmem:[%s190 + $0xc10] sm:$0xff] %v2638
        %3151 = vst [vmem:[%s190 + $0xc18] sm:$0xff] %v2639
        %3152 = vst [vmem:[%s190 + $0xc20] sm:$0xff] %v2640
        %3153 = vst [vmem:[%s190 + $0xc28] sm:$0xff] %v2641
        %3154 = vst [vmem:[%s190 + $0xc30] sm:$0xff] %v2642
        %3155 = vst [vmem:[%s190 + $0xc38] sm:$0xff] %v2643
        %3156 = vst [vmem:[%s190 + $0xc40] sm:$0xff] %v2644
        %3157 = vst [vmem:[%s190 + $0xc48] sm:$0xff] %v2645
        %3158 = vst [vmem:[%s190 + $0xc50] sm:$0xff] %v2646
        %3159 = vst [vmem:[%s190 + $0xc58] sm:$0xff] %v2647
        %3160 = vst [vmem:[%s190 + $0xc60] sm:$0xff] %v2648
        %3161 = vst [vmem:[%s190 + $0xc68] sm:$0xff] %v2649
        %3162 = vst [vmem:[%s190 + $0xc70] sm:$0xff] %v2650
        %3163 = vst [vmem:[%s190 + $0xc78] sm:$0xff] %v2651
        %3164 = vst [vmem:[%s190 + $0xc80] sm:$0xff] %v2652
        %3165 = vst [vmem:[%s190 + $0xc88] sm:$0xff] %v2653
        %3166 = vst [vmem:[%s190 + $0xc90] sm:$0xff] %v2654
        %3167 = vst [vmem:[%s190 + $0xc98] sm:$0xff] %v2655
        %3168 = vst [vmem:[%s190 + $0xca0] sm:$0xff] %v2656
        %3169 = vst [vmem:[%s190 + $0xca8] sm:$0xff] %v2657
        %3170 = vst [vmem:[%s190 + $0xcb0] sm:$0xff] %v2658
        %3171 = vst [vmem:[%s190 + $0xcb8] sm:$0xff] %v2659
        %3172 = vst [vmem:[%s190 + $0xcc0] sm:$0xff] %v2660
        %3173 = vst [vmem:[%s190 + $0xcc8] sm:$0xff] %v2661
        %3174 = vst [vmem:[%s190 + $0xcd0] sm:$0xff] %v2662
        %3175 = vst [vmem:[%s190 + $0xcd8] sm:$0xff] %v2663
        %3176 = vst [vmem:[%s190 + $0xce0] sm:$0xff] %v2664
        %3177 = vst [vmem:[%s190 + $0xce8] sm:$0xff] %v2665
        %3178 = vst [vmem:[%s190 + $0xcf0] sm:$0xff] %v2666
        %3179 = vst [vmem:[%s190 + $0xcf8] sm:$0xff] %v2667
        %3180 = vst [vmem:[%s190 + $0xd00] sm:$0xff] %v2668
        %3181 = vst [vmem:[%s190 + $0xd08] sm:$0xff] %v2669
        %3182 = vst [vmem:[%s190 + $0xd10] sm:$0xff] %v2670
        %3183 = vst [vmem:[%s190 + $0xd18] sm:$0xff] %v2671
        %3184 = vst [vmem:[%s190 + $0xd20] sm:$0xff] %v2672
        %3185 = vst [vmem:[%s190 + $0xd28] sm:$0xff] %v2673
        %3186 = vst [vmem:[%s190 + $0xd30] sm:$0xff] %v2674
        %3187 = vst [vmem:[%s190 + $0xd38] sm:$0xff] %v2675
        %3188 = vst [vmem:[%s190 + $0xd40] sm:$0xff] %v2676
        %3189 = vst [vmem:[%s190 + $0xd48] sm:$0xff] %v2677
        %3190 = vst [vmem:[%s190 + $0xd50] sm:$0xff] %v2678
        %3191 = vst [vmem:[%s190 + $0xd58] sm:$0xff] %v2679
        %3192 = vst [vmem:[%s190 + $0xd60] sm:$0xff] %v2680
        %3193 = vst [vmem:[%s190 + $0xd68] sm:$0xff] %v2681
        %3194 = vst [vmem:[%s190 + $0xd70] sm:$0xff] %v2682
        %3195 = vst [vmem:[%s190 + $0xd78] sm:$0xff] %v2683
        %3196 = vst [vmem:[%s190 + $0xd80] sm:$0xff] %v2684
        %3197 = vst [vmem:[%s190 + $0xd88] sm:$0xff] %v2685
        %3198 = vst [vmem:[%s190 + $0xd90] sm:$0xff] %v2686
        %3199 = vst [vmem:[%s190 + $0xd98] sm:$0xff] %v2687
        %3200 = vst [vmem:[%s190 + $0xda0] sm:$0xff] %v2688
        %3201 = vst [vmem:[%s190 + $0xda8] sm:$0xff] %v2689
        %3202 = vst [vmem:[%s190 + $0xdb0] sm:$0xff] %v2690
        %3203 = vst [vmem:[%s190 + $0xdb8] sm:$0xff] %v2691
        %3204 = vst [vmem:[%s190 + $0xdc0] sm:$0xff] %v2692
        %3205 = vst [vmem:[%s190 + $0xdc8] sm:$0xff] %v2693
        %3206 = vst [vmem:[%s190 + $0xdd0] sm:$0xff] %v2694
        %3207 = vst [vmem:[%s190 + $0xdd8] sm:$0xff] %v2695
        %3208 = vst [vmem:[%s190 + $0xde0] sm:$0xff] %v2696
        %3209 = vst [vmem:[%s190 + $0xde8] sm:$0xff] %v2697
        %3210 = vst [vmem:[%s190 + $0xdf0] sm:$0xff] %v2698
        %3211 = vst [vmem:[%s190 + $0xdf8] sm:$0xff] %v2699
        %3212 = vst [vmem:[%s190 + $0xe00] sm:$0xff] %v2700
        %3213 = vst [vmem:[%s190 + $0xe08] sm:$0xff] %v2701
        %3214 = vst [vmem:[%s190 + $0xe10] sm:$0xff] %v2702
        %3215 = vst [vmem:[%s190 + $0xe18] sm:$0xff] %v2703
        %3216 = vst [vmem:[%s190 + $0xe20] sm:$0xff] %v2704
        %3217 = vst [vmem:[%s190 + $0xe28] sm:$0xff] %v2705
        %3218 = vst [vmem:[%s190 + $0xe30] sm:$0xff] %v2706
        %3219 = vst [vmem:[%s190 + $0xe38] sm:$0xff] %v2707
        %3220 = vst [vmem:[%s190 + $0xe40] sm:$0xff] %v2708
        %3221 = vst [vmem:[%s190 + $0xe48] sm:$0xff] %v2709
        %3222 = vst [vmem:[%s190 + $0xe50] sm:$0xff] %v2710
        %3223 = vst [vmem:[%s190 + $0xe58] sm:$0xff] %v2711
        %3224 = vst [vmem:[%s190 + $0xe60] sm:$0xff] %v2712
        %3225 = vst [vmem:[%s190 + $0xe68] sm:$0xff] %v2713
        %3226 = vst [vmem:[%s190 + $0xe70] sm:$0xff] %v2714
        %3227 = vst [vmem:[%s190 + $0xe78] sm:$0xff] %v2715
        %3228 = vst [vmem:[%s190 + $0xe80] sm:$0xff] %v2716
        %3229 = vst [vmem:[%s190 + $0xe88] sm:$0xff] %v2717
        %3230 = vst [vmem:[%s190 + $0xe90] sm:$0xff] %v2718
        %3231 = vst [vmem:[%s190 + $0xe98] sm:$0xff] %v2719
        %3232 = vst [vmem:[%s190 + $0xea0] sm:$0xff] %v2720
        %3233 = vst [vmem:[%s190 + $0xea8] sm:$0xff] %v2721
        %3234 = vst [vmem:[%s190 + $0xeb0] sm:$0xff] %v2722
        %3235 = vst [vmem:[%s190 + $0xeb8] sm:$0xff] %v2723
        %3236 = vst [vmem:[%s190 + $0xec0] sm:$0xff] %v2724
        %3237 = vst [vmem:[%s190 + $0xec8] sm:$0xff] %v2725
        %3238 = vst [vmem:[%s190 + $0xed0] sm:$0xff] %v2726
        %3239 = vst [vmem:[%s190 + $0xed8] sm:$0xff] %v2727
        %3240 = vst [vmem:[%s190 + $0xee0] sm:$0xff] %v2728
        %3241 = vst [vmem:[%s190 + $0xee8] sm:$0xff] %v2729
        %3242 = vst [vmem:[%s190 + $0xef0] sm:$0xff] %v2730
        %3243 = vst [vmem:[%s190 + $0xef8] sm:$0xff] %v2731
        %3244 = vst [vmem:[%s190 + $0xf00] sm:$0xff] %v2732
        %3245 = vst [vmem:[%s190 + $0xf08] sm:$0xff] %v2733
        %3246 = vst [vmem:[%s190 + $0xf10] sm:$0xff] %v2734
        %3247 = vst [vmem:[%s190 + $0xf18] sm:$0xff] %v2735
        %3248 = vst [vmem:[%s190 + $0xf20] sm:$0xff] %v2736
        %3249 = vst [vmem:[%s190 + $0xf28] sm:$0xff] %v2737
        %3250 = vst [vmem:[%s190 + $0xf30] sm:$0xff] %v2738
        %3251 = vst [vmem:[%s190 + $0xf38] sm:$0xff] %v2739
        %3252 = vst [vmem:[%s190 + $0xf40] sm:$0xff] %v2740
        %3253 = vst [vmem:[%s190 + $0xf48] sm:$0xff] %v2741
        %3254 = vst [vmem:[%s190 + $0xf50] sm:$0xff] %v2742
        %3255 = vst [vmem:[%s190 + $0xf58] sm:$0xff] %v2743
        %3256 = vst [vmem:[%s190 + $0xf60] sm:$0xff] %v2744
        %3257 = vst [vmem:[%s190 + $0xf68] sm:$0xff] %v2745
        %3258 = vst [vmem:[%s190 + $0xf70] sm:$0xff] %v2746
        %3259 = vst [vmem:[%s190 + $0xf78] sm:$0xff] %v2747
        %3260 = vst [vmem:[%s190 + $0xf80] sm:$0xff] %v2748
        %3261 = vst [vmem:[%s190 + $0xf88] sm:$0xff] %v2749
        %3262 = vst [vmem:[%s190 + $0xf90] sm:$0xff] %v2750
        %3263 = vst [vmem:[%s190 + $0xf98] sm:$0xff] %v2751
        %3264 = vst [vmem:[%s190 + $0xfa0] sm:$0xff] %v2752
        %3265 = vst [vmem:[%s190 + $0xfa8] sm:$0xff] %v2753
        %3266 = vst [vmem:[%s190 + $0xfb0] sm:$0xff] %v2754
        %3267 = vst [vmem:[%s190 + $0xfb8] sm:$0xff] %v2755
        %3268 = vst [vmem:[%s190 + $0xfc0] sm:$0xff] %v2756
        %3269 = vst [vmem:[%s190 + $0xfc8] sm:$0xff] %v2757
        %3270 = vst [vmem:[%s190 + $0xfd0] sm:$0xff] %v2758
        %3271 = vst [vmem:[%s190 + $0xfd8] sm:$0xff] %v2759
        %3272 = vst [vmem:[%s190 + $0xfe0] sm:$0xff] %v2760
        %3273 = vst [vmem:[%s190 + $0xfe8] sm:$0xff] %v2761
        %3274 = vst [vmem:[%s190 + $0xff0] sm:$0xff] %v2762
        %3275 = vst [vmem:[%s190 + $0xff8] sm:$0xff] %v2763
        %s3276 = sand.u32 %s95, 1
        %s3277 = scalar_lea.sflag [#allocation4], %s3276
        %s3278 = sand.u32 %s95, 1
        %s3279 = smul.addr %s3278, 4096
        %s3280 = scalar_lea.vmem [#allocation5], %s3279
        // Predicated region
        $region33: #{tpu_custom_call.1} parent=27 // pred_check
          %p3281 = pneg %p105
        $region34: #{tpu_custom_call.1} parent=27 // pred_check_branch
          %3283 = sbr.rel (%p3281) target = $region36
        $region35: #{tpu_custom_call.1} parent=27 // pred_region
          %s3284 = smul.u32 512, %s24
          %s3286 = ssub.s32 65536, 65536
          %3287 = vsyncadd %s3277, %s3286
          %s3288 = smul.addr %s23, 512
          %s3289 = sadd.s32 %s3284, %s3288
          %s3290 = smul.addr %s3289, 128
          %s3291 = scalar_lea.hbm %s2, %s3290
          %s3293 = sshll.u32 %s3280, 4
          %s3294 = int_to_ptr.vmem [resolvable:$true] %s3293
          %3296 = dma.vmem_to_hbm [thread:$0]  %s3294, 65536, %s3291, %s3277
        $region36: #{tpu_custom_call.1} parent=27 // pred_fallthru
          _
      $region28: #{tpu_custom_call.1} parent=5 // pred_fallthru
        _
      %p3297 = scmp.le.s32.totalorder 2, %s14
      // Predicated region
      $region37: #{tpu_custom_call.1} parent=5 // pred_check
        %p3298 = pneg %p3297
      $region38: #{tpu_custom_call.1} parent=5 // pred_check_branch
        %3300 = sbr.rel (%p3298) target = $region40
      $region39: #{tpu_custom_call.1} parent=5 // pred_region
        %s3301 = ssub.s32 %s14, 2
        // Predicated region
        $region41: #{tpu_custom_call.1} parent=39 // pred_check
          %p3302 = pneg %p111
        $region42: #{tpu_custom_call.1} parent=39 // pred_check_branch
          %3304 = sbr.rel (%p3302) target = $region44
        $region43: #{tpu_custom_call.1} parent=39 // pred_region
          %s3305 = sand.u32 %s96, 1
          %s3306 = scalar_lea.sflag [#allocation4], %s3305
          %s3307 = sand.u32 %s96, 1
          %s3308 = smul.addr %s3307, 4096
          %s3309 = scalar_lea.vmem [#allocation5], %s3308
          %3310 = dma.done %s3306, 65536
        $region44: #{tpu_custom_call.1} parent=39 // pred_fallthru
          _
      $region40: #{tpu_custom_call.1} parent=5 // pred_fallthru
        _
    $region6: #{tpu_custom_call.1} parent=1 // loop_footer
      %s18 = sadd.s32 1, %s14
    $region7: #{tpu_custom_call.1} parent=1 // loop_footer_branch
      %13 = sbr.rel target = $region3
    $region8: #{tpu_custom_call.1} parent=1 // loop_exit
      _
    %3311 = vsyncpa [#allocation3], 1
    %s3312 = scalar_lea.sflag [#allocation3], 1
    %3313 = vsyncpa %s3312, 1
    %3314 = vsyncpa [#allocation4], 1
    %s3315 = scalar_lea.sflag [#allocation4], 1
    %3316 = vsyncpa %s3315, 1

</llo_original>
